<compile_context>
chip_gen: v5e
topology: v5e:2x2
jax: 0.10.0
libtpu: 0.0.40
codegen_flags: <defaults>
</compile_context>

<pallas_src>
import jax
import jax.numpy as jnp
import numpy as np
from jax.experimental import pallas as pl
from jax.experimental.pallas import tpu as pltpu


def _round_up(x, m):
    return ((x + m - 1) // m) * m


# ----------------------------------------------------------------------------
# Fused Pallas kernel: all LSTM layers + final linear in one call
# ----------------------------------------------------------------------------
def make_fused_decoder_kernel(num_layers, Tp1, Bp, Hp):
    """Kernel ref order: x, (wih, whh, b) * num_layers, lin_w, lin_b, out, gx_scr, h_scr."""

    def kernel(*refs):
        x_ref = refs[0]
        layer_refs = refs[1:1 + 3 * num_layers]
        lw_ref = refs[1 + 3 * num_layers]
        lb_ref = refs[2 + 3 * num_layers]
        out_ref = refs[3 + 3 * num_layers]
        gx_scr = refs[4 + 3 * num_layers]      # (N, 4*Hp) hoisted input-projection slab
        h_scr = refs[5 + 3 * num_layers]       # (N, Hp)   hidden slab (current layer)

        for l in range(num_layers):
            wih_ref, whh_ref, b_ref = layer_refs[3 * l:3 * l + 3]

            # Hoisted input projection for ALL timesteps at once (one MXU matmul),
            # bias added once here instead of per step.
            inp = x_ref[...] if l == 0 else h_scr[...]
            gx_scr[...] = (jnp.dot(inp, wih_ref[...],
                                   preferred_element_type=jnp.float32)
                           + b_ref[...])

            # Serial recurrence: only h @ W_hh remains on the per-step critical path.
            h = jnp.zeros((Bp, Hp), jnp.float32)
            c = jnp.zeros((Bp, Hp), jnp.float32)
            for t in range(Tp1):               # static unroll (Tp1 is small)
                # Bp = 8 -> row offset t*Bp is sublane-aligned; Hp = 128 -> each
                # gate slice is a whole-vreg, 128-lane aligned selection.
                gates = (gx_scr[pl.ds(t * Bp, Bp), :]
                         + jnp.dot(h, whh_ref[...],
                                   preferred_element_type=jnp.float32))
                # PyTorch gate order [i, f, g, o].
                i_g = jax.nn.sigmoid(gates[:, 0 * Hp:1 * Hp])
                f_g = jax.nn.sigmoid(gates[:, 1 * Hp:2 * Hp])
                g_g = jnp.tanh(gates[:, 2 * Hp:3 * Hp])
                o_g = jax.nn.sigmoid(gates[:, 3 * Hp:4 * Hp])
                c = f_g * c + i_g * g_g
                h = o_g * jnp.tanh(c)
                h_scr[pl.ds(t * Bp, Bp), :] = h

        # Final vocab projection on the resident hidden slab; (N, Vp) lane-dense store.
        out_ref[...] = (jnp.dot(h_scr[...], lw_ref[...],
                                preferred_element_type=jnp.float32)
                        + lb_ref[...])

    return kernel


def fused_decoder_pallas(x_all, layers, lin_w, lin_b, *, Tp1, Bp, Hp, Vp):
    """x_all: (N, E) time-major (row = t*Bp + b), batch zero-padded to Bp;
    layers: [(wih, whh, b), ...] lane-padded; lin_w: (Hp, Vp); lin_b: (1, Vp).
    Returns (N, Vp) logits for every (t, b)."""
    N, E = x_all.shape
    num_layers = len(layers)

    in_arrays = [x_all]
    in_specs = [pl.BlockSpec((N, E), lambda i: (0, 0))]
    for (wih, whh, b) in layers:
        in_arrays += [wih, whh, b]
        in_specs += [pl.BlockSpec(wih.shape, lambda i: (0, 0)),
                     pl.BlockSpec(whh.shape, lambda i: (0, 0)),
                     pl.BlockSpec(b.shape, lambda i: (0, 0))]
    in_arrays += [lin_w, lin_b]
    in_specs += [pl.BlockSpec(lin_w.shape, lambda i: (0, 0)),
                 pl.BlockSpec(lin_b.shape, lambda i: (0, 0))]

    kernel = make_fused_decoder_kernel(num_layers, Tp1, Bp, Hp)

    return pl.pallas_call(
        kernel,
        out_shape=jax.ShapeDtypeStruct((N, Vp), jnp.float32),
        grid_spec=pltpu.PrefetchScalarGridSpec(
            num_scalar_prefetch=0,
            grid=(1,),
            in_specs=in_specs,
            out_specs=pl.BlockSpec((N, Vp), lambda i: (0, 0)),
            scratch_shapes=[
                pltpu.VMEM((N, 4 * Hp), jnp.float32),   # hoisted input-proj slab
                pltpu.VMEM((N, Hp), jnp.float32),       # hidden slab
            ],
        ),
        compiler_params=pltpu.CompilerParams(
            dimension_semantics=("arbitrary",)),
    )(*in_arrays)


# ----------------------------------------------------------------------------
# One-time weight padding (H -> Hp per gate, V -> Vp) so the kernel is lane-aligned
# ----------------------------------------------------------------------------
def _pad_gate_cols(w, H, Hp):
    """(rows, 4H) -> (rows, 4Hp): zero-pad each of the 4 gate blocks from H to Hp."""
    if Hp == H:
        return w
    rows = w.shape[0]
    out = jnp.zeros((rows, 4 * Hp), w.dtype)
    for k in range(4):
        out = out.at[:, k * Hp:k * Hp + H].set(w[:, k * H:(k + 1) * H])
    return out


def _pad_rows(w, rows_to):
    pad = rows_to - w.shape[0]
    return jnp.pad(w, ((0, pad), (0, 0))) if pad > 0 else w


def pad_params_for_tpu(params, H, Hp, V, Vp):
    """Zero-padding keeps padded lanes exactly 0 through the LSTM:
    padded gate pre-activations are 0, so i=f=o=0.5, g=tanh(0)=0,
    c_pad stays 0 and h_pad = 0.5*tanh(0) = 0 forever."""
    layers = []
    for l, layer in enumerate(params["lstm"]):
        wih = _pad_gate_cols(layer["wih_t"], H, Hp)
        if l > 0:
            wih = _pad_rows(wih, Hp)                    # input dim H -> Hp
        whh = _pad_rows(_pad_gate_cols(layer["whh_t"], H, Hp), Hp)
        b = _pad_gate_cols(layer["b"], H, Hp)
        layers.append((wih, whh, b))
    lin_w = jnp.pad(params["lin_w_t"], ((0, Hp - H), (0, Vp - V)))
    lin_b = jnp.pad(params["lin_b"], ((0, 0), (0, Vp - V)))
    return layers, lin_w, lin_b


# ----------------------------------------------------------------------------
# Forward pass (mirror of Decoder.forward)
# ----------------------------------------------------------------------------
def decoder_forward(params, features, captions, lengths):
    """features: (B, E) f32; captions: (B, T) i32; lengths: python list, sorted desc.
    Returns (sum(lengths), vocab) f32 logits in packed (time-major) order, like torch."""
    B, T = captions.shape
    Tp1 = T + 1
    E = features.shape[1]
    H = params["lstm"][0]["whh_t"].shape[0]
    V = params["lin_w_t"].shape[1]
    Hp = _round_up(H, 128)
    Vp = _round_up(V, 128)
    Bp = _round_up(B, 8)            # sublane-align the per-timestep batch block

    # One-time weight prep (would be cached across calls in a real deployment).
    layers, lin_w, lin_b = pad_params_for_tpu(params, H, Hp, V, Vp)

    # Build the time-major input without transposing float activations: gather the
    # embeddings with the (tiny) transposed caption-id array instead. Batch rows
    # B..Bp-1 are zero; they never mix with real rows (the recurrence is row-wise).
    emb = jnp.take(params["embed"], captions.T, axis=0)             # (T, B, E)
    seq = jnp.zeros((Tp1, Bp, E), jnp.float32)
    seq = seq.at[0, :B, :].set(features)
    seq = seq.at[1:, :B, :].set(emb)
    x_all = seq.reshape(Tp1 * Bp, E)                                # row = t*Bp + b

    logits_full = fused_decoder_pallas(x_all, layers, lin_w, lin_b,
                                       Tp1=Tp1, Bp=Bp, Hp=Hp, Vp=Vp)  # (N, Vp)

    # pack_padded_sequence ordering (batch_first=True, lengths sorted descending):
    # keep rows (t, b) with t < lengths[b], time-major.
    # TODO(synk): data-dependent packed-row selection stays as host/JAX glue.
    flat_idx = np.array([t * Bp + b for t in range(Tp1) for b in range(B)
                         if lengths[b] > t], dtype=np.int32)
    return logits_full[jnp.asarray(flat_idx)][:, :V]


# ----------------------------------------------------------------------------
# Pure-JAX reference (for correctness check)
# ----------------------------------------------------------------------------
def ref_lstm_layer(x_tbe, wih_t, whh_t, b):
    B = x_tbe.shape[1]
    H = whh_t.shape[0]

    def step(carry, xt):
        h, c = carry
        gates = xt @ wih_t + h @ whh_t + b
        i = jax.nn.sigmoid(gates[:, :H])
        f = jax.nn.sigmoid(gates[:, H:2 * H])
        g = jnp.tanh(gates[:, 2 * H:3 * H])
        o = jax.nn.sigmoid(gates[:, 3 * H:])
        c = f * c + i * g
        h = o * jnp.tanh(c)
        return (h, c), h

    init = (jnp.zeros((B, H), jnp.float32), jnp.zeros((B, H), jnp.float32))
    _, hs = jax.lax.scan(step, init, x_tbe)
    return hs


def decoder_forward_ref(params, features, captions, lengths):
    B, T = captions.shape
    emb = jnp.take(params["embed"], captions, axis=0)
    seq = jnp.concatenate([features[:, None, :], emb], axis=1)
    x = jnp.transpose(seq, (1, 0, 2))
    for layer in params["lstm"]:
        x = ref_lstm_layer(x, layer["wih_t"], layer["whh_t"], layer["b"])
    Tp1 = T + 1
    flat_idx = np.array(
        [t * B + b for t in range(Tp1) for b in range(B) if lengths[b] > t],
        dtype=np.int32)
    packed_h = x.reshape(Tp1 * B, -1)[jnp.asarray(flat_idx)]
    return packed_h @ params["lin_w_t"] + params["lin_b"]


# ----------------------------------------------------------------------------
# Main
# ----------------------------------------------------------------------------
if __name__ == "__main__":
    embed_size = 32
    hidden_size = 32
    vocab_size = 40
    num_layers = 2
    B, T = 2, 7                      # captions length T; LSTM runs T+1 steps
    lengths = [8, 5]                 # sorted descending, <= T+1

    key = jax.random.PRNGKey(0)
    keys = jax.random.split(key, 4 + 4 * num_layers)

    params = {
        "embed": 0.1 * jax.random.normal(keys[0], (vocab_size, embed_size),
                                         jnp.float32),
        "lin_w_t": 0.1 * jax.random.normal(keys[1], (hidden_size, vocab_size),
                                           jnp.float32),
        "lin_b": 0.1 * jax.random.normal(keys[2], (1, vocab_size), jnp.float32),
        "lstm": [],
    }
    for l in range(num_layers):
        in_dim = embed_size if l == 0 else hidden_size
        k0, k1, k2, k3 = keys[4 + 4 * l:8 + 4 * l]
        # stored pre-transposed: W_ih.T -> (in_dim, 4H), W_hh.T -> (H, 4H)
        wih_t = 0.1 * jax.random.normal(k0, (in_dim, 4 * hidden_size), jnp.float32)
        whh_t = 0.1 * jax.random.normal(k1, (hidden_size, 4 * hidden_size), jnp.float32)
        b = (0.1 * jax.random.normal(k2, (1, 4 * hidden_size), jnp.float32)
             + 0.1 * jax.random.normal(k3, (1, 4 * hidden_size), jnp.float32))
        params["lstm"].append({"wih_t": wih_t, "whh_t": whh_t, "b": b})

    features = jax.random.normal(keys[3], (B, embed_size), jnp.float32)
    captions = jax.random.randint(jax.random.PRNGKey(123), (B, T), 0,
                                  vocab_size, dtype=jnp.int32)

    out = decoder_forward(params, features, captions, lengths)
    out = jax.block_until_ready(out)

    ref = decoder_forward_ref(params, features, captions, lengths)
    assert out.shape == (sum(lengths), vocab_size), out.shape
    np.testing.assert_allclose(np.asarray(out), np.asarray(ref),
                               rtol=1e-4, atol=1e-4)

    # TODO(synk): embedding gather and pack_padded_sequence index construction stay
    # as host/JAX glue (data-dependent gather has no clean small-scale Pallas win).
    print("KERNEL_OK")
</pallas_src>

<mosaic_0001>
module attributes {stable_mosaic.version = 11 : i64} {
  func.func @kernel(%arg0: i32, %arg1: memref<64x32xf32, #tpu.memory_space<vmem>>, %arg2: memref<32x512xf32, #tpu.memory_space<vmem>>, %arg3: memref<128x512xf32, #tpu.memory_space<vmem>>, %arg4: memref<1x512xf32, #tpu.memory_space<vmem>>, %arg5: memref<128x512xf32, #tpu.memory_space<vmem>>, %arg6: memref<128x512xf32, #tpu.memory_space<vmem>>, %arg7: memref<1x512xf32, #tpu.memory_space<vmem>>, %arg8: memref<128x128xf32, #tpu.memory_space<vmem>>, %arg9: memref<1x128xf32, #tpu.memory_space<vmem>>, %arg10: memref<64x128xf32, #tpu.memory_space<vmem>>, %arg11: memref<64x512xf32, #tpu.memory_space<vmem>>, %arg12: memref<64x128xf32, #tpu.memory_space<vmem>>) attributes {dimension_semantics = [#tpu.dimension_semantics<arbitrary>], iteration_bounds = array<i64: 1>, scalar_prefetch = 0 : i64, scratch_operands = 2 : i64, tpu.core_type = #tpu.core_type<tc>, window_params = [{pipeline_mode = #tpu.pipeline_mode<synchronous>, transform_indices = @transform_0, window_bounds = array<i64: 64, 32>}, {pipeline_mode = #tpu.pipeline_mode<synchronous>, transform_indices = @transform_1, window_bounds = array<i64: 32, 512>}, {pipeline_mode = #tpu.pipeline_mode<synchronous>, transform_indices = @transform_2, window_bounds = array<i64: 128, 512>}, {pipeline_mode = #tpu.pipeline_mode<synchronous>, transform_indices = @transform_3, window_bounds = array<i64: 1, 512>}, {pipeline_mode = #tpu.pipeline_mode<synchronous>, transform_indices = @transform_4, window_bounds = array<i64: 128, 512>}, {pipeline_mode = #tpu.pipeline_mode<synchronous>, transform_indices = @transform_5, window_bounds = array<i64: 128, 512>}, {pipeline_mode = #tpu.pipeline_mode<synchronous>, transform_indices = @transform_6, window_bounds = array<i64: 1, 512>}, {pipeline_mode = #tpu.pipeline_mode<synchronous>, transform_indices = @transform_7, window_bounds = array<i64: 128, 128>}, {pipeline_mode = #tpu.pipeline_mode<synchronous>, transform_indices = @transform_8, window_bounds = array<i64: 1, 128>}, {pipeline_mode = #tpu.pipeline_mode<synchronous>, transform_indices = @transform_9, window_bounds = array<i64: 64, 128>}]} {
    %c0 = arith.constant 0 : index
    %c0_0 = arith.constant 0 : index
    %0 = vector.load %arg1[%c0, %c0_0] : memref<64x32xf32, #tpu.memory_space<vmem>>, vector<64x32xf32>
    %c0_1 = arith.constant 0 : index
    %c0_2 = arith.constant 0 : index
    %1 = vector.load %arg2[%c0_1, %c0_2] : memref<32x512xf32, #tpu.memory_space<vmem>>, vector<32x512xf32>
    %cst = arith.constant dense<0.000000e+00> : vector<64x512xf32>
    %2 = tpu.matmul %0, %1, %cst {dimension_numbers = #tpu.dot_dimension_numbers<[1], [0], [0], [1], [0, 0, 1, 1], [], []>} : vector<64x32xf32>, vector<32x512xf32>, vector<64x512xf32> -> vector<64x512xf32>
    %c0_3 = arith.constant 0 : index
    %c0_4 = arith.constant 0 : index
    %3 = vector.load %arg4[%c0_3, %c0_4] : memref<1x512xf32, #tpu.memory_space<vmem>>, vector<1x512xf32>
    %4 = vector.broadcast %3 : vector<1x512xf32> to vector<64x512xf32>
    %5 = arith.addf %2, %4 : vector<64x512xf32>
    %c0_5 = arith.constant 0 : index
    %c0_6 = arith.constant 0 : index
    %6 = vector.load %arg11[%c0_5, %c0_6] : memref<64x512xf32, #tpu.memory_space<vmem>>, vector<64x512xf32>
    tpu.vector_store %arg11[%c0_5, %c0_6], %5 {strides = array<i32>} : memref<64x512xf32, #tpu.memory_space<vmem>>, vector<64x512xf32>,
    %cst_7 = arith.constant 0.000000e+00 : f32
    %7 = vector.broadcast %cst_7 : f32 to vector<8x128xf32>
    %cst_8 = arith.constant 0.000000e+00 : f32
    %8 = vector.broadcast %cst_8 : f32 to vector<8x128xf32>
    %c0_9 = arith.constant 0 : index
    %c0_10 = arith.constant 0 : index
    %9 = vector.load %arg11[%c0_9, %c0_10] : memref<64x512xf32, #tpu.memory_space<vmem>>, vector<8x512xf32>
    %c0_11 = arith.constant 0 : index
    %c0_12 = arith.constant 0 : index
    %10 = vector.load %arg3[%c0_11, %c0_12] : memref<128x512xf32, #tpu.memory_space<vmem>>, vector<128x512xf32>
    %cst_13 = arith.constant dense<0.000000e+00> : vector<8x512xf32>
    %11 = tpu.matmul %7, %10, %cst_13 {dimension_numbers = #tpu.dot_dimension_numbers<[1], [0], [0], [1], [0, 0, 1, 1], [], []>} : vector<8x128xf32>, vector<128x512xf32>, vector<8x512xf32> -> vector<8x512xf32>
    %12 = arith.addf %9, %11 : vector<8x512xf32>
    %13 = vector.extract_strided_slice %12 {offsets = [0, 0], sizes = [8, 128], strides = [1, 1]} : vector<8x512xf32> to vector<8x128xf32>
    %14 = arith.negf %13 : vector<8x128xf32>
    %15 = math.exp %14 : vector<8x128xf32>
    %cst_14 = arith.constant 1.000000e+00 : f32
    %16 = vector.broadcast %cst_14 : f32 to vector<8x128xf32>
    %17 = arith.addf %16, %15 : vector<8x128xf32>
    %18 = arith.divf %16, %17 : vector<8x128xf32>
    %19 = vector.extract_strided_slice %12 {offsets = [0, 128], sizes = [8, 128], strides = [1, 1]} : vector<8x512xf32> to vector<8x128xf32>
    %20 = arith.negf %19 : vector<8x128xf32>
    %21 = math.exp %20 : vector<8x128xf32>
    %cst_15 = arith.constant 1.000000e+00 : f32
    %22 = vector.broadcast %cst_15 : f32 to vector<8x128xf32>
    %23 = arith.addf %22, %21 : vector<8x128xf32>
    %24 = arith.divf %22, %23 : vector<8x128xf32>
    %25 = vector.extract_strided_slice %12 {offsets = [0, 256], sizes = [8, 128], strides = [1, 1]} : vector<8x512xf32> to vector<8x128xf32>
    %26 = math.tanh %25 : vector<8x128xf32>
    %27 = vector.extract_strided_slice %12 {offsets = [0, 384], sizes = [8, 128], strides = [1, 1]} : vector<8x512xf32> to vector<8x128xf32>
    %28 = arith.negf %27 : vector<8x128xf32>
    %29 = math.exp %28 : vector<8x128xf32>
    %cst_16 = arith.constant 1.000000e+00 : f32
    %30 = vector.broadcast %cst_16 : f32 to vector<8x128xf32>
    %31 = arith.addf %30, %29 : vector<8x128xf32>
    %32 = arith.divf %30, %31 : vector<8x128xf32>
    %33 = arith.mulf %24, %8 : vector<8x128xf32>
    %34 = arith.mulf %18, %26 : vector<8x128xf32>
    %35 = arith.addf %33, %34 : vector<8x128xf32>
    %36 = math.tanh %35 : vector<8x128xf32>
    %37 = arith.mulf %32, %36 : vector<8x128xf32>
    %c0_17 = arith.constant 0 : index
    %c0_18 = arith.constant 0 : index
    %38 = vector.load %arg12[%c0_17, %c0_18] : memref<64x128xf32, #tpu.memory_space<vmem>>, vector<8x128xf32>
    tpu.vector_store %arg12[%c0_17, %c0_18], %37 {strides = array<i32>} : memref<64x128xf32, #tpu.memory_space<vmem>>, vector<8x128xf32>,
    %c8 = arith.constant 8 : index
    %c0_19 = arith.constant 0 : index
    %39 = vector.load %arg11[%c8, %c0_19] : memref<64x512xf32, #tpu.memory_space<vmem>>, vector<8x512xf32>
    %c0_20 = arith.constant 0 : index
    %c0_21 = arith.constant 0 : index
    %40 = vector.load %arg3[%c0_20, %c0_21] : memref<128x512xf32, #tpu.memory_space<vmem>>, vector<128x512xf32>
    %cst_22 = arith.constant dense<0.000000e+00> : vector<8x512xf32>
    %41 = tpu.matmul %37, %40, %cst_22 {dimension_numbers = #tpu.dot_dimension_numbers<[1], [0], [0], [1], [0, 0, 1, 1], [], []>} : vector<8x128xf32>, vector<128x512xf32>, vector<8x512xf32> -> vector<8x512xf32>
    %42 = arith.addf %39, %41 : vector<8x512xf32>
    %43 = vector.extract_strided_slice %42 {offsets = [0, 0], sizes = [8, 128], strides = [1, 1]} : vector<8x512xf32> to vector<8x128xf32>
    %44 = arith.negf %43 : vector<8x128xf32>
    %45 = math.exp %44 : vector<8x128xf32>
    %cst_23 = arith.constant 1.000000e+00 : f32
    %46 = vector.broadcast %cst_23 : f32 to vector<8x128xf32>
    %47 = arith.addf %46, %45 : vector<8x128xf32>
    %48 = arith.divf %46, %47 : vector<8x128xf32>
    %49 = vector.extract_strided_slice %42 {offsets = [0, 128], sizes = [8, 128], strides = [1, 1]} : vector<8x512xf32> to vector<8x128xf32>
    %50 = arith.negf %49 : vector<8x128xf32>
    %51 = math.exp %50 : vector<8x128xf32>
    %cst_24 = arith.constant 1.000000e+00 : f32
    %52 = vector.broadcast %cst_24 : f32 to vector<8x128xf32>
    %53 = arith.addf %52, %51 : vector<8x128xf32>
    %54 = arith.divf %52, %53 : vector<8x128xf32>
    %55 = vector.extract_strided_slice %42 {offsets = [0, 256], sizes = [8, 128], strides = [1, 1]} : vector<8x512xf32> to vector<8x128xf32>
    %56 = math.tanh %55 : vector<8x128xf32>
    %57 = vector.extract_strided_slice %42 {offsets = [0, 384], sizes = [8, 128], strides = [1, 1]} : vector<8x512xf32> to vector<8x128xf32>
    %58 = arith.negf %57 : vector<8x128xf32>
    %59 = math.exp %58 : vector<8x128xf32>
    %cst_25 = arith.constant 1.000000e+00 : f32
    %60 = vector.broadcast %cst_25 : f32 to vector<8x128xf32>
    %61 = arith.addf %60, %59 : vector<8x128xf32>
    %62 = arith.divf %60, %61 : vector<8x128xf32>
    %63 = arith.mulf %54, %35 : vector<8x128xf32>
    %64 = arith.mulf %48, %56 : vector<8x128xf32>
    %65 = arith.addf %63, %64 : vector<8x128xf32>
    %66 = math.tanh %65 : vector<8x128xf32>
    %67 = arith.mulf %62, %66 : vector<8x128xf32>
    %c8_26 = arith.constant 8 : index
    %c0_27 = arith.constant 0 : index
    %68 = vector.load %arg12[%c8_26, %c0_27] : memref<64x128xf32, #tpu.memory_space<vmem>>, vector<8x128xf32>
    tpu.vector_store %arg12[%c8_26, %c0_27], %67 {strides = array<i32>} : memref<64x128xf32, #tpu.memory_space<vmem>>, vector<8x128xf32>,
    %c16 = arith.constant 16 : index
    %c0_28 = arith.constant 0 : index
    %69 = vector.load %arg11[%c16, %c0_28] : memref<64x512xf32, #tpu.memory_space<vmem>>, vector<8x512xf32>
    %c0_29 = arith.constant 0 : index
    %c0_30 = arith.constant 0 : index
    %70 = vector.load %arg3[%c0_29, %c0_30] : memref<128x512xf32, #tpu.memory_space<vmem>>, vector<128x512xf32>
    %cst_31 = arith.constant dense<0.000000e+00> : vector<8x512xf32>
    %71 = tpu.matmul %67, %70, %cst_31 {dimension_numbers = #tpu.dot_dimension_numbers<[1], [0], [0], [1], [0, 0, 1, 1], [], []>} : vector<8x128xf32>, vector<128x512xf32>, vector<8x512xf32> -> vector<8x512xf32>
    %72 = arith.addf %69, %71 : vector<8x512xf32>
    %73 = vector.extract_strided_slice %72 {offsets = [0, 0], sizes = [8, 128], strides = [1, 1]} : vector<8x512xf32> to vector<8x128xf32>
    %74 = arith.negf %73 : vector<8x128xf32>
    %75 = math.exp %74 : vector<8x128xf32>
    %cst_32 = arith.constant 1.000000e+00 : f32
    %76 = vector.broadcast %cst_32 : f32 to vector<8x128xf32>
    %77 = arith.addf %76, %75 : vector<8x128xf32>
    %78 = arith.divf %76, %77 : vector<8x128xf32>
    %79 = vector.extract_strided_slice %72 {offsets = [0, 128], sizes = [8, 128], strides = [1, 1]} : vector<8x512xf32> to vector<8x128xf32>
    %80 = arith.negf %79 : vector<8x128xf32>
    %81 = math.exp %80 : vector<8x128xf32>
    %cst_33 = arith.constant 1.000000e+00 : f32
    %82 = vector.broadcast %cst_33 : f32 to vector<8x128xf32>
    %83 = arith.addf %82, %81 : vector<8x128xf32>
    %84 = arith.divf %82, %83 : vector<8x128xf32>
    %85 = vector.extract_strided_slice %72 {offsets = [0, 256], sizes = [8, 128], strides = [1, 1]} : vector<8x512xf32> to vector<8x128xf32>
    %86 = math.tanh %85 : vector<8x128xf32>
    %87 = vector.extract_strided_slice %72 {offsets = [0, 384], sizes = [8, 128], strides = [1, 1]} : vector<8x512xf32> to vector<8x128xf32>
    %88 = arith.negf %87 : vector<8x128xf32>
    %89 = math.exp %88 : vector<8x128xf32>
    %cst_34 = arith.constant 1.000000e+00 : f32
    %90 = vector.broadcast %cst_34 : f32 to vector<8x128xf32>
    %91 = arith.addf %90, %89 : vector<8x128xf32>
    %92 = arith.divf %90, %91 : vector<8x128xf32>
    %93 = arith.mulf %84, %65 : vector<8x128xf32>
    %94 = arith.mulf %78, %86 : vector<8x128xf32>
    %95 = arith.addf %93, %94 : vector<8x128xf32>
    %96 = math.tanh %95 : vector<8x128xf32>
    %97 = arith.mulf %92, %96 : vector<8x128xf32>
    %c16_35 = arith.constant 16 : index
    %c0_36 = arith.constant 0 : index
    %98 = vector.load %arg12[%c16_35, %c0_36] : memref<64x128xf32, #tpu.memory_space<vmem>>, vector<8x128xf32>
    tpu.vector_store %arg12[%c16_35, %c0_36], %97 {strides = array<i32>} : memref<64x128xf32, #tpu.memory_space<vmem>>, vector<8x128xf32>,
    %c24 = arith.constant 24 : index
    %c0_37 = arith.constant 0 : index
    %99 = vector.load %arg11[%c24, %c0_37] : memref<64x512xf32, #tpu.memory_space<vmem>>, vector<8x512xf32>
    %c0_38 = arith.constant 0 : index
    %c0_39 = arith.constant 0 : index
    %100 = vector.load %arg3[%c0_38, %c0_39] : memref<128x512xf32, #tpu.memory_space<vmem>>, vector<128x512xf32>
    %cst_40 = arith.constant dense<0.000000e+00> : vector<8x512xf32>
    %101 = tpu.matmul %97, %100, %cst_40 {dimension_numbers = #tpu.dot_dimension_numbers<[1], [0], [0], [1], [0, 0, 1, 1], [], []>} : vector<8x128xf32>, vector<128x512xf32>, vector<8x512xf32> -> vector<8x512xf32>
    %102 = arith.addf %99, %101 : vector<8x512xf32>
    %103 = vector.extract_strided_slice %102 {offsets = [0, 0], sizes = [8, 128], strides = [1, 1]} : vector<8x512xf32> to vector<8x128xf32>
    %104 = arith.negf %103 : vector<8x128xf32>
    %105 = math.exp %104 : vector<8x128xf32>
    %cst_41 = arith.constant 1.000000e+00 : f32
    %106 = vector.broadcast %cst_41 : f32 to vector<8x128xf32>
    %107 = arith.addf %106, %105 : vector<8x128xf32>
    %108 = arith.divf %106, %107 : vector<8x128xf32>
    %109 = vector.extract_strided_slice %102 {offsets = [0, 128], sizes = [8, 128], strides = [1, 1]} : vector<8x512xf32> to vector<8x128xf32>
    %110 = arith.negf %109 : vector<8x128xf32>
    %111 = math.exp %110 : vector<8x128xf32>
    %cst_42 = arith.constant 1.000000e+00 : f32
    %112 = vector.broadcast %cst_42 : f32 to vector<8x128xf32>
    %113 = arith.addf %112, %111 : vector<8x128xf32>
    %114 = arith.divf %112, %113 : vector<8x128xf32>
    %115 = vector.extract_strided_slice %102 {offsets = [0, 256], sizes = [8, 128], strides = [1, 1]} : vector<8x512xf32> to vector<8x128xf32>
    %116 = math.tanh %115 : vector<8x128xf32>
    %117 = vector.extract_strided_slice %102 {offsets = [0, 384], sizes = [8, 128], strides = [1, 1]} : vector<8x512xf32> to vector<8x128xf32>
    %118 = arith.negf %117 : vector<8x128xf32>
    %119 = math.exp %118 : vector<8x128xf32>
    %cst_43 = arith.constant 1.000000e+00 : f32
    %120 = vector.broadcast %cst_43 : f32 to vector<8x128xf32>
    %121 = arith.addf %120, %119 : vector<8x128xf32>
    %122 = arith.divf %120, %121 : vector<8x128xf32>
    %123 = arith.mulf %114, %95 : vector<8x128xf32>
    %124 = arith.mulf %108, %116 : vector<8x128xf32>
    %125 = arith.addf %123, %124 : vector<8x128xf32>
    %126 = math.tanh %125 : vector<8x128xf32>
    %127 = arith.mulf %122, %126 : vector<8x128xf32>
    %c24_44 = arith.constant 24 : index
    %c0_45 = arith.constant 0 : index
    %128 = vector.load %arg12[%c24_44, %c0_45] : memref<64x128xf32, #tpu.memory_space<vmem>>, vector<8x128xf32>
    tpu.vector_store %arg12[%c24_44, %c0_45], %127 {strides = array<i32>} : memref<64x128xf32, #tpu.memory_space<vmem>>, vector<8x128xf32>,
    %c32 = arith.constant 32 : index
    %c0_46 = arith.constant 0 : index
    %129 = vector.load %arg11[%c32, %c0_46] : memref<64x512xf32, #tpu.memory_space<vmem>>, vector<8x512xf32>
    %c0_47 = arith.constant 0 : index
    %c0_48 = arith.constant 0 : index
    %130 = vector.load %arg3[%c0_47, %c0_48] : memref<128x512xf32, #tpu.memory_space<vmem>>, vector<128x512xf32>
    %cst_49 = arith.constant dense<0.000000e+00> : vector<8x512xf32>
    %131 = tpu.matmul %127, %130, %cst_49 {dimension_numbers = #tpu.dot_dimension_numbers<[1], [0], [0], [1], [0, 0, 1, 1], [], []>} : vector<8x128xf32>, vector<128x512xf32>, vector<8x512xf32> -> vector<8x512xf32>
    %132 = arith.addf %129, %131 : vector<8x512xf32>
    %133 = vector.extract_strided_slice %132 {offsets = [0, 0], sizes = [8, 128], strides = [1, 1]} : vector<8x512xf32> to vector<8x128xf32>
    %134 = arith.negf %133 : vector<8x128xf32>
    %135 = math.exp %134 : vector<8x128xf32>
    %cst_50 = arith.constant 1.000000e+00 : f32
    %136 = vector.broadcast %cst_50 : f32 to vector<8x128xf32>
    %137 = arith.addf %136, %135 : vector<8x128xf32>
    %138 = arith.divf %136, %137 : vector<8x128xf32>
    %139 = vector.extract_strided_slice %132 {offsets = [0, 128], sizes = [8, 128], strides = [1, 1]} : vector<8x512xf32> to vector<8x128xf32>
    %140 = arith.negf %139 : vector<8x128xf32>
    %141 = math.exp %140 : vector<8x128xf32>
    %cst_51 = arith.constant 1.000000e+00 : f32
    %142 = vector.broadcast %cst_51 : f32 to vector<8x128xf32>
    %143 = arith.addf %142, %141 : vector<8x128xf32>
    %144 = arith.divf %142, %143 : vector<8x128xf32>
    %145 = vector.extract_strided_slice %132 {offsets = [0, 256], sizes = [8, 128], strides = [1, 1]} : vector<8x512xf32> to vector<8x128xf32>
    %146 = math.tanh %145 : vector<8x128xf32>
    %147 = vector.extract_strided_slice %132 {offsets = [0, 384], sizes = [8, 128], strides = [1, 1]} : vector<8x512xf32> to vector<8x128xf32>
    %148 = arith.negf %147 : vector<8x128xf32>
    %149 = math.exp %148 : vector<8x128xf32>
    %cst_52 = arith.constant 1.000000e+00 : f32
    %150 = vector.broadcast %cst_52 : f32 to vector<8x128xf32>
    %151 = arith.addf %150, %149 : vector<8x128xf32>
    %152 = arith.divf %150, %151 : vector<8x128xf32>
    %153 = arith.mulf %144, %125 : vector<8x128xf32>
    %154 = arith.mulf %138, %146 : vector<8x128xf32>
    %155 = arith.addf %153, %154 : vector<8x128xf32>
    %156 = math.tanh %155 : vector<8x128xf32>
    %157 = arith.mulf %152, %156 : vector<8x128xf32>
    %c32_53 = arith.constant 32 : index
    %c0_54 = arith.constant 0 : index
    %158 = vector.load %arg12[%c32_53, %c0_54] : memref<64x128xf32, #tpu.memory_space<vmem>>, vector<8x128xf32>
    tpu.vector_store %arg12[%c32_53, %c0_54], %157 {strides = array<i32>} : memref<64x128xf32, #tpu.memory_space<vmem>>, vector<8x128xf32>,
    %c40 = arith.constant 40 : index
    %c0_55 = arith.constant 0 : index
    %159 = vector.load %arg11[%c40, %c0_55] : memref<64x512xf32, #tpu.memory_space<vmem>>, vector<8x512xf32>
    %c0_56 = arith.constant 0 : index
    %c0_57 = arith.constant 0 : index
    %160 = vector.load %arg3[%c0_56, %c0_57] : memref<128x512xf32, #tpu.memory_space<vmem>>, vector<128x512xf32>
    %cst_58 = arith.constant dense<0.000000e+00> : vector<8x512xf32>
    %161 = tpu.matmul %157, %160, %cst_58 {dimension_numbers = #tpu.dot_dimension_numbers<[1], [0], [0], [1], [0, 0, 1, 1], [], []>} : vector<8x128xf32>, vector<128x512xf32>, vector<8x512xf32> -> vector<8x512xf32>
    %162 = arith.addf %159, %161 : vector<8x512xf32>
    %163 = vector.extract_strided_slice %162 {offsets = [0, 0], sizes = [8, 128], strides = [1, 1]} : vector<8x512xf32> to vector<8x128xf32>
    %164 = arith.negf %163 : vector<8x128xf32>
    %165 = math.exp %164 : vector<8x128xf32>
    %cst_59 = arith.constant 1.000000e+00 : f32
    %166 = vector.broadcast %cst_59 : f32 to vector<8x128xf32>
    %167 = arith.addf %166, %165 : vector<8x128xf32>
    %168 = arith.divf %166, %167 : vector<8x128xf32>
    %169 = vector.extract_strided_slice %162 {offsets = [0, 128], sizes = [8, 128], strides = [1, 1]} : vector<8x512xf32> to vector<8x128xf32>
    %170 = arith.negf %169 : vector<8x128xf32>
    %171 = math.exp %170 : vector<8x128xf32>
    %cst_60 = arith.constant 1.000000e+00 : f32
    %172 = vector.broadcast %cst_60 : f32 to vector<8x128xf32>
    %173 = arith.addf %172, %171 : vector<8x128xf32>
    %174 = arith.divf %172, %173 : vector<8x128xf32>
    %175 = vector.extract_strided_slice %162 {offsets = [0, 256], sizes = [8, 128], strides = [1, 1]} : vector<8x512xf32> to vector<8x128xf32>
    %176 = math.tanh %175 : vector<8x128xf32>
    %177 = vector.extract_strided_slice %162 {offsets = [0, 384], sizes = [8, 128], strides = [1, 1]} : vector<8x512xf32> to vector<8x128xf32>
    %178 = arith.negf %177 : vector<8x128xf32>
    %179 = math.exp %178 : vector<8x128xf32>
    %cst_61 = arith.constant 1.000000e+00 : f32
    %180 = vector.broadcast %cst_61 : f32 to vector<8x128xf32>
    %181 = arith.addf %180, %179 : vector<8x128xf32>
    %182 = arith.divf %180, %181 : vector<8x128xf32>
    %183 = arith.mulf %174, %155 : vector<8x128xf32>
    %184 = arith.mulf %168, %176 : vector<8x128xf32>
    %185 = arith.addf %183, %184 : vector<8x128xf32>
    %186 = math.tanh %185 : vector<8x128xf32>
    %187 = arith.mulf %182, %186 : vector<8x128xf32>
    %c40_62 = arith.constant 40 : index
    %c0_63 = arith.constant 0 : index
    %188 = vector.load %arg12[%c40_62, %c0_63] : memref<64x128xf32, #tpu.memory_space<vmem>>, vector<8x128xf32>
    tpu.vector_store %arg12[%c40_62, %c0_63], %187 {strides = array<i32>} : memref<64x128xf32, #tpu.memory_space<vmem>>, vector<8x128xf32>,
    %c48 = arith.constant 48 : index
    %c0_64 = arith.constant 0 : index
    %189 = vector.load %arg11[%c48, %c0_64] : memref<64x512xf32, #tpu.memory_space<vmem>>, vector<8x512xf32>
    %c0_65 = arith.constant 0 : index
    %c0_66 = arith.constant 0 : index
    %190 = vector.load %arg3[%c0_65, %c0_66] : memref<128x512xf32, #tpu.memory_space<vmem>>, vector<128x512xf32>
    %cst_67 = arith.constant dense<0.000000e+00> : vector<8x512xf32>
    %191 = tpu.matmul %187, %190, %cst_67 {dimension_numbers = #tpu.dot_dimension_numbers<[1], [0], [0], [1], [0, 0, 1, 1], [], []>} : vector<8x128xf32>, vector<128x512xf32>, vector<8x512xf32> -> vector<8x512xf32>
    %192 = arith.addf %189, %191 : vector<8x512xf32>
    %193 = vector.extract_strided_slice %192 {offsets = [0, 0], sizes = [8, 128], strides = [1, 1]} : vector<8x512xf32> to vector<8x128xf32>
    %194 = arith.negf %193 : vector<8x128xf32>
    %195 = math.exp %194 : vector<8x128xf32>
    %cst_68 = arith.constant 1.000000e+00 : f32
    %196 = vector.broadcast %cst_68 : f32 to vector<8x128xf32>
    %197 = arith.addf %196, %195 : vector<8x128xf32>
    %198 = arith.divf %196, %197 : vector<8x128xf32>
    %199 = vector.extract_strided_slice %192 {offsets = [0, 128], sizes = [8, 128], strides = [1, 1]} : vector<8x512xf32> to vector<8x128xf32>
    %200 = arith.negf %199 : vector<8x128xf32>
    %201 = math.exp %200 : vector<8x128xf32>
    %cst_69 = arith.constant 1.000000e+00 : f32
    %202 = vector.broadcast %cst_69 : f32 to vector<8x128xf32>
    %203 = arith.addf %202, %201 : vector<8x128xf32>
    %204 = arith.divf %202, %203 : vector<8x128xf32>
    %205 = vector.extract_strided_slice %192 {offsets = [0, 256], sizes = [8, 128], strides = [1, 1]} : vector<8x512xf32> to vector<8x128xf32>
    %206 = math.tanh %205 : vector<8x128xf32>
    %207 = vector.extract_strided_slice %192 {offsets = [0, 384], sizes = [8, 128], strides = [1, 1]} : vector<8x512xf32> to vector<8x128xf32>
    %208 = arith.negf %207 : vector<8x128xf32>
    %209 = math.exp %208 : vector<8x128xf32>
    %cst_70 = arith.constant 1.000000e+00 : f32
    %210 = vector.broadcast %cst_70 : f32 to vector<8x128xf32>
    %211 = arith.addf %210, %209 : vector<8x128xf32>
    %212 = arith.divf %210, %211 : vector<8x128xf32>
    %213 = arith.mulf %204, %185 : vector<8x128xf32>
    %214 = arith.mulf %198, %206 : vector<8x128xf32>
    %215 = arith.addf %213, %214 : vector<8x128xf32>
    %216 = math.tanh %215 : vector<8x128xf32>
    %217 = arith.mulf %212, %216 : vector<8x128xf32>
    %c48_71 = arith.constant 48 : index
    %c0_72 = arith.constant 0 : index
    %218 = vector.load %arg12[%c48_71, %c0_72] : memref<64x128xf32, #tpu.memory_space<vmem>>, vector<8x128xf32>
    tpu.vector_store %arg12[%c48_71, %c0_72], %217 {strides = array<i32>} : memref<64x128xf32, #tpu.memory_space<vmem>>, vector<8x128xf32>,
    %c56 = arith.constant 56 : index
    %c0_73 = arith.constant 0 : index
    %219 = vector.load %arg11[%c56, %c0_73] : memref<64x512xf32, #tpu.memory_space<vmem>>, vector<8x512xf32>
    %c0_74 = arith.constant 0 : index
    %c0_75 = arith.constant 0 : index
    %220 = vector.load %arg3[%c0_74, %c0_75] : memref<128x512xf32, #tpu.memory_space<vmem>>, vector<128x512xf32>
    %cst_76 = arith.constant dense<0.000000e+00> : vector<8x512xf32>
    %221 = tpu.matmul %217, %220, %cst_76 {dimension_numbers = #tpu.dot_dimension_numbers<[1], [0], [0], [1], [0, 0, 1, 1], [], []>} : vector<8x128xf32>, vector<128x512xf32>, vector<8x512xf32> -> vector<8x512xf32>
    %222 = arith.addf %219, %221 : vector<8x512xf32>
    %223 = vector.extract_strided_slice %222 {offsets = [0, 0], sizes = [8, 128], strides = [1, 1]} : vector<8x512xf32> to vector<8x128xf32>
    %224 = arith.negf %223 : vector<8x128xf32>
    %225 = math.exp %224 : vector<8x128xf32>
    %cst_77 = arith.constant 1.000000e+00 : f32
    %226 = vector.broadcast %cst_77 : f32 to vector<8x128xf32>
    %227 = arith.addf %226, %225 : vector<8x128xf32>
    %228 = arith.divf %226, %227 : vector<8x128xf32>
    %229 = vector.extract_strided_slice %222 {offsets = [0, 128], sizes = [8, 128], strides = [1, 1]} : vector<8x512xf32> to vector<8x128xf32>
    %230 = arith.negf %229 : vector<8x128xf32>
    %231 = math.exp %230 : vector<8x128xf32>
    %cst_78 = arith.constant 1.000000e+00 : f32
    %232 = vector.broadcast %cst_78 : f32 to vector<8x128xf32>
    %233 = arith.addf %232, %231 : vector<8x128xf32>
    %234 = arith.divf %232, %233 : vector<8x128xf32>
    %235 = vector.extract_strided_slice %222 {offsets = [0, 256], sizes = [8, 128], strides = [1, 1]} : vector<8x512xf32> to vector<8x128xf32>
    %236 = math.tanh %235 : vector<8x128xf32>
    %237 = vector.extract_strided_slice %222 {offsets = [0, 384], sizes = [8, 128], strides = [1, 1]} : vector<8x512xf32> to vector<8x128xf32>
    %238 = arith.negf %237 : vector<8x128xf32>
    %239 = math.exp %238 : vector<8x128xf32>
    %cst_79 = arith.constant 1.000000e+00 : f32
    %240 = vector.broadcast %cst_79 : f32 to vector<8x128xf32>
    %241 = arith.addf %240, %239 : vector<8x128xf32>
    %242 = arith.divf %240, %241 : vector<8x128xf32>
    %243 = arith.mulf %234, %215 : vector<8x128xf32>
    %244 = arith.mulf %228, %236 : vector<8x128xf32>
    %245 = arith.addf %243, %244 : vector<8x128xf32>
    %246 = math.tanh %245 : vector<8x128xf32>
    %247 = arith.mulf %242, %246 : vector<8x128xf32>
    %c56_80 = arith.constant 56 : index
    %c0_81 = arith.constant 0 : index
    %248 = vector.load %arg12[%c56_80, %c0_81] : memref<64x128xf32, #tpu.memory_space<vmem>>, vector<8x128xf32>
    tpu.vector_store %arg12[%c56_80, %c0_81], %247 {strides = array<i32>} : memref<64x128xf32, #tpu.memory_space<vmem>>, vector<8x128xf32>,
    %c0_82 = arith.constant 0 : index
    %c0_83 = arith.constant 0 : index
    %249 = vector.load %arg12[%c0_82, %c0_83] : memref<64x128xf32, #tpu.memory_space<vmem>>, vector<64x128xf32>
    %c0_84 = arith.constant 0 : index
    %c0_85 = arith.constant 0 : index
    %250 = vector.load %arg5[%c0_84, %c0_85] : memref<128x512xf32, #tpu.memory_space<vmem>>, vector<128x512xf32>
    %cst_86 = arith.constant dense<0.000000e+00> : vector<64x512xf32>
    %251 = tpu.matmul %249, %250, %cst_86 {dimension_numbers = #tpu.dot_dimension_numbers<[1], [0], [0], [1], [0, 0, 1, 1], [], []>} : vector<64x128xf32>, vector<128x512xf32>, vector<64x512xf32> -> vector<64x512xf32>
    %c0_87 = arith.constant 0 : index
    %c0_88 = arith.constant 0 : index
    %252 = vector.load %arg7[%c0_87, %c0_88] : memref<1x512xf32, #tpu.memory_space<vmem>>, vector<1x512xf32>
    %253 = vector.broadcast %252 : vector<1x512xf32> to vector<64x512xf32>
    %254 = arith.addf %251, %253 : vector<64x512xf32>
    %c0_89 = arith.constant 0 : index
    %c0_90 = arith.constant 0 : index
    %255 = vector.load %arg11[%c0_89, %c0_90] : memref<64x512xf32, #tpu.memory_space<vmem>>, vector<64x512xf32>
    tpu.vector_store %arg11[%c0_89, %c0_90], %254 {strides = array<i32>} : memref<64x512xf32, #tpu.memory_space<vmem>>, vector<64x512xf32>,
    %cst_91 = arith.constant 0.000000e+00 : f32
    %256 = vector.broadcast %cst_91 : f32 to vector<8x128xf32>
    %cst_92 = arith.constant 0.000000e+00 : f32
    %257 = vector.broadcast %cst_92 : f32 to vector<8x128xf32>
    %c0_93 = arith.constant 0 : index
    %c0_94 = arith.constant 0 : index
    %258 = vector.load %arg11[%c0_93, %c0_94] : memref<64x512xf32, #tpu.memory_space<vmem>>, vector<8x512xf32>
    %c0_95 = arith.constant 0 : index
    %c0_96 = arith.constant 0 : index
    %259 = vector.load %arg6[%c0_95, %c0_96] : memref<128x512xf32, #tpu.memory_space<vmem>>, vector<128x512xf32>
    %cst_97 = arith.constant dense<0.000000e+00> : vector<8x512xf32>
    %260 = tpu.matmul %256, %259, %cst_97 {dimension_numbers = #tpu.dot_dimension_numbers<[1], [0], [0], [1], [0, 0, 1, 1], [], []>} : vector<8x128xf32>, vector<128x512xf32>, vector<8x512xf32> -> vector<8x512xf32>
    %261 = arith.addf %258, %260 : vector<8x512xf32>
    %262 = vector.extract_strided_slice %261 {offsets = [0, 0], sizes = [8, 128], strides = [1, 1]} : vector<8x512xf32> to vector<8x128xf32>
    %263 = arith.negf %262 : vector<8x128xf32>
    %264 = math.exp %263 : vector<8x128xf32>
    %cst_98 = arith.constant 1.000000e+00 : f32
    %265 = vector.broadcast %cst_98 : f32 to vector<8x128xf32>
    %266 = arith.addf %265, %264 : vector<8x128xf32>
    %267 = arith.divf %265, %266 : vector<8x128xf32>
    %268 = vector.extract_strided_slice %261 {offsets = [0, 128], sizes = [8, 128], strides = [1, 1]} : vector<8x512xf32> to vector<8x128xf32>
    %269 = arith.negf %268 : vector<8x128xf32>
    %270 = math.exp %269 : vector<8x128xf32>
    %cst_99 = arith.constant 1.000000e+00 : f32
    %271 = vector.broadcast %cst_99 : f32 to vector<8x128xf32>
    %272 = arith.addf %271, %270 : vector<8x128xf32>
    %273 = arith.divf %271, %272 : vector<8x128xf32>
    %274 = vector.extract_strided_slice %261 {offsets = [0, 256], sizes = [8, 128], strides = [1, 1]} : vector<8x512xf32> to vector<8x128xf32>
    %275 = math.tanh %274 : vector<8x128xf32>
    %276 = vector.extract_strided_slice %261 {offsets = [0, 384], sizes = [8, 128], strides = [1, 1]} : vector<8x512xf32> to vector<8x128xf32>
    %277 = arith.negf %276 : vector<8x128xf32>
    %278 = math.exp %277 : vector<8x128xf32>
    %cst_100 = arith.constant 1.000000e+00 : f32
    %279 = vector.broadcast %cst_100 : f32 to vector<8x128xf32>
    %280 = arith.addf %279, %278 : vector<8x128xf32>
    %281 = arith.divf %279, %280 : vector<8x128xf32>
    %282 = arith.mulf %273, %257 : vector<8x128xf32>
    %283 = arith.mulf %267, %275 : vector<8x128xf32>
    %284 = arith.addf %282, %283 : vector<8x128xf32>
    %285 = math.tanh %284 : vector<8x128xf32>
    %286 = arith.mulf %281, %285 : vector<8x128xf32>
    %c0_101 = arith.constant 0 : index
    %c0_102 = arith.constant 0 : index
    %287 = vector.load %arg12[%c0_101, %c0_102] : memref<64x128xf32, #tpu.memory_space<vmem>>, vector<8x128xf32>
    tpu.vector_store %arg12[%c0_101, %c0_102], %286 {strides = array<i32>} : memref<64x128xf32, #tpu.memory_space<vmem>>, vector<8x128xf32>,
    %c8_103 = arith.constant 8 : index
    %c0_104 = arith.constant 0 : index
    %288 = vector.load %arg11[%c8_103, %c0_104] : memref<64x512xf32, #tpu.memory_space<vmem>>, vector<8x512xf32>
    %c0_105 = arith.constant 0 : index
    %c0_106 = arith.constant 0 : index
    %289 = vector.load %arg6[%c0_105, %c0_106] : memref<128x512xf32, #tpu.memory_space<vmem>>, vector<128x512xf32>
    %cst_107 = arith.constant dense<0.000000e+00> : vector<8x512xf32>
    %290 = tpu.matmul %286, %289, %cst_107 {dimension_numbers = #tpu.dot_dimension_numbers<[1], [0], [0], [1], [0, 0, 1, 1], [], []>} : vector<8x128xf32>, vector<128x512xf32>, vector<8x512xf32> -> vector<8x512xf32>
    %291 = arith.addf %288, %290 : vector<8x512xf32>
    %292 = vector.extract_strided_slice %291 {offsets = [0, 0], sizes = [8, 128], strides = [1, 1]} : vector<8x512xf32> to vector<8x128xf32>
    %293 = arith.negf %292 : vector<8x128xf32>
    %294 = math.exp %293 : vector<8x128xf32>
    %cst_108 = arith.constant 1.000000e+00 : f32
    %295 = vector.broadcast %cst_108 : f32 to vector<8x128xf32>
    %296 = arith.addf %295, %294 : vector<8x128xf32>
    %297 = arith.divf %295, %296 : vector<8x128xf32>
    %298 = vector.extract_strided_slice %291 {offsets = [0, 128], sizes = [8, 128], strides = [1, 1]} : vector<8x512xf32> to vector<8x128xf32>
    %299 = arith.negf %298 : vector<8x128xf32>
    %300 = math.exp %299 : vector<8x128xf32>
    %cst_109 = arith.constant 1.000000e+00 : f32
    %301 = vector.broadcast %cst_109 : f32 to vector<8x128xf32>
    %302 = arith.addf %301, %300 : vector<8x128xf32>
    %303 = arith.divf %301, %302 : vector<8x128xf32>
    %304 = vector.extract_strided_slice %291 {offsets = [0, 256], sizes = [8, 128], strides = [1, 1]} : vector<8x512xf32> to vector<8x128xf32>
    %305 = math.tanh %304 : vector<8x128xf32>
    %306 = vector.extract_strided_slice %291 {offsets = [0, 384], sizes = [8, 128], strides = [1, 1]} : vector<8x512xf32> to vector<8x128xf32>
    %307 = arith.negf %306 : vector<8x128xf32>
    %308 = math.exp %307 : vector<8x128xf32>
    %cst_110 = arith.constant 1.000000e+00 : f32
    %309 = vector.broadcast %cst_110 : f32 to vector<8x128xf32>
    %310 = arith.addf %309, %308 : vector<8x128xf32>
    %311 = arith.divf %309, %310 : vector<8x128xf32>
    %312 = arith.mulf %303, %284 : vector<8x128xf32>
    %313 = arith.mulf %297, %305 : vector<8x128xf32>
    %314 = arith.addf %312, %313 : vector<8x128xf32>
    %315 = math.tanh %314 : vector<8x128xf32>
    %316 = arith.mulf %311, %315 : vector<8x128xf32>
    %c8_111 = arith.constant 8 : index
    %c0_112 = arith.constant 0 : index
    %317 = vector.load %arg12[%c8_111, %c0_112] : memref<64x128xf32, #tpu.memory_space<vmem>>, vector<8x128xf32>
    tpu.vector_store %arg12[%c8_111, %c0_112], %316 {strides = array<i32>} : memref<64x128xf32, #tpu.memory_space<vmem>>, vector<8x128xf32>,
    %c16_113 = arith.constant 16 : index
    %c0_114 = arith.constant 0 : index
    %318 = vector.load %arg11[%c16_113, %c0_114] : memref<64x512xf32, #tpu.memory_space<vmem>>, vector<8x512xf32>
    %c0_115 = arith.constant 0 : index
    %c0_116 = arith.constant 0 : index
    %319 = vector.load %arg6[%c0_115, %c0_116] : memref<128x512xf32, #tpu.memory_space<vmem>>, vector<128x512xf32>
    %cst_117 = arith.constant dense<0.000000e+00> : vector<8x512xf32>
    %320 = tpu.matmul %316, %319, %cst_117 {dimension_numbers = #tpu.dot_dimension_numbers<[1], [0], [0], [1], [0, 0, 1, 1], [], []>} : vector<8x128xf32>, vector<128x512xf32>, vector<8x512xf32> -> vector<8x512xf32>
    %321 = arith.addf %318, %320 : vector<8x512xf32>
    %322 = vector.extract_strided_slice %321 {offsets = [0, 0], sizes = [8, 128], strides = [1, 1]} : vector<8x512xf32> to vector<8x128xf32>
    %323 = arith.negf %322 : vector<8x128xf32>
    %324 = math.exp %323 : vector<8x128xf32>
    %cst_118 = arith.constant 1.000000e+00 : f32
    %325 = vector.broadcast %cst_118 : f32 to vector<8x128xf32>
    %326 = arith.addf %325, %324 : vector<8x128xf32>
    %327 = arith.divf %325, %326 : vector<8x128xf32>
    %328 = vector.extract_strided_slice %321 {offsets = [0, 128], sizes = [8, 128], strides = [1, 1]} : vector<8x512xf32> to vector<8x128xf32>
    %329 = arith.negf %328 : vector<8x128xf32>
    %330 = math.exp %329 : vector<8x128xf32>
    %cst_119 = arith.constant 1.000000e+00 : f32
    %331 = vector.broadcast %cst_119 : f32 to vector<8x128xf32>
    %332 = arith.addf %331, %330 : vector<8x128xf32>
    %333 = arith.divf %331, %332 : vector<8x128xf32>
    %334 = vector.extract_strided_slice %321 {offsets = [0, 256], sizes = [8, 128], strides = [1, 1]} : vector<8x512xf32> to vector<8x128xf32>
    %335 = math.tanh %334 : vector<8x128xf32>
    %336 = vector.extract_strided_slice %321 {offsets = [0, 384], sizes = [8, 128], strides = [1, 1]} : vector<8x512xf32> to vector<8x128xf32>
    %337 = arith.negf %336 : vector<8x128xf32>
    %338 = math.exp %337 : vector<8x128xf32>
    %cst_120 = arith.constant 1.000000e+00 : f32
    %339 = vector.broadcast %cst_120 : f32 to vector<8x128xf32>
    %340 = arith.addf %339, %338 : vector<8x128xf32>
    %341 = arith.divf %339, %340 : vector<8x128xf32>
    %342 = arith.mulf %333, %314 : vector<8x128xf32>
    %343 = arith.mulf %327, %335 : vector<8x128xf32>
    %344 = arith.addf %342, %343 : vector<8x128xf32>
    %345 = math.tanh %344 : vector<8x128xf32>
    %346 = arith.mulf %341, %345 : vector<8x128xf32>
    %c16_121 = arith.constant 16 : index
    %c0_122 = arith.constant 0 : index
    %347 = vector.load %arg12[%c16_121, %c0_122] : memref<64x128xf32, #tpu.memory_space<vmem>>, vector<8x128xf32>
    tpu.vector_store %arg12[%c16_121, %c0_122], %346 {strides = array<i32>} : memref<64x128xf32, #tpu.memory_space<vmem>>, vector<8x128xf32>,
    %c24_123 = arith.constant 24 : index
    %c0_124 = arith.constant 0 : index
    %348 = vector.load %arg11[%c24_123, %c0_124] : memref<64x512xf32, #tpu.memory_space<vmem>>, vector<8x512xf32>
    %c0_125 = arith.constant 0 : index
    %c0_126 = arith.constant 0 : index
    %349 = vector.load %arg6[%c0_125, %c0_126] : memref<128x512xf32, #tpu.memory_space<vmem>>, vector<128x512xf32>
    %cst_127 = arith.constant dense<0.000000e+00> : vector<8x512xf32>
    %350 = tpu.matmul %346, %349, %cst_127 {dimension_numbers = #tpu.dot_dimension_numbers<[1], [0], [0], [1], [0, 0, 1, 1], [], []>} : vector<8x128xf32>, vector<128x512xf32>, vector<8x512xf32> -> vector<8x512xf32>
    %351 = arith.addf %348, %350 : vector<8x512xf32>
    %352 = vector.extract_strided_slice %351 {offsets = [0, 0], sizes = [8, 128], strides = [1, 1]} : vector<8x512xf32> to vector<8x128xf32>
    %353 = arith.negf %352 : vector<8x128xf32>
    %354 = math.exp %353 : vector<8x128xf32>
    %cst_128 = arith.constant 1.000000e+00 : f32
    %355 = vector.broadcast %cst_128 : f32 to vector<8x128xf32>
    %356 = arith.addf %355, %354 : vector<8x128xf32>
    %357 = arith.divf %355, %356 : vector<8x128xf32>
    %358 = vector.extract_strided_slice %351 {offsets = [0, 128], sizes = [8, 128], strides = [1, 1]} : vector<8x512xf32> to vector<8x128xf32>
    %359 = arith.negf %358 : vector<8x128xf32>
    %360 = math.exp %359 : vector<8x128xf32>
    %cst_129 = arith.constant 1.000000e+00 : f32
    %361 = vector.broadcast %cst_129 : f32 to vector<8x128xf32>
    %362 = arith.addf %361, %360 : vector<8x128xf32>
    %363 = arith.divf %361, %362 : vector<8x128xf32>
    %364 = vector.extract_strided_slice %351 {offsets = [0, 256], sizes = [8, 128], strides = [1, 1]} : vector<8x512xf32> to vector<8x128xf32>
    %365 = math.tanh %364 : vector<8x128xf32>
    %366 = vector.extract_strided_slice %351 {offsets = [0, 384], sizes = [8, 128], strides = [1, 1]} : vector<8x512xf32> to vector<8x128xf32>
    %367 = arith.negf %366 : vector<8x128xf32>
    %368 = math.exp %367 : vector<8x128xf32>
    %cst_130 = arith.constant 1.000000e+00 : f32
    %369 = vector.broadcast %cst_130 : f32 to vector<8x128xf32>
    %370 = arith.addf %369, %368 : vector<8x128xf32>
    %371 = arith.divf %369, %370 : vector<8x128xf32>
    %372 = arith.mulf %363, %344 : vector<8x128xf32>
    %373 = arith.mulf %357, %365 : vector<8x128xf32>
    %374 = arith.addf %372, %373 : vector<8x128xf32>
    %375 = math.tanh %374 : vector<8x128xf32>
    %376 = arith.mulf %371, %375 : vector<8x128xf32>
    %c24_131 = arith.constant 24 : index
    %c0_132 = arith.constant 0 : index
    %377 = vector.load %arg12[%c24_131, %c0_132] : memref<64x128xf32, #tpu.memory_space<vmem>>, vector<8x128xf32>
    tpu.vector_store %arg12[%c24_131, %c0_132], %376 {strides = array<i32>} : memref<64x128xf32, #tpu.memory_space<vmem>>, vector<8x128xf32>,
    %c32_133 = arith.constant 32 : index
    %c0_134 = arith.constant 0 : index
    %378 = vector.load %arg11[%c32_133, %c0_134] : memref<64x512xf32, #tpu.memory_space<vmem>>, vector<8x512xf32>
    %c0_135 = arith.constant 0 : index
    %c0_136 = arith.constant 0 : index
    %379 = vector.load %arg6[%c0_135, %c0_136] : memref<128x512xf32, #tpu.memory_space<vmem>>, vector<128x512xf32>
    %cst_137 = arith.constant dense<0.000000e+00> : vector<8x512xf32>
    %380 = tpu.matmul %376, %379, %cst_137 {dimension_numbers = #tpu.dot_dimension_numbers<[1], [0], [0], [1], [0, 0, 1, 1], [], []>} : vector<8x128xf32>, vector<128x512xf32>, vector<8x512xf32> -> vector<8x512xf32>
    %381 = arith.addf %378, %380 : vector<8x512xf32>
    %382 = vector.extract_strided_slice %381 {offsets = [0, 0], sizes = [8, 128], strides = [1, 1]} : vector<8x512xf32> to vector<8x128xf32>
    %383 = arith.negf %382 : vector<8x128xf32>
    %384 = math.exp %383 : vector<8x128xf32>
    %cst_138 = arith.constant 1.000000e+00 : f32
    %385 = vector.broadcast %cst_138 : f32 to vector<8x128xf32>
    %386 = arith.addf %385, %384 : vector<8x128xf32>
    %387 = arith.divf %385, %386 : vector<8x128xf32>
    %388 = vector.extract_strided_slice %381 {offsets = [0, 128], sizes = [8, 128], strides = [1, 1]} : vector<8x512xf32> to vector<8x128xf32>
    %389 = arith.negf %388 : vector<8x128xf32>
    %390 = math.exp %389 : vector<8x128xf32>
    %cst_139 = arith.constant 1.000000e+00 : f32
    %391 = vector.broadcast %cst_139 : f32 to vector<8x128xf32>
    %392 = arith.addf %391, %390 : vector<8x128xf32>
    %393 = arith.divf %391, %392 : vector<8x128xf32>
    %394 = vector.extract_strided_slice %381 {offsets = [0, 256], sizes = [8, 128], strides = [1, 1]} : vector<8x512xf32> to vector<8x128xf32>
    %395 = math.tanh %394 : vector<8x128xf32>
    %396 = vector.extract_strided_slice %381 {offsets = [0, 384], sizes = [8, 128], strides = [1, 1]} : vector<8x512xf32> to vector<8x128xf32>
    %397 = arith.negf %396 : vector<8x128xf32>
    %398 = math.exp %397 : vector<8x128xf32>
    %cst_140 = arith.constant 1.000000e+00 : f32
    %399 = vector.broadcast %cst_140 : f32 to vector<8x128xf32>
    %400 = arith.addf %399, %398 : vector<8x128xf32>
    %401 = arith.divf %399, %400 : vector<8x128xf32>
    %402 = arith.mulf %393, %374 : vector<8x128xf32>
    %403 = arith.mulf %387, %395 : vector<8x128xf32>
    %404 = arith.addf %402, %403 : vector<8x128xf32>
    %405 = math.tanh %404 : vector<8x128xf32>
    %406 = arith.mulf %401, %405 : vector<8x128xf32>
    %c32_141 = arith.constant 32 : index
    %c0_142 = arith.constant 0 : index
    %407 = vector.load %arg12[%c32_141, %c0_142] : memref<64x128xf32, #tpu.memory_space<vmem>>, vector<8x128xf32>
    tpu.vector_store %arg12[%c32_141, %c0_142], %406 {strides = array<i32>} : memref<64x128xf32, #tpu.memory_space<vmem>>, vector<8x128xf32>,
    %c40_143 = arith.constant 40 : index
    %c0_144 = arith.constant 0 : index
    %408 = vector.load %arg11[%c40_143, %c0_144] : memref<64x512xf32, #tpu.memory_space<vmem>>, vector<8x512xf32>
    %c0_145 = arith.constant 0 : index
    %c0_146 = arith.constant 0 : index
    %409 = vector.load %arg6[%c0_145, %c0_146] : memref<128x512xf32, #tpu.memory_space<vmem>>, vector<128x512xf32>
    %cst_147 = arith.constant dense<0.000000e+00> : vector<8x512xf32>
    %410 = tpu.matmul %406, %409, %cst_147 {dimension_numbers = #tpu.dot_dimension_numbers<[1], [0], [0], [1], [0, 0, 1, 1], [], []>} : vector<8x128xf32>, vector<128x512xf32>, vector<8x512xf32> -> vector<8x512xf32>
    %411 = arith.addf %408, %410 : vector<8x512xf32>
    %412 = vector.extract_strided_slice %411 {offsets = [0, 0], sizes = [8, 128], strides = [1, 1]} : vector<8x512xf32> to vector<8x128xf32>
    %413 = arith.negf %412 : vector<8x128xf32>
    %414 = math.exp %413 : vector<8x128xf32>
    %cst_148 = arith.constant 1.000000e+00 : f32
    %415 = vector.broadcast %cst_148 : f32 to vector<8x128xf32>
    %416 = arith.addf %415, %414 : vector<8x128xf32>
    %417 = arith.divf %415, %416 : vector<8x128xf32>
    %418 = vector.extract_strided_slice %411 {offsets = [0, 128], sizes = [8, 128], strides = [1, 1]} : vector<8x512xf32> to vector<8x128xf32>
    %419 = arith.negf %418 : vector<8x128xf32>
    %420 = math.exp %419 : vector<8x128xf32>
    %cst_149 = arith.constant 1.000000e+00 : f32
    %421 = vector.broadcast %cst_149 : f32 to vector<8x128xf32>
    %422 = arith.addf %421, %420 : vector<8x128xf32>
    %423 = arith.divf %421, %422 : vector<8x128xf32>
    %424 = vector.extract_strided_slice %411 {offsets = [0, 256], sizes = [8, 128], strides = [1, 1]} : vector<8x512xf32> to vector<8x128xf32>
    %425 = math.tanh %424 : vector<8x128xf32>
    %426 = vector.extract_strided_slice %411 {offsets = [0, 384], sizes = [8, 128], strides = [1, 1]} : vector<8x512xf32> to vector<8x128xf32>
    %427 = arith.negf %426 : vector<8x128xf32>
    %428 = math.exp %427 : vector<8x128xf32>
    %cst_150 = arith.constant 1.000000e+00 : f32
    %429 = vector.broadcast %cst_150 : f32 to vector<8x128xf32>
    %430 = arith.addf %429, %428 : vector<8x128xf32>
    %431 = arith.divf %429, %430 : vector<8x128xf32>
    %432 = arith.mulf %423, %404 : vector<8x128xf32>
    %433 = arith.mulf %417, %425 : vector<8x128xf32>
    %434 = arith.addf %432, %433 : vector<8x128xf32>
    %435 = math.tanh %434 : vector<8x128xf32>
    %436 = arith.mulf %431, %435 : vector<8x128xf32>
    %c40_151 = arith.constant 40 : index
    %c0_152 = arith.constant 0 : index
    %437 = vector.load %arg12[%c40_151, %c0_152] : memref<64x128xf32, #tpu.memory_space<vmem>>, vector<8x128xf32>
    tpu.vector_store %arg12[%c40_151, %c0_152], %436 {strides = array<i32>} : memref<64x128xf32, #tpu.memory_space<vmem>>, vector<8x128xf32>,
    %c48_153 = arith.constant 48 : index
    %c0_154 = arith.constant 0 : index
    %438 = vector.load %arg11[%c48_153, %c0_154] : memref<64x512xf32, #tpu.memory_space<vmem>>, vector<8x512xf32>
    %c0_155 = arith.constant 0 : index
    %c0_156 = arith.constant 0 : index
    %439 = vector.load %arg6[%c0_155, %c0_156] : memref<128x512xf32, #tpu.memory_space<vmem>>, vector<128x512xf32>
    %cst_157 = arith.constant dense<0.000000e+00> : vector<8x512xf32>
    %440 = tpu.matmul %436, %439, %cst_157 {dimension_numbers = #tpu.dot_dimension_numbers<[1], [0], [0], [1], [0, 0, 1, 1], [], []>} : vector<8x128xf32>, vector<128x512xf32>, vector<8x512xf32> -> vector<8x512xf32>
    %441 = arith.addf %438, %440 : vector<8x512xf32>
    %442 = vector.extract_strided_slice %441 {offsets = [0, 0], sizes = [8, 128], strides = [1, 1]} : vector<8x512xf32> to vector<8x128xf32>
    %443 = arith.negf %442 : vector<8x128xf32>
    %444 = math.exp %443 : vector<8x128xf32>
    %cst_158 = arith.constant 1.000000e+00 : f32
    %445 = vector.broadcast %cst_158 : f32 to vector<8x128xf32>
    %446 = arith.addf %445, %444 : vector<8x128xf32>
    %447 = arith.divf %445, %446 : vector<8x128xf32>
    %448 = vector.extract_strided_slice %441 {offsets = [0, 128], sizes = [8, 128], strides = [1, 1]} : vector<8x512xf32> to vector<8x128xf32>
    %449 = arith.negf %448 : vector<8x128xf32>
    %450 = math.exp %449 : vector<8x128xf32>
    %cst_159 = arith.constant 1.000000e+00 : f32
    %451 = vector.broadcast %cst_159 : f32 to vector<8x128xf32>
    %452 = arith.addf %451, %450 : vector<8x128xf32>
    %453 = arith.divf %451, %452 : vector<8x128xf32>
    %454 = vector.extract_strided_slice %441 {offsets = [0, 256], sizes = [8, 128], strides = [1, 1]} : vector<8x512xf32> to vector<8x128xf32>
    %455 = math.tanh %454 : vector<8x128xf32>
    %456 = vector.extract_strided_slice %441 {offsets = [0, 384], sizes = [8, 128], strides = [1, 1]} : vector<8x512xf32> to vector<8x128xf32>
    %457 = arith.negf %456 : vector<8x128xf32>
    %458 = math.exp %457 : vector<8x128xf32>
    %cst_160 = arith.constant 1.000000e+00 : f32
    %459 = vector.broadcast %cst_160 : f32 to vector<8x128xf32>
    %460 = arith.addf %459, %458 : vector<8x128xf32>
    %461 = arith.divf %459, %460 : vector<8x128xf32>
    %462 = arith.mulf %453, %434 : vector<8x128xf32>
    %463 = arith.mulf %447, %455 : vector<8x128xf32>
    %464 = arith.addf %462, %463 : vector<8x128xf32>
    %465 = math.tanh %464 : vector<8x128xf32>
    %466 = arith.mulf %461, %465 : vector<8x128xf32>
    %c48_161 = arith.constant 48 : index
    %c0_162 = arith.constant 0 : index
    %467 = vector.load %arg12[%c48_161, %c0_162] : memref<64x128xf32, #tpu.memory_space<vmem>>, vector<8x128xf32>
    tpu.vector_store %arg12[%c48_161, %c0_162], %466 {strides = array<i32>} : memref<64x128xf32, #tpu.memory_space<vmem>>, vector<8x128xf32>,
    %c56_163 = arith.constant 56 : index
    %c0_164 = arith.constant 0 : index
    %468 = vector.load %arg11[%c56_163, %c0_164] : memref<64x512xf32, #tpu.memory_space<vmem>>, vector<8x512xf32>
    %c0_165 = arith.constant 0 : index
    %c0_166 = arith.constant 0 : index
    %469 = vector.load %arg6[%c0_165, %c0_166] : memref<128x512xf32, #tpu.memory_space<vmem>>, vector<128x512xf32>
    %cst_167 = arith.constant dense<0.000000e+00> : vector<8x512xf32>
    %470 = tpu.matmul %466, %469, %cst_167 {dimension_numbers = #tpu.dot_dimension_numbers<[1], [0], [0], [1], [0, 0, 1, 1], [], []>} : vector<8x128xf32>, vector<128x512xf32>, vector<8x512xf32> -> vector<8x512xf32>
    %471 = arith.addf %468, %470 : vector<8x512xf32>
    %472 = vector.extract_strided_slice %471 {offsets = [0, 0], sizes = [8, 128], strides = [1, 1]} : vector<8x512xf32> to vector<8x128xf32>
    %473 = arith.negf %472 : vector<8x128xf32>
    %474 = math.exp %473 : vector<8x128xf32>
    %cst_168 = arith.constant 1.000000e+00 : f32
    %475 = vector.broadcast %cst_168 : f32 to vector<8x128xf32>
    %476 = arith.addf %475, %474 : vector<8x128xf32>
    %477 = arith.divf %475, %476 : vector<8x128xf32>
    %478 = vector.extract_strided_slice %471 {offsets = [0, 128], sizes = [8, 128], strides = [1, 1]} : vector<8x512xf32> to vector<8x128xf32>
    %479 = arith.negf %478 : vector<8x128xf32>
    %480 = math.exp %479 : vector<8x128xf32>
    %cst_169 = arith.constant 1.000000e+00 : f32
    %481 = vector.broadcast %cst_169 : f32 to vector<8x128xf32>
    %482 = arith.addf %481, %480 : vector<8x128xf32>
    %483 = arith.divf %481, %482 : vector<8x128xf32>
    %484 = vector.extract_strided_slice %471 {offsets = [0, 256], sizes = [8, 128], strides = [1, 1]} : vector<8x512xf32> to vector<8x128xf32>
    %485 = math.tanh %484 : vector<8x128xf32>
    %486 = vector.extract_strided_slice %471 {offsets = [0, 384], sizes = [8, 128], strides = [1, 1]} : vector<8x512xf32> to vector<8x128xf32>
    %487 = arith.negf %486 : vector<8x128xf32>
    %488 = math.exp %487 : vector<8x128xf32>
    %cst_170 = arith.constant 1.000000e+00 : f32
    %489 = vector.broadcast %cst_170 : f32 to vector<8x128xf32>
    %490 = arith.addf %489, %488 : vector<8x128xf32>
    %491 = arith.divf %489, %490 : vector<8x128xf32>
    %492 = arith.mulf %483, %464 : vector<8x128xf32>
    %493 = arith.mulf %477, %485 : vector<8x128xf32>
    %494 = arith.addf %492, %493 : vector<8x128xf32>
    %495 = math.tanh %494 : vector<8x128xf32>
    %496 = arith.mulf %491, %495 : vector<8x128xf32>
    %c56_171 = arith.constant 56 : index
    %c0_172 = arith.constant 0 : index
    %497 = vector.load %arg12[%c56_171, %c0_172] : memref<64x128xf32, #tpu.memory_space<vmem>>, vector<8x128xf32>
    tpu.vector_store %arg12[%c56_171, %c0_172], %496 {strides = array<i32>} : memref<64x128xf32, #tpu.memory_space<vmem>>, vector<8x128xf32>,
    %c0_173 = arith.constant 0 : index
    %c0_174 = arith.constant 0 : index
    %498 = vector.load %arg12[%c0_173, %c0_174] : memref<64x128xf32, #tpu.memory_space<vmem>>, vector<64x128xf32>
    %c0_175 = arith.constant 0 : index
    %c0_176 = arith.constant 0 : index
    %499 = vector.load %arg8[%c0_175, %c0_176] : memref<128x128xf32, #tpu.memory_space<vmem>>, vector<128x128xf32>
    %cst_177 = arith.constant dense<0.000000e+00> : vector<64x128xf32>
    %500 = tpu.matmul %498, %499, %cst_177 {dimension_numbers = #tpu.dot_dimension_numbers<[1], [0], [0], [1], [0, 0, 1, 1], [], []>} : vector<64x128xf32>, vector<128x128xf32>, vector<64x128xf32> -> vector<64x128xf32>
    %c0_178 = arith.constant 0 : index
    %c0_179 = arith.constant 0 : index
    %501 = vector.load %arg9[%c0_178, %c0_179] : memref<1x128xf32, #tpu.memory_space<vmem>>, vector<1x128xf32>
    %502 = vector.broadcast %501 : vector<1x128xf32> to vector<64x128xf32>
    %503 = arith.addf %500, %502 : vector<64x128xf32>
    %c0_180 = arith.constant 0 : index
    %c0_181 = arith.constant 0 : index
    %504 = vector.load %arg10[%c0_180, %c0_181] : memref<64x128xf32, #tpu.memory_space<vmem>>, vector<64x128xf32>
    tpu.vector_store %arg10[%c0_180, %c0_181], %503 {strides = array<i32>} : memref<64x128xf32, #tpu.memory_space<vmem>>, vector<64x128xf32>,
    return
  }
  func.func @transform_0(%arg0: i32) -> (i32, i32) {
    %c0_i32 = arith.constant 0 : i32
    %c0_i32_0 = arith.constant 0 : i32
    %c0_i32_1 = arith.constant 0 : i32
    return %c0_i32, %c0_i32_0 : i32, i32
  }
  func.func @transform_1(%arg0: i32) -> (i32, i32) {
    %c0_i32 = arith.constant 0 : i32
    %c0_i32_0 = arith.constant 0 : i32
    %c0_i32_1 = arith.constant 0 : i32
    return %c0_i32, %c0_i32_0 : i32, i32
  }
  func.func @transform_2(%arg0: i32) -> (i32, i32) {
    %c0_i32 = arith.constant 0 : i32
    %c0_i32_0 = arith.constant 0 : i32
    %c0_i32_1 = arith.constant 0 : i32
    return %c0_i32, %c0_i32_0 : i32, i32
  }
  func.func @transform_3(%arg0: i32) -> (i32, i32) {
    %c0_i32 = arith.constant 0 : i32
    %c0_i32_0 = arith.constant 0 : i32
    %c0_i32_1 = arith.constant 0 : i32
    return %c0_i32, %c0_i32_0 : i32, i32
  }
  func.func @transform_4(%arg0: i32) -> (i32, i32) {
    %c0_i32 = arith.constant 0 : i32
    %c0_i32_0 = arith.constant 0 : i32
    %c0_i32_1 = arith.constant 0 : i32
    return %c0_i32, %c0_i32_0 : i32, i32
  }
  func.func @transform_5(%arg0: i32) -> (i32, i32) {
    %c0_i32 = arith.constant 0 : i32
    %c0_i32_0 = arith.constant 0 : i32
    %c0_i32_1 = arith.constant 0 : i32
    return %c0_i32, %c0_i32_0 : i32, i32
  }
  func.func @transform_6(%arg0: i32) -> (i32, i32) {
    %c0_i32 = arith.constant 0 : i32
    %c0_i32_0 = arith.constant 0 : i32
    %c0_i32_1 = arith.constant 0 : i32
    return %c0_i32, %c0_i32_0 : i32, i32
  }
  func.func @transform_7(%arg0: i32) -> (i32, i32) {
    %c0_i32 = arith.constant 0 : i32
    %c0_i32_0 = arith.constant 0 : i32
    %c0_i32_1 = arith.constant 0 : i32
    return %c0_i32, %c0_i32_0 : i32, i32
  }
  func.func @transform_8(%arg0: i32) -> (i32, i32) {
    %c0_i32 = arith.constant 0 : i32
    %c0_i32_0 = arith.constant 0 : i32
    %c0_i32_1 = arith.constant 0 : i32
    return %c0_i32, %c0_i32_0 : i32, i32
  }
  func.func @transform_9(%arg0: i32) -> (i32, i32) {
    %c0_i32 = arith.constant 0 : i32
    %c0_i32_0 = arith.constant 0 : i32
    %c0_i32_1 = arith.constant 0 : i32
    return %c0_i32, %c0_i32_0 : i32, i32
  }
}

</mosaic_0001>

<llo_original>
// kernel: tpu_custom_call.1
$region0: #{tpu_custom_call.1}
  #allocation0 [shape = 'u32[]', space=smem, size = 0x4, offset = 0x4, fixed_abs, tag = 'smem constant byte address 0x4 - core index']
  #allocation1 [shape = 'u32[72,128]{1,0:T(1,128)}', space=vmem, size = 0x9000, scoped, tag = 'internal scratch']
  #allocation2 [shape = 'f32[64,512]{1,0:T(8,128)}', space=vmem, size = 0x20000, scoped, tag = 'scratch operand']
  #allocation3 [shape = 'f32[64,128]{1,0:T(8,128)}', space=vmem, size = 0x8000, scoped, tag = 'scratch operand']
  %s0 = inlined_call_operand.vmem [shape: f32[64,32], index: 0, kind: input, shape index: {}]
  %s1 = inlined_call_operand.hbm [shape: f32[32,512], index: 1, kind: input, shape index: {}]
  %s2 = inlined_call_operand.hbm [shape: f32[128,512], index: 2, kind: input, shape index: {}]
  %s3 = inlined_call_operand.vmem [shape: f32[1,512], index: 3, kind: input, shape index: {}]
  %s4 = inlined_call_operand.hbm [shape: f32[128,512], index: 4, kind: input, shape index: {}]
  %s5 = inlined_call_operand.hbm [shape: f32[128,512], index: 5, kind: input, shape index: {}]
  %s6 = inlined_call_operand.vmem [shape: f32[1,512], index: 6, kind: input, shape index: {}]
  %s7 = inlined_call_operand.hbm [shape: f32[128,128], index: 7, kind: input, shape index: {}]
  %s8 = inlined_call_operand.vmem [shape: f32[1,128], index: 8, kind: input, shape index: {}]
  %s9 = inlined_call_operand.hbm [shape: f32[64,128], index: 9, kind: output, shape index: {}]
  %s10 = sld [smem:[#allocation0]]
  $region66: #{tpu_custom_call.1} parent=0
    _
  %s12 = ssub.s32 1, %s10
  %s13 = scalar_select 0, %s12, %s10
  $region1: #{tpu_custom_call.1} parent=0
    #allocation4 [shape = 'u8[65536]{0}', space=vmem, size = 0x10000, scoped, tag = 'input window, operand 1, single buffered']
    #allocation5 [shape = 's32[1]{0}', space=sflag, size = 0x4, scoped, tag = 'scoped memory for tpu_custom_call.1']
    #allocation6 [shape = 's32[1]{0}', space=sflag, size = 0x4, scoped, tag = 'scoped memory for tpu_custom_call.1']
    #allocation7 [shape = 'u8[262144]{0}', space=vmem, size = 0x40000, scoped, tag = 'input window, operand 2, single buffered']
    #allocation8 [shape = 's32[1]{0}', space=sflag, size = 0x4, scoped, tag = 'scoped memory for tpu_custom_call.1']
    #allocation9 [shape = 'u8[262144]{0}', space=vmem, size = 0x40000, scoped, tag = 'input window, operand 4, single buffered']
    #allocation10 [shape = 'u8[262144]{0}', space=vmem, size = 0x40000, scoped, tag = 'input window, operand 5, single buffered']
    #allocation11 [shape = 's32[1]{0}', space=sflag, size = 0x4, scoped, tag = 'scoped memory for tpu_custom_call.1']
    #allocation12 [shape = 'u8[65536]{0}', space=vmem, size = 0x10000, scoped, tag = 'input window, operand 7, single buffered']
    #allocation13 [shape = 'u8[32768]{0}', space=vmem, size = 0x8000, scoped, tag = 'output window, operand 0, single buffered']
    %14 = vsyncpa [#allocation5], 0
    %15 = vsyncpa [#allocation8], 0
    %16 = vsyncpa [#allocation11], 0
    %17 = vsyncpa [#allocation6], 0
    // Predicated region
    $region2: #{tpu_custom_call.1} parent=1 // pred_check
      _
    $region3: #{tpu_custom_call.1} parent=1 // pred_check_branch
      %19 = sbr.rel (0) target = $region5
    $region4: #{tpu_custom_call.1} parent=1 // pred_region
      _
    $region5: #{tpu_custom_call.1} parent=1 // pred_fallthru
      _
    // Predicated region
    $region6: #{tpu_custom_call.1} parent=1 // pred_check
      _
    $region7: #{tpu_custom_call.1} parent=1 // pred_check_branch
      %21 = sbr.rel (0) target = $region9
    $region8: #{tpu_custom_call.1} parent=1 // pred_region
      %23 = vsyncadd [#allocation5], 0
      %s24 = sshll.u32 %s1, 4
      %s25 = int_to_ptr.hbm [resolvable:$true] %s24
      %s26 = sshll.u32 [#allocation4], 4
      %s27 = int_to_ptr.vmem [resolvable:$true] %s26
      %32 = dma.hbm_to_vmem [thread:$0]  %s25, 2048, %s27, [#allocation5], 512, 512, 32
    $region9: #{tpu_custom_call.1} parent=1 // pred_fallthru
      _
    // Predicated region
    $region10: #{tpu_custom_call.1} parent=1 // pred_check
      _
    $region11: #{tpu_custom_call.1} parent=1 // pred_check_branch
      %34 = sbr.rel (0) target = $region13
    $region12: #{tpu_custom_call.1} parent=1 // pred_region
      %36 = vsyncadd [#allocation8], 0
      %s37 = sshll.u32 %s2, 4
      %s38 = int_to_ptr.hbm [resolvable:$true] %s37
      %s39 = sshll.u32 [#allocation7], 4
      %s40 = int_to_ptr.vmem [resolvable:$true] %s39
      %45 = dma.hbm_to_vmem [thread:$0]  %s38, 8192, %s40, [#allocation8], 512, 512, 32
    $region13: #{tpu_custom_call.1} parent=1 // pred_fallthru
      _
    // Predicated region
    $region14: #{tpu_custom_call.1} parent=1 // pred_check
      _
    $region15: #{tpu_custom_call.1} parent=1 // pred_check_branch
      %47 = sbr.rel (0) target = $region17
    $region16: #{tpu_custom_call.1} parent=1 // pred_region
      _
    $region17: #{tpu_custom_call.1} parent=1 // pred_fallthru
      _
    // Predicated region
    $region18: #{tpu_custom_call.1} parent=1 // pred_check
      _
    $region19: #{tpu_custom_call.1} parent=1 // pred_check_branch
      %49 = sbr.rel (0) target = $region21
    $region20: #{tpu_custom_call.1} parent=1 // pred_region
      %51 = vsyncadd [#allocation8], 0
      %s52 = sshll.u32 %s4, 4
      %s53 = int_to_ptr.hbm [resolvable:$true] %s52
      %s54 = sshll.u32 [#allocation9], 4
      %s55 = int_to_ptr.vmem [resolvable:$true] %s54
      %60 = dma.hbm_to_vmem [thread:$0]  %s53, 8192, %s55, [#allocation8], 512, 512, 32
    $region21: #{tpu_custom_call.1} parent=1 // pred_fallthru
      _
    // Predicated region
    $region22: #{tpu_custom_call.1} parent=1 // pred_check
      _
    $region23: #{tpu_custom_call.1} parent=1 // pred_check_branch
      %62 = sbr.rel (0) target = $region25
    $region24: #{tpu_custom_call.1} parent=1 // pred_region
      %64 = vsyncadd [#allocation11], 0
      %s65 = sshll.u32 %s5, 4
      %s66 = int_to_ptr.hbm [resolvable:$true] %s65
      %s67 = sshll.u32 [#allocation10], 4
      %s68 = int_to_ptr.vmem [resolvable:$true] %s67
      %73 = dma.hbm_to_vmem [thread:$0]  %s66, 8192, %s68, [#allocation11], 512, 512, 32
    $region25: #{tpu_custom_call.1} parent=1 // pred_fallthru
      _
    // Predicated region
    $region26: #{tpu_custom_call.1} parent=1 // pred_check
      _
    $region27: #{tpu_custom_call.1} parent=1 // pred_check_branch
      %75 = sbr.rel (0) target = $region29
    $region28: #{tpu_custom_call.1} parent=1 // pred_region
      _
    $region29: #{tpu_custom_call.1} parent=1 // pred_fallthru
      _
    // Predicated region
    $region30: #{tpu_custom_call.1} parent=1 // pred_check
      _
    $region31: #{tpu_custom_call.1} parent=1 // pred_check_branch
      %77 = sbr.rel (0) target = $region33
    $region32: #{tpu_custom_call.1} parent=1 // pred_region
      %79 = vsyncadd [#allocation11], 0
      %s80 = sshll.u32 %s7, 4
      %s81 = int_to_ptr.hbm [resolvable:$true] %s80
      %s82 = sshll.u32 [#allocation12], 4
      %s83 = int_to_ptr.vmem [resolvable:$true] %s82
      %88 = dma.hbm_to_vmem [thread:$0]  %s81, 2048, %s83, [#allocation11], 128, 128, 8
    $region33: #{tpu_custom_call.1} parent=1 // pred_fallthru
      _
    // Predicated region
    $region34: #{tpu_custom_call.1} parent=1 // pred_check
      _
    $region35: #{tpu_custom_call.1} parent=1 // pred_check_branch
      %90 = sbr.rel (0) target = $region37
    $region36: #{tpu_custom_call.1} parent=1 // pred_region
      _
    $region37: #{tpu_custom_call.1} parent=1 // pred_fallthru
      _
    // Predicated region
    $region38: #{tpu_custom_call.1} parent=1 // pred_check
      _
    $region39: #{tpu_custom_call.1} parent=1 // pred_check_branch
      %92 = sbr.rel (0) target = $region41
    $region40: #{tpu_custom_call.1} parent=1 // pred_region
      %94 = dma.done [#allocation5], 2048
    $region41: #{tpu_custom_call.1} parent=1 // pred_fallthru
      _
    // Predicated region
    $region42: #{tpu_custom_call.1} parent=1 // pred_check
      _
    $region43: #{tpu_custom_call.1} parent=1 // pred_check_branch
      %96 = sbr.rel (0) target = $region45
    $region44: #{tpu_custom_call.1} parent=1 // pred_region
      %98 = dma.done [#allocation8], 8192
    $region45: #{tpu_custom_call.1} parent=1 // pred_fallthru
      _
    // Predicated region
    $region46: #{tpu_custom_call.1} parent=1 // pred_check
      _
    $region47: #{tpu_custom_call.1} parent=1 // pred_check_branch
      %100 = sbr.rel (0) target = $region49
    $region48: #{tpu_custom_call.1} parent=1 // pred_region
      %102 = dma.done [#allocation8], 8192
    $region49: #{tpu_custom_call.1} parent=1 // pred_fallthru
      _
    // Predicated region
    $region50: #{tpu_custom_call.1} parent=1 // pred_check
      _
    $region51: #{tpu_custom_call.1} parent=1 // pred_check_branch
      %104 = sbr.rel (0) target = $region53
    $region52: #{tpu_custom_call.1} parent=1 // pred_region
      %106 = dma.done [#allocation11], 8192
    $region53: #{tpu_custom_call.1} parent=1 // pred_fallthru
      _
    // Predicated region
    $region54: #{tpu_custom_call.1} parent=1 // pred_check
      _
    $region55: #{tpu_custom_call.1} parent=1 // pred_check_branch
      %108 = sbr.rel (0) target = $region57
    $region56: #{tpu_custom_call.1} parent=1 // pred_region
      %110 = dma.done [#allocation11], 2048
    $region57: #{tpu_custom_call.1} parent=1 // pred_fallthru
      _
    %v111 = vld [vmem:[%s0] sm:$0xff]
    %v112 = vld [vmem:[%s0 + $0x8] sm:$0xff]
    %v113 = vld [vmem:[%s0 + $0x10] sm:$0xff]
    %v114 = vld [vmem:[%s0 + $0x18] sm:$0xff]
    %v115 = vld [vmem:[%s0 + $0x20] sm:$0xff]
    %v116 = vld [vmem:[%s0 + $0x28] sm:$0xff]
    %v117 = vld [vmem:[%s0 + $0x30] sm:$0xff]
    %v118 = vld [vmem:[%s0 + $0x38] sm:$0xff]
    %v119 = vld [vmem:[#allocation4] sm:$0xff]
    %v120 = vld [vmem:[#allocation4 + $0x8] sm:$0xff]
    %v121 = vld [vmem:[#allocation4 + $0x10] sm:$0xff]
    %v122 = vld [vmem:[#allocation4 + $0x18] sm:$0xff]
    %v123 = vld [vmem:[#allocation4 + $0x20] sm:$0xff]
    %v124 = vld [vmem:[#allocation4 + $0x28] sm:$0xff]
    %v125 = vld [vmem:[#allocation4 + $0x30] sm:$0xff]
    %v126 = vld [vmem:[#allocation4 + $0x38] sm:$0xff]
    %v127 = vld [vmem:[#allocation4 + $0x40] sm:$0xff]
    %v128 = vld [vmem:[#allocation4 + $0x48] sm:$0xff]
    %v129 = vld [vmem:[#allocation4 + $0x50] sm:$0xff]
    %v130 = vld [vmem:[#allocation4 + $0x58] sm:$0xff]
    %v131 = vld [vmem:[#allocation4 + $0x60] sm:$0xff]
    %v132 = vld [vmem:[#allocation4 + $0x68] sm:$0xff]
    %v133 = vld [vmem:[#allocation4 + $0x70] sm:$0xff]
    %v134 = vld [vmem:[#allocation4 + $0x78] sm:$0xff]
    %v135 = vld [vmem:[%s3] sm:$0xf]
    %v137 = vperm.slane %v135, 0
    %v138 = vperm.slane %v135, 1
    %v139 = vperm.slane %v135, 2
    %v140 = vperm.slane %v135, 3
    %vm145 = vcmask 261120
    %v147 = vsel %vm145, %v111, 0
    %v150 = vsel %vm145, %v112, 0
    %v153 = vsel %vm145, %v113, 0
    %v156 = vsel %vm145, %v114, 0
    %v159 = vsel %vm145, %v115, 0
    %v162 = vsel %vm145, %v116, 0
    %v165 = vsel %vm145, %v117, 0
    %v168 = vsel %vm145, %v118, 0
    %170 = vmatpush.msra.mxu0 0.0
    %171 = vmatpush.msra.mxu0 0.0
    %172 = vmatpush.msra.mxu0 0.0
    %173 = vmatpush.msra.mxu0 0.0
    %174 = vmatpush.msra.mxu0 0.0
    %175 = vmatpush.msra.mxu0 0.0
    %176 = vmatpush.msra.mxu0 0.0
    %177 = vmatpush.msra.mxu0 0.0
    %178 = vmatpush.msra.mxu0 0.0
    %179 = vmatpush.msra.mxu0 0.0
    %180 = vmatpush.msra.mxu0 0.0
    %181 = vmatpush.msra.mxu0 0.0
    %182 = vmatpush.msra.mxu0 %v131
    %183 = vmatpush.msra.mxu0 %v127
    %184 = vmatpush.msra.mxu0 %v123
    %185 = vmatpush.msra.mxu0 %v119
    %186 = vmatmul.f32.gmra.mxu0 %v147
    %v187 = vpop.f32.mrf.mxu0
    %v188 = vadd.f32 %v137, %v187
    %189 = vmatmul.f32.gmra.mxu0 %v150
    %v190 = vpop.f32.mrf.mxu0
    %v191 = vadd.f32 %v137, %v190
    %192 = vmatmul.f32.gmra.mxu0 %v153
    %v193 = vpop.f32.mrf.mxu0
    %v194 = vadd.f32 %v137, %v193
    %195 = vmatmul.f32.gmra.mxu0 %v156
    %v196 = vpop.f32.mrf.mxu0
    %v197 = vadd.f32 %v137, %v196
    %198 = vmatmul.f32.gmra.mxu0 %v159
    %v199 = vpop.f32.mrf.mxu0
    %v200 = vadd.f32 %v137, %v199
    %201 = vmatmul.f32.gmra.mxu0 %v162
    %v202 = vpop.f32.mrf.mxu0
    %v203 = vadd.f32 %v137, %v202
    %204 = vmatmul.f32.gmra.mxu0 %v165
    %v205 = vpop.f32.mrf.mxu0
    %v206 = vadd.f32 %v137, %v205
    %207 = vmatmul.f32.gmra.mxu0 %v168
    %v208 = vpop.f32.mrf.mxu0
    %v209 = vadd.f32 %v137, %v208
    %210 = vdwg.mxu0
    %211 = vmatpush.msra.mxu0 0.0
    %212 = vmatpush.msra.mxu0 0.0
    %213 = vmatpush.msra.mxu0 0.0
    %214 = vmatpush.msra.mxu0 0.0
    %215 = vmatpush.msra.mxu0 0.0
    %216 = vmatpush.msra.mxu0 0.0
    %217 = vmatpush.msra.mxu0 0.0
    %218 = vmatpush.msra.mxu0 0.0
    %219 = vmatpush.msra.mxu0 0.0
    %220 = vmatpush.msra.mxu0 0.0
    %221 = vmatpush.msra.mxu0 0.0
    %222 = vmatpush.msra.mxu0 0.0
    %223 = vmatpush.msra.mxu0 %v132
    %224 = vmatpush.msra.mxu0 %v128
    %225 = vmatpush.msra.mxu0 %v124
    %226 = vmatpush.msra.mxu0 %v120
    %227 = vmatmul.f32.gmra.mxu0 %v147
    %v228 = vpop.f32.mrf.mxu0
    %v229 = vadd.f32 %v138, %v228
    %230 = vmatmul.f32.gmra.mxu0 %v150
    %v231 = vpop.f32.mrf.mxu0
    %v232 = vadd.f32 %v138, %v231
    %233 = vmatmul.f32.gmra.mxu0 %v153
    %v234 = vpop.f32.mrf.mxu0
    %v235 = vadd.f32 %v138, %v234
    %236 = vmatmul.f32.gmra.mxu0 %v156
    %v237 = vpop.f32.mrf.mxu0
    %v238 = vadd.f32 %v138, %v237
    %239 = vmatmul.f32.gmra.mxu0 %v159
    %v240 = vpop.f32.mrf.mxu0
    %v241 = vadd.f32 %v138, %v240
    %242 = vmatmul.f32.gmra.mxu0 %v162
    %v243 = vpop.f32.mrf.mxu0
    %v244 = vadd.f32 %v138, %v243
    %245 = vmatmul.f32.gmra.mxu0 %v165
    %v246 = vpop.f32.mrf.mxu0
    %v247 = vadd.f32 %v138, %v246
    %248 = vmatmul.f32.gmra.mxu0 %v168
    %v249 = vpop.f32.mrf.mxu0
    %v250 = vadd.f32 %v138, %v249
    %251 = vdwg.mxu0
    %252 = vmatpush.msra.mxu0 0.0
    %253 = vmatpush.msra.mxu0 0.0
    %254 = vmatpush.msra.mxu0 0.0
    %255 = vmatpush.msra.mxu0 0.0
    %256 = vmatpush.msra.mxu0 0.0
    %257 = vmatpush.msra.mxu0 0.0
    %258 = vmatpush.msra.mxu0 0.0
    %259 = vmatpush.msra.mxu0 0.0
    %260 = vmatpush.msra.mxu0 0.0
    %261 = vmatpush.msra.mxu0 0.0
    %262 = vmatpush.msra.mxu0 0.0
    %263 = vmatpush.msra.mxu0 0.0
    %264 = vmatpush.msra.mxu0 %v133
    %265 = vmatpush.msra.mxu0 %v129
    %266 = vmatpush.msra.mxu0 %v125
    %267 = vmatpush.msra.mxu0 %v121
    %268 = vmatmul.f32.gmra.mxu0 %v147
    %v269 = vpop.f32.mrf.mxu0
    %v270 = vadd.f32 %v139, %v269
    %271 = vmatmul.f32.gmra.mxu0 %v150
    %v272 = vpop.f32.mrf.mxu0
    %v273 = vadd.f32 %v139, %v272
    %274 = vmatmul.f32.gmra.mxu0 %v153
    %v275 = vpop.f32.mrf.mxu0
    %v276 = vadd.f32 %v139, %v275
    %277 = vmatmul.f32.gmra.mxu0 %v156
    %v278 = vpop.f32.mrf.mxu0
    %v279 = vadd.f32 %v139, %v278
    %280 = vmatmul.f32.gmra.mxu0 %v159
    %v281 = vpop.f32.mrf.mxu0
    %v282 = vadd.f32 %v139, %v281
    %283 = vmatmul.f32.gmra.mxu0 %v162
    %v284 = vpop.f32.mrf.mxu0
    %v285 = vadd.f32 %v139, %v284
    %286 = vmatmul.f32.gmra.mxu0 %v165
    %v287 = vpop.f32.mrf.mxu0
    %v288 = vadd.f32 %v139, %v287
    %289 = vmatmul.f32.gmra.mxu0 %v168
    %v290 = vpop.f32.mrf.mxu0
    %v291 = vadd.f32 %v139, %v290
    %292 = vdwg.mxu0
    %293 = vmatpush.msra.mxu0 0.0
    %294 = vmatpush.msra.mxu0 0.0
    %295 = vmatpush.msra.mxu0 0.0
    %296 = vmatpush.msra.mxu0 0.0
    %297 = vmatpush.msra.mxu0 0.0
    %298 = vmatpush.msra.mxu0 0.0
    %299 = vmatpush.msra.mxu0 0.0
    %300 = vmatpush.msra.mxu0 0.0
    %301 = vmatpush.msra.mxu0 0.0
    %302 = vmatpush.msra.mxu0 0.0
    %303 = vmatpush.msra.mxu0 0.0
    %304 = vmatpush.msra.mxu0 0.0
    %305 = vmatpush.msra.mxu0 %v134
    %306 = vmatpush.msra.mxu0 %v130
    %307 = vmatpush.msra.mxu0 %v126
    %308 = vmatpush.msra.mxu0 %v122
    %309 = vmatmul.f32.gmra.mxu0 %v147
    %v310 = vpop.f32.mrf.mxu0
    %v311 = vadd.f32 %v140, %v310
    %312 = vmatmul.f32.gmra.mxu0 %v150
    %v313 = vpop.f32.mrf.mxu0
    %v314 = vadd.f32 %v140, %v313
    %315 = vmatmul.f32.gmra.mxu0 %v153
    %v316 = vpop.f32.mrf.mxu0
    %v317 = vadd.f32 %v140, %v316
    %318 = vmatmul.f32.gmra.mxu0 %v156
    %v319 = vpop.f32.mrf.mxu0
    %v320 = vadd.f32 %v140, %v319
    %321 = vmatmul.f32.gmra.mxu0 %v159
    %v322 = vpop.f32.mrf.mxu0
    %v323 = vadd.f32 %v140, %v322
    %324 = vmatmul.f32.gmra.mxu0 %v162
    %v325 = vpop.f32.mrf.mxu0
    %v326 = vadd.f32 %v140, %v325
    %327 = vmatmul.f32.gmra.mxu0 %v165
    %v328 = vpop.f32.mrf.mxu0
    %v329 = vadd.f32 %v140, %v328
    %330 = vmatmul.f32.gmra.mxu0 %v168
    %v331 = vpop.f32.mrf.mxu0
    %v332 = vadd.f32 %v140, %v331
    %333 = vdwg.mxu0
    %334 = vst [vmem:[#allocation2] sm:$0xff] %v188
    %335 = vst [vmem:[#allocation2 + $0x8] sm:$0xff] %v229
    %336 = vst [vmem:[#allocation2 + $0x10] sm:$0xff] %v270
    %337 = vst [vmem:[#allocation2 + $0x18] sm:$0xff] %v311
    %338 = vst [vmem:[#allocation2 + $0x20] sm:$0xff] %v191
    %339 = vst [vmem:[#allocation2 + $0x28] sm:$0xff] %v232
    %340 = vst [vmem:[#allocation2 + $0x30] sm:$0xff] %v273
    %341 = vst [vmem:[#allocation2 + $0x38] sm:$0xff] %v314
    %342 = vst [vmem:[#allocation2 + $0x40] sm:$0xff] %v194
    %343 = vst [vmem:[#allocation2 + $0x48] sm:$0xff] %v235
    %344 = vst [vmem:[#allocation2 + $0x50] sm:$0xff] %v276
    %345 = vst [vmem:[#allocation2 + $0x58] sm:$0xff] %v317
    %346 = vst [vmem:[#allocation2 + $0x60] sm:$0xff] %v197
    %347 = vst [vmem:[#allocation2 + $0x68] sm:$0xff] %v238
    %348 = vst [vmem:[#allocation2 + $0x70] sm:$0xff] %v279
    %349 = vst [vmem:[#allocation2 + $0x78] sm:$0xff] %v320
    %350 = vst [vmem:[#allocation2 + $0x80] sm:$0xff] %v200
    %351 = vst [vmem:[#allocation2 + $0x88] sm:$0xff] %v241
    %352 = vst [vmem:[#allocation2 + $0x90] sm:$0xff] %v282
    %353 = vst [vmem:[#allocation2 + $0x98] sm:$0xff] %v323
    %354 = vst [vmem:[#allocation2 + $0xa0] sm:$0xff] %v203
    %355 = vst [vmem:[#allocation2 + $0xa8] sm:$0xff] %v244
    %356 = vst [vmem:[#allocation2 + $0xb0] sm:$0xff] %v285
    %357 = vst [vmem:[#allocation2 + $0xb8] sm:$0xff] %v326
    %358 = vst [vmem:[#allocation2 + $0xc0] sm:$0xff] %v206
    %359 = vst [vmem:[#allocation2 + $0xc8] sm:$0xff] %v247
    %360 = vst [vmem:[#allocation2 + $0xd0] sm:$0xff] %v288
    %361 = vst [vmem:[#allocation2 + $0xd8] sm:$0xff] %v329
    %362 = vst [vmem:[#allocation2 + $0xe0] sm:$0xff] %v209
    %363 = vst [vmem:[#allocation2 + $0xe8] sm:$0xff] %v250
    %364 = vst [vmem:[#allocation2 + $0xf0] sm:$0xff] %v291
    %365 = vst [vmem:[#allocation2 + $0xf8] sm:$0xff] %v332
    %v366 = vld [vmem:[#allocation2] sm:$0xff]
    %v367 = vld [vmem:[#allocation2 + $0x8] sm:$0xff]
    %v368 = vld [vmem:[#allocation2 + $0x10] sm:$0xff]
    %v369 = vld [vmem:[#allocation2 + $0x18] sm:$0xff]
    %v370 = vld [vmem:[#allocation7] sm:$0xff]
    %v371 = vld [vmem:[#allocation7 + $0x8] sm:$0xff]
    %v372 = vld [vmem:[#allocation7 + $0x10] sm:$0xff]
    %v373 = vld [vmem:[#allocation7 + $0x18] sm:$0xff]
    %v374 = vld [vmem:[#allocation7 + $0x20] sm:$0xff]
    %v375 = vld [vmem:[#allocation7 + $0x28] sm:$0xff]
    %v376 = vld [vmem:[#allocation7 + $0x30] sm:$0xff]
    %v377 = vld [vmem:[#allocation7 + $0x38] sm:$0xff]
    %v378 = vld [vmem:[#allocation7 + $0x40] sm:$0xff]
    %v379 = vld [vmem:[#allocation7 + $0x48] sm:$0xff]
    %v380 = vld [vmem:[#allocation7 + $0x50] sm:$0xff]
    %v381 = vld [vmem:[#allocation7 + $0x58] sm:$0xff]
    %v382 = vld [vmem:[#allocation7 + $0x60] sm:$0xff]
    %v383 = vld [vmem:[#allocation7 + $0x68] sm:$0xff]
    %v384 = vld [vmem:[#allocation7 + $0x70] sm:$0xff]
    %v385 = vld [vmem:[#allocation7 + $0x78] sm:$0xff]
    %v386 = vld [vmem:[#allocation7 + $0x80] sm:$0xff]
    %v387 = vld [vmem:[#allocation7 + $0x88] sm:$0xff]
    %v388 = vld [vmem:[#allocation7 + $0x90] sm:$0xff]
    %v389 = vld [vmem:[#allocation7 + $0x98] sm:$0xff]
    %v390 = vld [vmem:[#allocation7 + $0xa0] sm:$0xff]
    %v391 = vld [vmem:[#allocation7 + $0xa8] sm:$0xff]
    %v392 = vld [vmem:[#allocation7 + $0xb0] sm:$0xff]
    %v393 = vld [vmem:[#allocation7 + $0xb8] sm:$0xff]
    %v394 = vld [vmem:[#allocation7 + $0xc0] sm:$0xff]
    %v395 = vld [vmem:[#allocation7 + $0xc8] sm:$0xff]
    %v396 = vld [vmem:[#allocation7 + $0xd0] sm:$0xff]
    %v397 = vld [vmem:[#allocation7 + $0xd8] sm:$0xff]
    %v398 = vld [vmem:[#allocation7 + $0xe0] sm:$0xff]
    %v399 = vld [vmem:[#allocation7 + $0xe8] sm:$0xff]
    %v400 = vld [vmem:[#allocation7 + $0xf0] sm:$0xff]
    %v401 = vld [vmem:[#allocation7 + $0xf8] sm:$0xff]
    %v402 = vld [vmem:[#allocation7 + $0x100] sm:$0xff]
    %v403 = vld [vmem:[#allocation7 + $0x108] sm:$0xff]
    %v404 = vld [vmem:[#allocation7 + $0x110] sm:$0xff]
    %v405 = vld [vmem:[#allocation7 + $0x118] sm:$0xff]
    %v406 = vld [vmem:[#allocation7 + $0x120] sm:$0xff]
    %v407 = vld [vmem:[#allocation7 + $0x128] sm:$0xff]
    %v408 = vld [vmem:[#allocation7 + $0x130] sm:$0xff]
    %v409 = vld [vmem:[#allocation7 + $0x138] sm:$0xff]
    %v410 = vld [vmem:[#allocation7 + $0x140] sm:$0xff]
    %v411 = vld [vmem:[#allocation7 + $0x148] sm:$0xff]
    %v412 = vld [vmem:[#allocation7 + $0x150] sm:$0xff]
    %v413 = vld [vmem:[#allocation7 + $0x158] sm:$0xff]
    %v414 = vld [vmem:[#allocation7 + $0x160] sm:$0xff]
    %v415 = vld [vmem:[#allocation7 + $0x168] sm:$0xff]
    %v416 = vld [vmem:[#allocation7 + $0x170] sm:$0xff]
    %v417 = vld [vmem:[#allocation7 + $0x178] sm:$0xff]
    %v418 = vld [vmem:[#allocation7 + $0x180] sm:$0xff]
    %v419 = vld [vmem:[#allocation7 + $0x188] sm:$0xff]
    %v420 = vld [vmem:[#allocation7 + $0x190] sm:$0xff]
    %v421 = vld [vmem:[#allocation7 + $0x198] sm:$0xff]
    %v422 = vld [vmem:[#allocation7 + $0x1a0] sm:$0xff]
    %v423 = vld [vmem:[#allocation7 + $0x1a8] sm:$0xff]
    %v424 = vld [vmem:[#allocation7 + $0x1b0] sm:$0xff]
    %v425 = vld [vmem:[#allocation7 + $0x1b8] sm:$0xff]
    %v426 = vld [vmem:[#allocation7 + $0x1c0] sm:$0xff]
    %v427 = vld [vmem:[#allocation7 + $0x1c8] sm:$0xff]
    %v428 = vld [vmem:[#allocation7 + $0x1d0] sm:$0xff]
    %v429 = vld [vmem:[#allocation7 + $0x1d8] sm:$0xff]
    %v430 = vld [vmem:[#allocation7 + $0x1e0] sm:$0xff]
    %v431 = vld [vmem:[#allocation7 + $0x1e8] sm:$0xff]
    %v432 = vld [vmem:[#allocation7 + $0x1f0] sm:$0xff]
    %v433 = vld [vmem:[#allocation7 + $0x1f8] sm:$0xff]
    %434 = vmatpush.msra.mxu0 %v430
    %435 = vmatpush.msra.mxu0 %v426
    %436 = vmatpush.msra.mxu0 %v422
    %437 = vmatpush.msra.mxu0 %v418
    %438 = vmatpush.msra.mxu0 %v414
    %439 = vmatpush.msra.mxu0 %v410
    %440 = vmatpush.msra.mxu0 %v406
    %441 = vmatpush.msra.mxu0 %v402
    %442 = vmatpush.msra.mxu0 %v398
    %443 = vmatpush.msra.mxu0 %v394
    %444 = vmatpush.msra.mxu0 %v390
    %445 = vmatpush.msra.mxu0 %v386
    %446 = vmatpush.msra.mxu0 %v382
    %447 = vmatpush.msra.mxu0 %v378
    %448 = vmatpush.msra.mxu0 %v374
    %449 = vmatpush.msra.mxu0 %v370
    %450 = vmatmul.f32.gmra.mxu0 0.0
    %v451 = vpop.f32.mrf.mxu0
    %v452 = vadd.f32 0.0, %v451
    %453 = vdwg.mxu0
    %454 = vmatpush.msra.mxu0 %v431
    %455 = vmatpush.msra.mxu0 %v427
    %456 = vmatpush.msra.mxu0 %v423
    %457 = vmatpush.msra.mxu0 %v419
    %458 = vmatpush.msra.mxu0 %v415
    %459 = vmatpush.msra.mxu0 %v411
    %460 = vmatpush.msra.mxu0 %v407
    %461 = vmatpush.msra.mxu0 %v403
    %462 = vmatpush.msra.mxu0 %v399
    %463 = vmatpush.msra.mxu0 %v395
    %464 = vmatpush.msra.mxu0 %v391
    %465 = vmatpush.msra.mxu0 %v387
    %466 = vmatpush.msra.mxu0 %v383
    %467 = vmatpush.msra.mxu0 %v379
    %468 = vmatpush.msra.mxu0 %v375
    %469 = vmatpush.msra.mxu0 %v371
    %470 = vmatmul.f32.gmra.mxu0 0.0
    %v471 = vpop.f32.mrf.mxu0
    %v472 = vadd.f32 0.0, %v471
    %473 = vdwg.mxu0
    %474 = vmatpush.msra.mxu0 %v432
    %475 = vmatpush.msra.mxu0 %v428
    %476 = vmatpush.msra.mxu0 %v424
    %477 = vmatpush.msra.mxu0 %v420
    %478 = vmatpush.msra.mxu0 %v416
    %479 = vmatpush.msra.mxu0 %v412
    %480 = vmatpush.msra.mxu0 %v408
    %481 = vmatpush.msra.mxu0 %v404
    %482 = vmatpush.msra.mxu0 %v400
    %483 = vmatpush.msra.mxu0 %v396
    %484 = vmatpush.msra.mxu0 %v392
    %485 = vmatpush.msra.mxu0 %v388
    %486 = vmatpush.msra.mxu0 %v384
    %487 = vmatpush.msra.mxu0 %v380
    %488 = vmatpush.msra.mxu0 %v376
    %489 = vmatpush.msra.mxu0 %v372
    %490 = vmatmul.f32.gmra.mxu0 0.0
    %v491 = vpop.f32.mrf.mxu0
    %v492 = vadd.f32 0.0, %v491
    %493 = vdwg.mxu0
    %494 = vmatpush.msra.mxu0 %v433
    %495 = vmatpush.msra.mxu0 %v429
    %496 = vmatpush.msra.mxu0 %v425
    %497 = vmatpush.msra.mxu0 %v421
    %498 = vmatpush.msra.mxu0 %v417
    %499 = vmatpush.msra.mxu0 %v413
    %500 = vmatpush.msra.mxu0 %v409
    %501 = vmatpush.msra.mxu0 %v405
    %502 = vmatpush.msra.mxu0 %v401
    %503 = vmatpush.msra.mxu0 %v397
    %504 = vmatpush.msra.mxu0 %v393
    %505 = vmatpush.msra.mxu0 %v389
    %506 = vmatpush.msra.mxu0 %v385
    %507 = vmatpush.msra.mxu0 %v381
    %508 = vmatpush.msra.mxu0 %v377
    %509 = vmatpush.msra.mxu0 %v373
    %510 = vmatmul.f32.gmra.mxu0 0.0
    %v511 = vpop.f32.mrf.mxu0
    %v512 = vadd.f32 0.0, %v511
    %513 = vdwg.mxu0
    %v514 = vadd.f32 %v366, %v452
    %v515 = vadd.f32 %v367, %v472
    %v516 = vadd.f32 %v368, %v492
    %v517 = vadd.f32 %v369, %v512
    %v518 = vxor.u32 %v514, 2147483648
    %v519 = vmul.f32 %v518, 1.442695
    %v520 = vpow.pop %v519
    %v521 = vadd.f32 %v520, 1.0
    %v522 = vrcp.pop %v521
    %v523 = vmul.f32 %v521, %v522
    %v524 = vsub.f32 1.0, %v523
    %v525 = vmul.f32 %v522, %v524
    %v526 = vadd.f32 %v522, %v525
    %vm527 = vweird.f32 %v521
    %vm528 = vweird.f32 %v522
    %vm529 = vmor %vm527, %vm528
    %v530 = vsel %vm529, %v522, %v526
    %v531 = vand.u32 2147483647, %v521
    %vm532 = vcmp.eq.f32.partialorder %v531, 8.507059e+37
    %v533 = vand.u32 %v521, 2147483648
    %v534 = vor.u32 1.1754944e-38, %v533
    %v535 = vsel %vm532, %v534, %v530
    %v536 = vmul.f32 1.0, %v535
    %v537 = vxor.u32 %v515, 2147483648
    %v538 = vmul.f32 %v537, 1.442695
    %v539 = vpow.pop %v538
    %v540 = vadd.f32 %v539, 1.0
    %v541 = vrcp.pop %v540
    %v542 = vmul.f32 %v540, %v541
    %v543 = vsub.f32 1.0, %v542
    %v544 = vmul.f32 %v541, %v543
    %v545 = vadd.f32 %v541, %v544
    %vm546 = vweird.f32 %v540
    %vm547 = vweird.f32 %v541
    %vm548 = vmor %vm546, %vm547
    %v549 = vsel %vm548, %v541, %v545
    %v550 = vand.u32 2147483647, %v540
    %vm551 = vcmp.eq.f32.partialorder %v550, 8.507059e+37
    %v552 = vand.u32 %v540, 2147483648
    %v553 = vor.u32 1.1754944e-38, %v552
    %v554 = vsel %vm551, %v553, %v549
    %v555 = vmul.f32 1.0, %v554
    %v556 = vtanh.pop %v516
    %v557 = vxor.u32 %v517, 2147483648
    %v558 = vmul.f32 %v557, 1.442695
    %v559 = vpow.pop %v558
    %v560 = vadd.f32 %v559, 1.0
    %v561 = vrcp.pop %v560
    %v562 = vmul.f32 %v560, %v561
    %v563 = vsub.f32 1.0, %v562
    %v564 = vmul.f32 %v561, %v563
    %v565 = vadd.f32 %v561, %v564
    %vm566 = vweird.f32 %v560
    %vm567 = vweird.f32 %v561
    %vm568 = vmor %vm566, %vm567
    %v569 = vsel %vm568, %v561, %v565
    %v570 = vand.u32 2147483647, %v560
    %vm571 = vcmp.eq.f32.partialorder %v570, 8.507059e+37
    %v572 = vand.u32 %v560, 2147483648
    %v573 = vor.u32 1.1754944e-38, %v572
    %v574 = vsel %vm571, %v573, %v569
    %v575 = vmul.f32 1.0, %v574
    %v576 = vmul.f32 %v555, 0.0
    %v577 = vmul.f32 %v536, %v556
    %v578 = vadd.f32 %v576, %v577
    %v579 = vtanh.pop %v578
    %v580 = vmul.f32 %v575, %v579
    %581 = vst [vmem:[#allocation3] sm:$0xff] %v580
    %v582 = vld [vmem:[#allocation2 + $0x20] sm:$0xff]
    %v583 = vld [vmem:[#allocation2 + $0x28] sm:$0xff]
    %v584 = vld [vmem:[#allocation2 + $0x30] sm:$0xff]
    %v585 = vld [vmem:[#allocation2 + $0x38] sm:$0xff]
    %v586 = vld [vmem:[#allocation7] sm:$0xff]
    %v587 = vld [vmem:[#allocation7 + $0x8] sm:$0xff]
    %v588 = vld [vmem:[#allocation7 + $0x10] sm:$0xff]
    %v589 = vld [vmem:[#allocation7 + $0x18] sm:$0xff]
    %v590 = vld [vmem:[#allocation7 + $0x20] sm:$0xff]
    %v591 = vld [vmem:[#allocation7 + $0x28] sm:$0xff]
    %v592 = vld [vmem:[#allocation7 + $0x30] sm:$0xff]
    %v593 = vld [vmem:[#allocation7 + $0x38] sm:$0xff]
    %v594 = vld [vmem:[#allocation7 + $0x40] sm:$0xff]
    %v595 = vld [vmem:[#allocation7 + $0x48] sm:$0xff]
    %v596 = vld [vmem:[#allocation7 + $0x50] sm:$0xff]
    %v597 = vld [vmem:[#allocation7 + $0x58] sm:$0xff]
    %v598 = vld [vmem:[#allocation7 + $0x60] sm:$0xff]
    %v599 = vld [vmem:[#allocation7 + $0x68] sm:$0xff]
    %v600 = vld [vmem:[#allocation7 + $0x70] sm:$0xff]
    %v601 = vld [vmem:[#allocation7 + $0x78] sm:$0xff]
    %v602 = vld [vmem:[#allocation7 + $0x80] sm:$0xff]
    %v603 = vld [vmem:[#allocation7 + $0x88] sm:$0xff]
    %v604 = vld [vmem:[#allocation7 + $0x90] sm:$0xff]
    %v605 = vld [vmem:[#allocation7 + $0x98] sm:$0xff]
    %v606 = vld [vmem:[#allocation7 + $0xa0] sm:$0xff]
    %v607 = vld [vmem:[#allocation7 + $0xa8] sm:$0xff]
    %v608 = vld [vmem:[#allocation7 + $0xb0] sm:$0xff]
    %v609 = vld [vmem:[#allocation7 + $0xb8] sm:$0xff]
    %v610 = vld [vmem:[#allocation7 + $0xc0] sm:$0xff]
    %v611 = vld [vmem:[#allocation7 + $0xc8] sm:$0xff]
    %v612 = vld [vmem:[#allocation7 + $0xd0] sm:$0xff]
    %v613 = vld [vmem:[#allocation7 + $0xd8] sm:$0xff]
    %v614 = vld [vmem:[#allocation7 + $0xe0] sm:$0xff]
    %v615 = vld [vmem:[#allocation7 + $0xe8] sm:$0xff]
    %v616 = vld [vmem:[#allocation7 + $0xf0] sm:$0xff]
    %v617 = vld [vmem:[#allocation7 + $0xf8] sm:$0xff]
    %v618 = vld [vmem:[#allocation7 + $0x100] sm:$0xff]
    %v619 = vld [vmem:[#allocation7 + $0x108] sm:$0xff]
    %v620 = vld [vmem:[#allocation7 + $0x110] sm:$0xff]
    %v621 = vld [vmem:[#allocation7 + $0x118] sm:$0xff]
    %v622 = vld [vmem:[#allocation7 + $0x120] sm:$0xff]
    %v623 = vld [vmem:[#allocation7 + $0x128] sm:$0xff]
    %v624 = vld [vmem:[#allocation7 + $0x130] sm:$0xff]
    %v625 = vld [vmem:[#allocation7 + $0x138] sm:$0xff]
    %v626 = vld [vmem:[#allocation7 + $0x140] sm:$0xff]
    %v627 = vld [vmem:[#allocation7 + $0x148] sm:$0xff]
    %v628 = vld [vmem:[#allocation7 + $0x150] sm:$0xff]
    %v629 = vld [vmem:[#allocation7 + $0x158] sm:$0xff]
    %v630 = vld [vmem:[#allocation7 + $0x160] sm:$0xff]
    %v631 = vld [vmem:[#allocation7 + $0x168] sm:$0xff]
    %v632 = vld [vmem:[#allocation7 + $0x170] sm:$0xff]
    %v633 = vld [vmem:[#allocation7 + $0x178] sm:$0xff]
    %v634 = vld [vmem:[#allocation7 + $0x180] sm:$0xff]
    %v635 = vld [vmem:[#allocation7 + $0x188] sm:$0xff]
    %v636 = vld [vmem:[#allocation7 + $0x190] sm:$0xff]
    %v637 = vld [vmem:[#allocation7 + $0x198] sm:$0xff]
    %v638 = vld [vmem:[#allocation7 + $0x1a0] sm:$0xff]
    %v639 = vld [vmem:[#allocation7 + $0x1a8] sm:$0xff]
    %v640 = vld [vmem:[#allocation7 + $0x1b0] sm:$0xff]
    %v641 = vld [vmem:[#allocation7 + $0x1b8] sm:$0xff]
    %v642 = vld [vmem:[#allocation7 + $0x1c0] sm:$0xff]
    %v643 = vld [vmem:[#allocation7 + $0x1c8] sm:$0xff]
    %v644 = vld [vmem:[#allocation7 + $0x1d0] sm:$0xff]
    %v645 = vld [vmem:[#allocation7 + $0x1d8] sm:$0xff]
    %v646 = vld [vmem:[#allocation7 + $0x1e0] sm:$0xff]
    %v647 = vld [vmem:[#allocation7 + $0x1e8] sm:$0xff]
    %v648 = vld [vmem:[#allocation7 + $0x1f0] sm:$0xff]
    %v649 = vld [vmem:[#allocation7 + $0x1f8] sm:$0xff]
    %650 = vmatpush.msra.mxu0 %v646
    %651 = vmatpush.msra.mxu0 %v642
    %652 = vmatpush.msra.mxu0 %v638
    %653 = vmatpush.msra.mxu0 %v634
    %654 = vmatpush.msra.mxu0 %v630
    %655 = vmatpush.msra.mxu0 %v626
    %656 = vmatpush.msra.mxu0 %v622
    %657 = vmatpush.msra.mxu0 %v618
    %658 = vmatpush.msra.mxu0 %v614
    %659 = vmatpush.msra.mxu0 %v610
    %660 = vmatpush.msra.mxu0 %v606
    %661 = vmatpush.msra.mxu0 %v602
    %662 = vmatpush.msra.mxu0 %v598
    %663 = vmatpush.msra.mxu0 %v594
    %664 = vmatpush.msra.mxu0 %v590
    %665 = vmatpush.msra.mxu0 %v586
    %666 = vmatmul.f32.gmra.mxu0 %v580
    %v667 = vpop.f32.mrf.mxu0
    %v668 = vadd.f32 0.0, %v667
    %669 = vdwg.mxu0
    %670 = vmatpush.msra.mxu0 %v647
    %671 = vmatpush.msra.mxu0 %v643
    %672 = vmatpush.msra.mxu0 %v639
    %673 = vmatpush.msra.mxu0 %v635
    %674 = vmatpush.msra.mxu0 %v631
    %675 = vmatpush.msra.mxu0 %v627
    %676 = vmatpush.msra.mxu0 %v623
    %677 = vmatpush.msra.mxu0 %v619
    %678 = vmatpush.msra.mxu0 %v615
    %679 = vmatpush.msra.mxu0 %v611
    %680 = vmatpush.msra.mxu0 %v607
    %681 = vmatpush.msra.mxu0 %v603
    %682 = vmatpush.msra.mxu0 %v599
    %683 = vmatpush.msra.mxu0 %v595
    %684 = vmatpush.msra.mxu0 %v591
    %685 = vmatpush.msra.mxu0 %v587
    %686 = vmatmul.f32.gmra.mxu0 %v580
    %v687 = vpop.f32.mrf.mxu0
    %v688 = vadd.f32 0.0, %v687
    %689 = vdwg.mxu0
    %690 = vmatpush.msra.mxu0 %v648
    %691 = vmatpush.msra.mxu0 %v644
    %692 = vmatpush.msra.mxu0 %v640
    %693 = vmatpush.msra.mxu0 %v636
    %694 = vmatpush.msra.mxu0 %v632
    %695 = vmatpush.msra.mxu0 %v628
    %696 = vmatpush.msra.mxu0 %v624
    %697 = vmatpush.msra.mxu0 %v620
    %698 = vmatpush.msra.mxu0 %v616
    %699 = vmatpush.msra.mxu0 %v612
    %700 = vmatpush.msra.mxu0 %v608
    %701 = vmatpush.msra.mxu0 %v604
    %702 = vmatpush.msra.mxu0 %v600
    %703 = vmatpush.msra.mxu0 %v596
    %704 = vmatpush.msra.mxu0 %v592
    %705 = vmatpush.msra.mxu0 %v588
    %706 = vmatmul.f32.gmra.mxu0 %v580
    %v707 = vpop.f32.mrf.mxu0
    %v708 = vadd.f32 0.0, %v707
    %709 = vdwg.mxu0
    %710 = vmatpush.msra.mxu0 %v649
    %711 = vmatpush.msra.mxu0 %v645
    %712 = vmatpush.msra.mxu0 %v641
    %713 = vmatpush.msra.mxu0 %v637
    %714 = vmatpush.msra.mxu0 %v633
    %715 = vmatpush.msra.mxu0 %v629
    %716 = vmatpush.msra.mxu0 %v625
    %717 = vmatpush.msra.mxu0 %v621
    %718 = vmatpush.msra.mxu0 %v617
    %719 = vmatpush.msra.mxu0 %v613
    %720 = vmatpush.msra.mxu0 %v609
    %721 = vmatpush.msra.mxu0 %v605
    %722 = vmatpush.msra.mxu0 %v601
    %723 = vmatpush.msra.mxu0 %v597
    %724 = vmatpush.msra.mxu0 %v593
    %725 = vmatpush.msra.mxu0 %v589
    %726 = vmatmul.f32.gmra.mxu0 %v580
    %v727 = vpop.f32.mrf.mxu0
    %v728 = vadd.f32 0.0, %v727
    %729 = vdwg.mxu0
    %v730 = vadd.f32 %v582, %v668
    %v731 = vadd.f32 %v583, %v688
    %v732 = vadd.f32 %v584, %v708
    %v733 = vadd.f32 %v585, %v728
    %v734 = vxor.u32 %v730, 2147483648
    %v735 = vmul.f32 %v734, 1.442695
    %v736 = vpow.pop %v735
    %v737 = vadd.f32 %v736, 1.0
    %v738 = vrcp.pop %v737
    %v739 = vmul.f32 %v737, %v738
    %v740 = vsub.f32 1.0, %v739
    %v741 = vmul.f32 %v738, %v740
    %v742 = vadd.f32 %v738, %v741
    %vm743 = vweird.f32 %v737
    %vm744 = vweird.f32 %v738
    %vm745 = vmor %vm743, %vm744
    %v746 = vsel %vm745, %v738, %v742
    %v747 = vand.u32 2147483647, %v737
    %vm748 = vcmp.eq.f32.partialorder %v747, 8.507059e+37
    %v749 = vand.u32 %v737, 2147483648
    %v750 = vor.u32 1.1754944e-38, %v749
    %v751 = vsel %vm748, %v750, %v746
    %v752 = vmul.f32 1.0, %v751
    %v753 = vxor.u32 %v731, 2147483648
    %v754 = vmul.f32 %v753, 1.442695
    %v755 = vpow.pop %v754
    %v756 = vadd.f32 %v755, 1.0
    %v757 = vrcp.pop %v756
    %v758 = vmul.f32 %v756, %v757
    %v759 = vsub.f32 1.0, %v758
    %v760 = vmul.f32 %v757, %v759
    %v761 = vadd.f32 %v757, %v760
    %vm762 = vweird.f32 %v756
    %vm763 = vweird.f32 %v757
    %vm764 = vmor %vm762, %vm763
    %v765 = vsel %vm764, %v757, %v761
    %v766 = vand.u32 2147483647, %v756
    %vm767 = vcmp.eq.f32.partialorder %v766, 8.507059e+37
    %v768 = vand.u32 %v756, 2147483648
    %v769 = vor.u32 1.1754944e-38, %v768
    %v770 = vsel %vm767, %v769, %v765
    %v771 = vmul.f32 1.0, %v770
    %v772 = vtanh.pop %v732
    %v773 = vxor.u32 %v733, 2147483648
    %v774 = vmul.f32 %v773, 1.442695
    %v775 = vpow.pop %v774
    %v776 = vadd.f32 %v775, 1.0
    %v777 = vrcp.pop %v776
    %v778 = vmul.f32 %v776, %v777
    %v779 = vsub.f32 1.0, %v778
    %v780 = vmul.f32 %v777, %v779
    %v781 = vadd.f32 %v777, %v780
    %vm782 = vweird.f32 %v776
    %vm783 = vweird.f32 %v777
    %vm784 = vmor %vm782, %vm783
    %v785 = vsel %vm784, %v777, %v781
    %v786 = vand.u32 2147483647, %v776
    %vm787 = vcmp.eq.f32.partialorder %v786, 8.507059e+37
    %v788 = vand.u32 %v776, 2147483648
    %v789 = vor.u32 1.1754944e-38, %v788
    %v790 = vsel %vm787, %v789, %v785
    %v791 = vmul.f32 1.0, %v790
    %v792 = vmul.f32 %v771, %v578
    %v793 = vmul.f32 %v752, %v772
    %v794 = vadd.f32 %v792, %v793
    %v795 = vtanh.pop %v794
    %v796 = vmul.f32 %v791, %v795
    %797 = vst [vmem:[#allocation3 + $0x8] sm:$0xff] %v796
    %v798 = vld [vmem:[#allocation2 + $0x40] sm:$0xff]
    %v799 = vld [vmem:[#allocation2 + $0x48] sm:$0xff]
    %v800 = vld [vmem:[#allocation2 + $0x50] sm:$0xff]
    %v801 = vld [vmem:[#allocation2 + $0x58] sm:$0xff]
    %v802 = vld [vmem:[#allocation7] sm:$0xff]
    %v803 = vld [vmem:[#allocation7 + $0x8] sm:$0xff]
    %v804 = vld [vmem:[#allocation7 + $0x10] sm:$0xff]
    %v805 = vld [vmem:[#allocation7 + $0x18] sm:$0xff]
    %v806 = vld [vmem:[#allocation7 + $0x20] sm:$0xff]
    %v807 = vld [vmem:[#allocation7 + $0x28] sm:$0xff]
    %v808 = vld [vmem:[#allocation7 + $0x30] sm:$0xff]
    %v809 = vld [vmem:[#allocation7 + $0x38] sm:$0xff]
    %v810 = vld [vmem:[#allocation7 + $0x40] sm:$0xff]
    %v811 = vld [vmem:[#allocation7 + $0x48] sm:$0xff]
    %v812 = vld [vmem:[#allocation7 + $0x50] sm:$0xff]
    %v813 = vld [vmem:[#allocation7 + $0x58] sm:$0xff]
    %v814 = vld [vmem:[#allocation7 + $0x60] sm:$0xff]
    %v815 = vld [vmem:[#allocation7 + $0x68] sm:$0xff]
    %v816 = vld [vmem:[#allocation7 + $0x70] sm:$0xff]
    %v817 = vld [vmem:[#allocation7 + $0x78] sm:$0xff]
    %v818 = vld [vmem:[#allocation7 + $0x80] sm:$0xff]
    %v819 = vld [vmem:[#allocation7 + $0x88] sm:$0xff]
    %v820 = vld [vmem:[#allocation7 + $0x90] sm:$0xff]
    %v821 = vld [vmem:[#allocation7 + $0x98] sm:$0xff]
    %v822 = vld [vmem:[#allocation7 + $0xa0] sm:$0xff]
    %v823 = vld [vmem:[#allocation7 + $0xa8] sm:$0xff]
    %v824 = vld [vmem:[#allocation7 + $0xb0] sm:$0xff]
    %v825 = vld [vmem:[#allocation7 + $0xb8] sm:$0xff]
    %v826 = vld [vmem:[#allocation7 + $0xc0] sm:$0xff]
    %v827 = vld [vmem:[#allocation7 + $0xc8] sm:$0xff]
    %v828 = vld [vmem:[#allocation7 + $0xd0] sm:$0xff]
    %v829 = vld [vmem:[#allocation7 + $0xd8] sm:$0xff]
    %v830 = vld [vmem:[#allocation7 + $0xe0] sm:$0xff]
    %v831 = vld [vmem:[#allocation7 + $0xe8] sm:$0xff]
    %v832 = vld [vmem:[#allocation7 + $0xf0] sm:$0xff]
    %v833 = vld [vmem:[#allocation7 + $0xf8] sm:$0xff]
    %v834 = vld [vmem:[#allocation7 + $0x100] sm:$0xff]
    %v835 = vld [vmem:[#allocation7 + $0x108] sm:$0xff]
    %v836 = vld [vmem:[#allocation7 + $0x110] sm:$0xff]
    %v837 = vld [vmem:[#allocation7 + $0x118] sm:$0xff]
    %v838 = vld [vmem:[#allocation7 + $0x120] sm:$0xff]
    %v839 = vld [vmem:[#allocation7 + $0x128] sm:$0xff]
    %v840 = vld [vmem:[#allocation7 + $0x130] sm:$0xff]
    %v841 = vld [vmem:[#allocation7 + $0x138] sm:$0xff]
    %v842 = vld [vmem:[#allocation7 + $0x140] sm:$0xff]
    %v843 = vld [vmem:[#allocation7 + $0x148] sm:$0xff]
    %v844 = vld [vmem:[#allocation7 + $0x150] sm:$0xff]
    %v845 = vld [vmem:[#allocation7 + $0x158] sm:$0xff]
    %v846 = vld [vmem:[#allocation7 + $0x160] sm:$0xff]
    %v847 = vld [vmem:[#allocation7 + $0x168] sm:$0xff]
    %v848 = vld [vmem:[#allocation7 + $0x170] sm:$0xff]
    %v849 = vld [vmem:[#allocation7 + $0x178] sm:$0xff]
    %v850 = vld [vmem:[#allocation7 + $0x180] sm:$0xff]
    %v851 = vld [vmem:[#allocation7 + $0x188] sm:$0xff]
    %v852 = vld [vmem:[#allocation7 + $0x190] sm:$0xff]
    %v853 = vld [vmem:[#allocation7 + $0x198] sm:$0xff]
    %v854 = vld [vmem:[#allocation7 + $0x1a0] sm:$0xff]
    %v855 = vld [vmem:[#allocation7 + $0x1a8] sm:$0xff]
    %v856 = vld [vmem:[#allocation7 + $0x1b0] sm:$0xff]
    %v857 = vld [vmem:[#allocation7 + $0x1b8] sm:$0xff]
    %v858 = vld [vmem:[#allocation7 + $0x1c0] sm:$0xff]
    %v859 = vld [vmem:[#allocation7 + $0x1c8] sm:$0xff]
    %v860 = vld [vmem:[#allocation7 + $0x1d0] sm:$0xff]
    %v861 = vld [vmem:[#allocation7 + $0x1d8] sm:$0xff]
    %v862 = vld [vmem:[#allocation7 + $0x1e0] sm:$0xff]
    %v863 = vld [vmem:[#allocation7 + $0x1e8] sm:$0xff]
    %v864 = vld [vmem:[#allocation7 + $0x1f0] sm:$0xff]
    %v865 = vld [vmem:[#allocation7 + $0x1f8] sm:$0xff]
    %866 = vmatpush.msra.mxu0 %v862
    %867 = vmatpush.msra.mxu0 %v858
    %868 = vmatpush.msra.mxu0 %v854
    %869 = vmatpush.msra.mxu0 %v850
    %870 = vmatpush.msra.mxu0 %v846
    %871 = vmatpush.msra.mxu0 %v842
    %872 = vmatpush.msra.mxu0 %v838
    %873 = vmatpush.msra.mxu0 %v834
    %874 = vmatpush.msra.mxu0 %v830
    %875 = vmatpush.msra.mxu0 %v826
    %876 = vmatpush.msra.mxu0 %v822
    %877 = vmatpush.msra.mxu0 %v818
    %878 = vmatpush.msra.mxu0 %v814
    %879 = vmatpush.msra.mxu0 %v810
    %880 = vmatpush.msra.mxu0 %v806
    %881 = vmatpush.msra.mxu0 %v802
    %882 = vmatmul.f32.gmra.mxu0 %v796
    %v883 = vpop.f32.mrf.mxu0
    %v884 = vadd.f32 0.0, %v883
    %885 = vdwg.mxu0
    %886 = vmatpush.msra.mxu0 %v863
    %887 = vmatpush.msra.mxu0 %v859
    %888 = vmatpush.msra.mxu0 %v855
    %889 = vmatpush.msra.mxu0 %v851
    %890 = vmatpush.msra.mxu0 %v847
    %891 = vmatpush.msra.mxu0 %v843
    %892 = vmatpush.msra.mxu0 %v839
    %893 = vmatpush.msra.mxu0 %v835
    %894 = vmatpush.msra.mxu0 %v831
    %895 = vmatpush.msra.mxu0 %v827
    %896 = vmatpush.msra.mxu0 %v823
    %897 = vmatpush.msra.mxu0 %v819
    %898 = vmatpush.msra.mxu0 %v815
    %899 = vmatpush.msra.mxu0 %v811
    %900 = vmatpush.msra.mxu0 %v807
    %901 = vmatpush.msra.mxu0 %v803
    %902 = vmatmul.f32.gmra.mxu0 %v796
    %v903 = vpop.f32.mrf.mxu0
    %v904 = vadd.f32 0.0, %v903
    %905 = vdwg.mxu0
    %906 = vmatpush.msra.mxu0 %v864
    %907 = vmatpush.msra.mxu0 %v860
    %908 = vmatpush.msra.mxu0 %v856
    %909 = vmatpush.msra.mxu0 %v852
    %910 = vmatpush.msra.mxu0 %v848
    %911 = vmatpush.msra.mxu0 %v844
    %912 = vmatpush.msra.mxu0 %v840
    %913 = vmatpush.msra.mxu0 %v836
    %914 = vmatpush.msra.mxu0 %v832
    %915 = vmatpush.msra.mxu0 %v828
    %916 = vmatpush.msra.mxu0 %v824
    %917 = vmatpush.msra.mxu0 %v820
    %918 = vmatpush.msra.mxu0 %v816
    %919 = vmatpush.msra.mxu0 %v812
    %920 = vmatpush.msra.mxu0 %v808
    %921 = vmatpush.msra.mxu0 %v804
    %922 = vmatmul.f32.gmra.mxu0 %v796
    %v923 = vpop.f32.mrf.mxu0
    %v924 = vadd.f32 0.0, %v923
    %925 = vdwg.mxu0
    %926 = vmatpush.msra.mxu0 %v865
    %927 = vmatpush.msra.mxu0 %v861
    %928 = vmatpush.msra.mxu0 %v857
    %929 = vmatpush.msra.mxu0 %v853
    %930 = vmatpush.msra.mxu0 %v849
    %931 = vmatpush.msra.mxu0 %v845
    %932 = vmatpush.msra.mxu0 %v841
    %933 = vmatpush.msra.mxu0 %v837
    %934 = vmatpush.msra.mxu0 %v833
    %935 = vmatpush.msra.mxu0 %v829
    %936 = vmatpush.msra.mxu0 %v825
    %937 = vmatpush.msra.mxu0 %v821
    %938 = vmatpush.msra.mxu0 %v817
    %939 = vmatpush.msra.mxu0 %v813
    %940 = vmatpush.msra.mxu0 %v809
    %941 = vmatpush.msra.mxu0 %v805
    %942 = vmatmul.f32.gmra.mxu0 %v796
    %v943 = vpop.f32.mrf.mxu0
    %v944 = vadd.f32 0.0, %v943
    %945 = vdwg.mxu0
    %v946 = vadd.f32 %v798, %v884
    %v947 = vadd.f32 %v799, %v904
    %v948 = vadd.f32 %v800, %v924
    %v949 = vadd.f32 %v801, %v944
    %v950 = vxor.u32 %v946, 2147483648
    %v951 = vmul.f32 %v950, 1.442695
    %v952 = vpow.pop %v951
    %v953 = vadd.f32 %v952, 1.0
    %v954 = vrcp.pop %v953
    %v955 = vmul.f32 %v953, %v954
    %v956 = vsub.f32 1.0, %v955
    %v957 = vmul.f32 %v954, %v956
    %v958 = vadd.f32 %v954, %v957
    %vm959 = vweird.f32 %v953
    %vm960 = vweird.f32 %v954
    %vm961 = vmor %vm959, %vm960
    %v962 = vsel %vm961, %v954, %v958
    %v963 = vand.u32 2147483647, %v953
    %vm964 = vcmp.eq.f32.partialorder %v963, 8.507059e+37
    %v965 = vand.u32 %v953, 2147483648
    %v966 = vor.u32 1.1754944e-38, %v965
    %v967 = vsel %vm964, %v966, %v962
    %v968 = vmul.f32 1.0, %v967
    %v969 = vxor.u32 %v947, 2147483648
    %v970 = vmul.f32 %v969, 1.442695
    %v971 = vpow.pop %v970
    %v972 = vadd.f32 %v971, 1.0
    %v973 = vrcp.pop %v972
    %v974 = vmul.f32 %v972, %v973
    %v975 = vsub.f32 1.0, %v974
    %v976 = vmul.f32 %v973, %v975
    %v977 = vadd.f32 %v973, %v976
    %vm978 = vweird.f32 %v972
    %vm979 = vweird.f32 %v973
    %vm980 = vmor %vm978, %vm979
    %v981 = vsel %vm980, %v973, %v977
    %v982 = vand.u32 2147483647, %v972
    %vm983 = vcmp.eq.f32.partialorder %v982, 8.507059e+37
    %v984 = vand.u32 %v972, 2147483648
    %v985 = vor.u32 1.1754944e-38, %v984
    %v986 = vsel %vm983, %v985, %v981
    %v987 = vmul.f32 1.0, %v986
    %v988 = vtanh.pop %v948
    %v989 = vxor.u32 %v949, 2147483648
    %v990 = vmul.f32 %v989, 1.442695
    %v991 = vpow.pop %v990
    %v992 = vadd.f32 %v991, 1.0
    %v993 = vrcp.pop %v992
    %v994 = vmul.f32 %v992, %v993
    %v995 = vsub.f32 1.0, %v994
    %v996 = vmul.f32 %v993, %v995
    %v997 = vadd.f32 %v993, %v996
    %vm998 = vweird.f32 %v992
    %vm999 = vweird.f32 %v993
    %vm1000 = vmor %vm998, %vm999
    %v1001 = vsel %vm1000, %v993, %v997
    %v1002 = vand.u32 2147483647, %v992
    %vm1003 = vcmp.eq.f32.partialorder %v1002, 8.507059e+37
    %v1004 = vand.u32 %v992, 2147483648
    %v1005 = vor.u32 1.1754944e-38, %v1004
    %v1006 = vsel %vm1003, %v1005, %v1001
    %v1007 = vmul.f32 1.0, %v1006
    %v1008 = vmul.f32 %v987, %v794
    %v1009 = vmul.f32 %v968, %v988
    %v1010 = vadd.f32 %v1008, %v1009
    %v1011 = vtanh.pop %v1010
    %v1012 = vmul.f32 %v1007, %v1011
    %1013 = vst [vmem:[#allocation3 + $0x10] sm:$0xff] %v1012
    %v1014 = vld [vmem:[#allocation2 + $0x60] sm:$0xff]
    %v1015 = vld [vmem:[#allocation2 + $0x68] sm:$0xff]
    %v1016 = vld [vmem:[#allocation2 + $0x70] sm:$0xff]
    %v1017 = vld [vmem:[#allocation2 + $0x78] sm:$0xff]
    %v1018 = vld [vmem:[#allocation7] sm:$0xff]
    %v1019 = vld [vmem:[#allocation7 + $0x8] sm:$0xff]
    %v1020 = vld [vmem:[#allocation7 + $0x10] sm:$0xff]
    %v1021 = vld [vmem:[#allocation7 + $0x18] sm:$0xff]
    %v1022 = vld [vmem:[#allocation7 + $0x20] sm:$0xff]
    %v1023 = vld [vmem:[#allocation7 + $0x28] sm:$0xff]
    %v1024 = vld [vmem:[#allocation7 + $0x30] sm:$0xff]
    %v1025 = vld [vmem:[#allocation7 + $0x38] sm:$0xff]
    %v1026 = vld [vmem:[#allocation7 + $0x40] sm:$0xff]
    %v1027 = vld [vmem:[#allocation7 + $0x48] sm:$0xff]
    %v1028 = vld [vmem:[#allocation7 + $0x50] sm:$0xff]
    %v1029 = vld [vmem:[#allocation7 + $0x58] sm:$0xff]
    %v1030 = vld [vmem:[#allocation7 + $0x60] sm:$0xff]
    %v1031 = vld [vmem:[#allocation7 + $0x68] sm:$0xff]
    %v1032 = vld [vmem:[#allocation7 + $0x70] sm:$0xff]
    %v1033 = vld [vmem:[#allocation7 + $0x78] sm:$0xff]
    %v1034 = vld [vmem:[#allocation7 + $0x80] sm:$0xff]
    %v1035 = vld [vmem:[#allocation7 + $0x88] sm:$0xff]
    %v1036 = vld [vmem:[#allocation7 + $0x90] sm:$0xff]
    %v1037 = vld [vmem:[#allocation7 + $0x98] sm:$0xff]
    %v1038 = vld [vmem:[#allocation7 + $0xa0] sm:$0xff]
    %v1039 = vld [vmem:[#allocation7 + $0xa8] sm:$0xff]
    %v1040 = vld [vmem:[#allocation7 + $0xb0] sm:$0xff]
    %v1041 = vld [vmem:[#allocation7 + $0xb8] sm:$0xff]
    %v1042 = vld [vmem:[#allocation7 + $0xc0] sm:$0xff]
    %v1043 = vld [vmem:[#allocation7 + $0xc8] sm:$0xff]
    %v1044 = vld [vmem:[#allocation7 + $0xd0] sm:$0xff]
    %v1045 = vld [vmem:[#allocation7 + $0xd8] sm:$0xff]
    %v1046 = vld [vmem:[#allocation7 + $0xe0] sm:$0xff]
    %v1047 = vld [vmem:[#allocation7 + $0xe8] sm:$0xff]
    %v1048 = vld [vmem:[#allocation7 + $0xf0] sm:$0xff]
    %v1049 = vld [vmem:[#allocation7 + $0xf8] sm:$0xff]
    %v1050 = vld [vmem:[#allocation7 + $0x100] sm:$0xff]
    %v1051 = vld [vmem:[#allocation7 + $0x108] sm:$0xff]
    %v1052 = vld [vmem:[#allocation7 + $0x110] sm:$0xff]
    %v1053 = vld [vmem:[#allocation7 + $0x118] sm:$0xff]
    %v1054 = vld [vmem:[#allocation7 + $0x120] sm:$0xff]
    %v1055 = vld [vmem:[#allocation7 + $0x128] sm:$0xff]
    %v1056 = vld [vmem:[#allocation7 + $0x130] sm:$0xff]
    %v1057 = vld [vmem:[#allocation7 + $0x138] sm:$0xff]
    %v1058 = vld [vmem:[#allocation7 + $0x140] sm:$0xff]
    %v1059 = vld [vmem:[#allocation7 + $0x148] sm:$0xff]
    %v1060 = vld [vmem:[#allocation7 + $0x150] sm:$0xff]
    %v1061 = vld [vmem:[#allocation7 + $0x158] sm:$0xff]
    %v1062 = vld [vmem:[#allocation7 + $0x160] sm:$0xff]
    %v1063 = vld [vmem:[#allocation7 + $0x168] sm:$0xff]
    %v1064 = vld [vmem:[#allocation7 + $0x170] sm:$0xff]
    %v1065 = vld [vmem:[#allocation7 + $0x178] sm:$0xff]
    %v1066 = vld [vmem:[#allocation7 + $0x180] sm:$0xff]
    %v1067 = vld [vmem:[#allocation7 + $0x188] sm:$0xff]
    %v1068 = vld [vmem:[#allocation7 + $0x190] sm:$0xff]
    %v1069 = vld [vmem:[#allocation7 + $0x198] sm:$0xff]
    %v1070 = vld [vmem:[#allocation7 + $0x1a0] sm:$0xff]
    %v1071 = vld [vmem:[#allocation7 + $0x1a8] sm:$0xff]
    %v1072 = vld [vmem:[#allocation7 + $0x1b0] sm:$0xff]
    %v1073 = vld [vmem:[#allocation7 + $0x1b8] sm:$0xff]
    %v1074 = vld [vmem:[#allocation7 + $0x1c0] sm:$0xff]
    %v1075 = vld [vmem:[#allocation7 + $0x1c8] sm:$0xff]
    %v1076 = vld [vmem:[#allocation7 + $0x1d0] sm:$0xff]
    %v1077 = vld [vmem:[#allocation7 + $0x1d8] sm:$0xff]
    %v1078 = vld [vmem:[#allocation7 + $0x1e0] sm:$0xff]
    %v1079 = vld [vmem:[#allocation7 + $0x1e8] sm:$0xff]
    %v1080 = vld [vmem:[#allocation7 + $0x1f0] sm:$0xff]
    %v1081 = vld [vmem:[#allocation7 + $0x1f8] sm:$0xff]
    %1082 = vmatpush.msra.mxu0 %v1078
    %1083 = vmatpush.msra.mxu0 %v1074
    %1084 = vmatpush.msra.mxu0 %v1070
    %1085 = vmatpush.msra.mxu0 %v1066
    %1086 = vmatpush.msra.mxu0 %v1062
    %1087 = vmatpush.msra.mxu0 %v1058
    %1088 = vmatpush.msra.mxu0 %v1054
    %1089 = vmatpush.msra.mxu0 %v1050
    %1090 = vmatpush.msra.mxu0 %v1046
    %1091 = vmatpush.msra.mxu0 %v1042
    %1092 = vmatpush.msra.mxu0 %v1038
    %1093 = vmatpush.msra.mxu0 %v1034
    %1094 = vmatpush.msra.mxu0 %v1030
    %1095 = vmatpush.msra.mxu0 %v1026
    %1096 = vmatpush.msra.mxu0 %v1022
    %1097 = vmatpush.msra.mxu0 %v1018
    %1098 = vmatmul.f32.gmra.mxu0 %v1012
    %v1099 = vpop.f32.mrf.mxu0
    %v1100 = vadd.f32 0.0, %v1099
    %1101 = vdwg.mxu0
    %1102 = vmatpush.msra.mxu0 %v1079
    %1103 = vmatpush.msra.mxu0 %v1075
    %1104 = vmatpush.msra.mxu0 %v1071
    %1105 = vmatpush.msra.mxu0 %v1067
    %1106 = vmatpush.msra.mxu0 %v1063
    %1107 = vmatpush.msra.mxu0 %v1059
    %1108 = vmatpush.msra.mxu0 %v1055
    %1109 = vmatpush.msra.mxu0 %v1051
    %1110 = vmatpush.msra.mxu0 %v1047
    %1111 = vmatpush.msra.mxu0 %v1043
    %1112 = vmatpush.msra.mxu0 %v1039
    %1113 = vmatpush.msra.mxu0 %v1035
    %1114 = vmatpush.msra.mxu0 %v1031
    %1115 = vmatpush.msra.mxu0 %v1027
    %1116 = vmatpush.msra.mxu0 %v1023
    %1117 = vmatpush.msra.mxu0 %v1019
    %1118 = vmatmul.f32.gmra.mxu0 %v1012
    %v1119 = vpop.f32.mrf.mxu0
    %v1120 = vadd.f32 0.0, %v1119
    %1121 = vdwg.mxu0
    %1122 = vmatpush.msra.mxu0 %v1080
    %1123 = vmatpush.msra.mxu0 %v1076
    %1124 = vmatpush.msra.mxu0 %v1072
    %1125 = vmatpush.msra.mxu0 %v1068
    %1126 = vmatpush.msra.mxu0 %v1064
    %1127 = vmatpush.msra.mxu0 %v1060
    %1128 = vmatpush.msra.mxu0 %v1056
    %1129 = vmatpush.msra.mxu0 %v1052
    %1130 = vmatpush.msra.mxu0 %v1048
    %1131 = vmatpush.msra.mxu0 %v1044
    %1132 = vmatpush.msra.mxu0 %v1040
    %1133 = vmatpush.msra.mxu0 %v1036
    %1134 = vmatpush.msra.mxu0 %v1032
    %1135 = vmatpush.msra.mxu0 %v1028
    %1136 = vmatpush.msra.mxu0 %v1024
    %1137 = vmatpush.msra.mxu0 %v1020
    %1138 = vmatmul.f32.gmra.mxu0 %v1012
    %v1139 = vpop.f32.mrf.mxu0
    %v1140 = vadd.f32 0.0, %v1139
    %1141 = vdwg.mxu0
    %1142 = vmatpush.msra.mxu0 %v1081
    %1143 = vmatpush.msra.mxu0 %v1077
    %1144 = vmatpush.msra.mxu0 %v1073
    %1145 = vmatpush.msra.mxu0 %v1069
    %1146 = vmatpush.msra.mxu0 %v1065
    %1147 = vmatpush.msra.mxu0 %v1061
    %1148 = vmatpush.msra.mxu0 %v1057
    %1149 = vmatpush.msra.mxu0 %v1053
    %1150 = vmatpush.msra.mxu0 %v1049
    %1151 = vmatpush.msra.mxu0 %v1045
    %1152 = vmatpush.msra.mxu0 %v1041
    %1153 = vmatpush.msra.mxu0 %v1037
    %1154 = vmatpush.msra.mxu0 %v1033
    %1155 = vmatpush.msra.mxu0 %v1029
    %1156 = vmatpush.msra.mxu0 %v1025
    %1157 = vmatpush.msra.mxu0 %v1021
    %1158 = vmatmul.f32.gmra.mxu0 %v1012
    %v1159 = vpop.f32.mrf.mxu0
    %v1160 = vadd.f32 0.0, %v1159
    %1161 = vdwg.mxu0
    %v1162 = vadd.f32 %v1014, %v1100
    %v1163 = vadd.f32 %v1015, %v1120
    %v1164 = vadd.f32 %v1016, %v1140
    %v1165 = vadd.f32 %v1017, %v1160
    %v1166 = vxor.u32 %v1162, 2147483648
    %v1167 = vmul.f32 %v1166, 1.442695
    %v1168 = vpow.pop %v1167
    %v1169 = vadd.f32 %v1168, 1.0
    %v1170 = vrcp.pop %v1169
    %v1171 = vmul.f32 %v1169, %v1170
    %v1172 = vsub.f32 1.0, %v1171
    %v1173 = vmul.f32 %v1170, %v1172
    %v1174 = vadd.f32 %v1170, %v1173
    %vm1175 = vweird.f32 %v1169
    %vm1176 = vweird.f32 %v1170
    %vm1177 = vmor %vm1175, %vm1176
    %v1178 = vsel %vm1177, %v1170, %v1174
    %v1179 = vand.u32 2147483647, %v1169
    %vm1180 = vcmp.eq.f32.partialorder %v1179, 8.507059e+37
    %v1181 = vand.u32 %v1169, 2147483648
    %v1182 = vor.u32 1.1754944e-38, %v1181
    %v1183 = vsel %vm1180, %v1182, %v1178
    %v1184 = vmul.f32 1.0, %v1183
    %v1185 = vxor.u32 %v1163, 2147483648
    %v1186 = vmul.f32 %v1185, 1.442695
    %v1187 = vpow.pop %v1186
    %v1188 = vadd.f32 %v1187, 1.0
    %v1189 = vrcp.pop %v1188
    %v1190 = vmul.f32 %v1188, %v1189
    %v1191 = vsub.f32 1.0, %v1190
    %v1192 = vmul.f32 %v1189, %v1191
    %v1193 = vadd.f32 %v1189, %v1192
    %vm1194 = vweird.f32 %v1188
    %vm1195 = vweird.f32 %v1189
    %vm1196 = vmor %vm1194, %vm1195
    %v1197 = vsel %vm1196, %v1189, %v1193
    %v1198 = vand.u32 2147483647, %v1188
    %vm1199 = vcmp.eq.f32.partialorder %v1198, 8.507059e+37
    %v1200 = vand.u32 %v1188, 2147483648
    %v1201 = vor.u32 1.1754944e-38, %v1200
    %v1202 = vsel %vm1199, %v1201, %v1197
    %v1203 = vmul.f32 1.0, %v1202
    %v1204 = vtanh.pop %v1164
    %v1205 = vxor.u32 %v1165, 2147483648
    %v1206 = vmul.f32 %v1205, 1.442695
    %v1207 = vpow.pop %v1206
    %v1208 = vadd.f32 %v1207, 1.0
    %v1209 = vrcp.pop %v1208
    %v1210 = vmul.f32 %v1208, %v1209
    %v1211 = vsub.f32 1.0, %v1210
    %v1212 = vmul.f32 %v1209, %v1211
    %v1213 = vadd.f32 %v1209, %v1212
    %vm1214 = vweird.f32 %v1208
    %vm1215 = vweird.f32 %v1209
    %vm1216 = vmor %vm1214, %vm1215
    %v1217 = vsel %vm1216, %v1209, %v1213
    %v1218 = vand.u32 2147483647, %v1208
    %vm1219 = vcmp.eq.f32.partialorder %v1218, 8.507059e+37
    %v1220 = vand.u32 %v1208, 2147483648
    %v1221 = vor.u32 1.1754944e-38, %v1220
    %v1222 = vsel %vm1219, %v1221, %v1217
    %v1223 = vmul.f32 1.0, %v1222
    %v1224 = vmul.f32 %v1203, %v1010
    %v1225 = vmul.f32 %v1184, %v1204
    %v1226 = vadd.f32 %v1224, %v1225
    %v1227 = vtanh.pop %v1226
    %v1228 = vmul.f32 %v1223, %v1227
    %1229 = vst [vmem:[#allocation3 + $0x18] sm:$0xff] %v1228
    %v1230 = vld [vmem:[#allocation2 + $0x80] sm:$0xff]
    %v1231 = vld [vmem:[#allocation2 + $0x88] sm:$0xff]
    %v1232 = vld [vmem:[#allocation2 + $0x90] sm:$0xff]
    %v1233 = vld [vmem:[#allocation2 + $0x98] sm:$0xff]
    %v1234 = vld [vmem:[#allocation7] sm:$0xff]
    %v1235 = vld [vmem:[#allocation7 + $0x8] sm:$0xff]
    %v1236 = vld [vmem:[#allocation7 + $0x10] sm:$0xff]
    %v1237 = vld [vmem:[#allocation7 + $0x18] sm:$0xff]
    %v1238 = vld [vmem:[#allocation7 + $0x20] sm:$0xff]
    %v1239 = vld [vmem:[#allocation7 + $0x28] sm:$0xff]
    %v1240 = vld [vmem:[#allocation7 + $0x30] sm:$0xff]
    %v1241 = vld [vmem:[#allocation7 + $0x38] sm:$0xff]
    %v1242 = vld [vmem:[#allocation7 + $0x40] sm:$0xff]
    %v1243 = vld [vmem:[#allocation7 + $0x48] sm:$0xff]
    %v1244 = vld [vmem:[#allocation7 + $0x50] sm:$0xff]
    %v1245 = vld [vmem:[#allocation7 + $0x58] sm:$0xff]
    %v1246 = vld [vmem:[#allocation7 + $0x60] sm:$0xff]
    %v1247 = vld [vmem:[#allocation7 + $0x68] sm:$0xff]
    %v1248 = vld [vmem:[#allocation7 + $0x70] sm:$0xff]
    %v1249 = vld [vmem:[#allocation7 + $0x78] sm:$0xff]
    %v1250 = vld [vmem:[#allocation7 + $0x80] sm:$0xff]
    %v1251 = vld [vmem:[#allocation7 + $0x88] sm:$0xff]
    %v1252 = vld [vmem:[#allocation7 + $0x90] sm:$0xff]
    %v1253 = vld [vmem:[#allocation7 + $0x98] sm:$0xff]
    %v1254 = vld [vmem:[#allocation7 + $0xa0] sm:$0xff]
    %v1255 = vld [vmem:[#allocation7 + $0xa8] sm:$0xff]
    %v1256 = vld [vmem:[#allocation7 + $0xb0] sm:$0xff]
    %v1257 = vld [vmem:[#allocation7 + $0xb8] sm:$0xff]
    %v1258 = vld [vmem:[#allocation7 + $0xc0] sm:$0xff]
    %v1259 = vld [vmem:[#allocation7 + $0xc8] sm:$0xff]
    %v1260 = vld [vmem:[#allocation7 + $0xd0] sm:$0xff]
    %v1261 = vld [vmem:[#allocation7 + $0xd8] sm:$0xff]
    %v1262 = vld [vmem:[#allocation7 + $0xe0] sm:$0xff]
    %v1263 = vld [vmem:[#allocation7 + $0xe8] sm:$0xff]
    %v1264 = vld [vmem:[#allocation7 + $0xf0] sm:$0xff]
    %v1265 = vld [vmem:[#allocation7 + $0xf8] sm:$0xff]
    %v1266 = vld [vmem:[#allocation7 + $0x100] sm:$0xff]
    %v1267 = vld [vmem:[#allocation7 + $0x108] sm:$0xff]
    %v1268 = vld [vmem:[#allocation7 + $0x110] sm:$0xff]
    %v1269 = vld [vmem:[#allocation7 + $0x118] sm:$0xff]
    %v1270 = vld [vmem:[#allocation7 + $0x120] sm:$0xff]
    %v1271 = vld [vmem:[#allocation7 + $0x128] sm:$0xff]
    %v1272 = vld [vmem:[#allocation7 + $0x130] sm:$0xff]
    %v1273 = vld [vmem:[#allocation7 + $0x138] sm:$0xff]
    %v1274 = vld [vmem:[#allocation7 + $0x140] sm:$0xff]
    %v1275 = vld [vmem:[#allocation7 + $0x148] sm:$0xff]
    %v1276 = vld [vmem:[#allocation7 + $0x150] sm:$0xff]
    %v1277 = vld [vmem:[#allocation7 + $0x158] sm:$0xff]
    %v1278 = vld [vmem:[#allocation7 + $0x160] sm:$0xff]
    %v1279 = vld [vmem:[#allocation7 + $0x168] sm:$0xff]
    %v1280 = vld [vmem:[#allocation7 + $0x170] sm:$0xff]
    %v1281 = vld [vmem:[#allocation7 + $0x178] sm:$0xff]
    %v1282 = vld [vmem:[#allocation7 + $0x180] sm:$0xff]
    %v1283 = vld [vmem:[#allocation7 + $0x188] sm:$0xff]
    %v1284 = vld [vmem:[#allocation7 + $0x190] sm:$0xff]
    %v1285 = vld [vmem:[#allocation7 + $0x198] sm:$0xff]
    %v1286 = vld [vmem:[#allocation7 + $0x1a0] sm:$0xff]
    %v1287 = vld [vmem:[#allocation7 + $0x1a8] sm:$0xff]
    %v1288 = vld [vmem:[#allocation7 + $0x1b0] sm:$0xff]
    %v1289 = vld [vmem:[#allocation7 + $0x1b8] sm:$0xff]
    %v1290 = vld [vmem:[#allocation7 + $0x1c0] sm:$0xff]
    %v1291 = vld [vmem:[#allocation7 + $0x1c8] sm:$0xff]
    %v1292 = vld [vmem:[#allocation7 + $0x1d0] sm:$0xff]
    %v1293 = vld [vmem:[#allocation7 + $0x1d8] sm:$0xff]
    %v1294 = vld [vmem:[#allocation7 + $0x1e0] sm:$0xff]
    %v1295 = vld [vmem:[#allocation7 + $0x1e8] sm:$0xff]
    %v1296 = vld [vmem:[#allocation7 + $0x1f0] sm:$0xff]
    %v1297 = vld [vmem:[#allocation7 + $0x1f8] sm:$0xff]
    %1298 = vmatpush.msra.mxu0 %v1294
    %1299 = vmatpush.msra.mxu0 %v1290
    %1300 = vmatpush.msra.mxu0 %v1286
    %1301 = vmatpush.msra.mxu0 %v1282
    %1302 = vmatpush.msra.mxu0 %v1278
    %1303 = vmatpush.msra.mxu0 %v1274
    %1304 = vmatpush.msra.mxu0 %v1270
    %1305 = vmatpush.msra.mxu0 %v1266
    %1306 = vmatpush.msra.mxu0 %v1262
    %1307 = vmatpush.msra.mxu0 %v1258
    %1308 = vmatpush.msra.mxu0 %v1254
    %1309 = vmatpush.msra.mxu0 %v1250
    %1310 = vmatpush.msra.mxu0 %v1246
    %1311 = vmatpush.msra.mxu0 %v1242
    %1312 = vmatpush.msra.mxu0 %v1238
    %1313 = vmatpush.msra.mxu0 %v1234
    %1314 = vmatmul.f32.gmra.mxu0 %v1228
    %v1315 = vpop.f32.mrf.mxu0
    %v1316 = vadd.f32 0.0, %v1315
    %1317 = vdwg.mxu0
    %1318 = vmatpush.msra.mxu0 %v1295
    %1319 = vmatpush.msra.mxu0 %v1291
    %1320 = vmatpush.msra.mxu0 %v1287
    %1321 = vmatpush.msra.mxu0 %v1283
    %1322 = vmatpush.msra.mxu0 %v1279
    %1323 = vmatpush.msra.mxu0 %v1275
    %1324 = vmatpush.msra.mxu0 %v1271
    %1325 = vmatpush.msra.mxu0 %v1267
    %1326 = vmatpush.msra.mxu0 %v1263
    %1327 = vmatpush.msra.mxu0 %v1259
    %1328 = vmatpush.msra.mxu0 %v1255
    %1329 = vmatpush.msra.mxu0 %v1251
    %1330 = vmatpush.msra.mxu0 %v1247
    %1331 = vmatpush.msra.mxu0 %v1243
    %1332 = vmatpush.msra.mxu0 %v1239
    %1333 = vmatpush.msra.mxu0 %v1235
    %1334 = vmatmul.f32.gmra.mxu0 %v1228
    %v1335 = vpop.f32.mrf.mxu0
    %v1336 = vadd.f32 0.0, %v1335
    %1337 = vdwg.mxu0
    %1338 = vmatpush.msra.mxu0 %v1296
    %1339 = vmatpush.msra.mxu0 %v1292
    %1340 = vmatpush.msra.mxu0 %v1288
    %1341 = vmatpush.msra.mxu0 %v1284
    %1342 = vmatpush.msra.mxu0 %v1280
    %1343 = vmatpush.msra.mxu0 %v1276
    %1344 = vmatpush.msra.mxu0 %v1272
    %1345 = vmatpush.msra.mxu0 %v1268
    %1346 = vmatpush.msra.mxu0 %v1264
    %1347 = vmatpush.msra.mxu0 %v1260
    %1348 = vmatpush.msra.mxu0 %v1256
    %1349 = vmatpush.msra.mxu0 %v1252
    %1350 = vmatpush.msra.mxu0 %v1248
    %1351 = vmatpush.msra.mxu0 %v1244
    %1352 = vmatpush.msra.mxu0 %v1240
    %1353 = vmatpush.msra.mxu0 %v1236
    %1354 = vmatmul.f32.gmra.mxu0 %v1228
    %v1355 = vpop.f32.mrf.mxu0
    %v1356 = vadd.f32 0.0, %v1355
    %1357 = vdwg.mxu0
    %1358 = vmatpush.msra.mxu0 %v1297
    %1359 = vmatpush.msra.mxu0 %v1293
    %1360 = vmatpush.msra.mxu0 %v1289
    %1361 = vmatpush.msra.mxu0 %v1285
    %1362 = vmatpush.msra.mxu0 %v1281
    %1363 = vmatpush.msra.mxu0 %v1277
    %1364 = vmatpush.msra.mxu0 %v1273
    %1365 = vmatpush.msra.mxu0 %v1269
    %1366 = vmatpush.msra.mxu0 %v1265
    %1367 = vmatpush.msra.mxu0 %v1261
    %1368 = vmatpush.msra.mxu0 %v1257
    %1369 = vmatpush.msra.mxu0 %v1253
    %1370 = vmatpush.msra.mxu0 %v1249
    %1371 = vmatpush.msra.mxu0 %v1245
    %1372 = vmatpush.msra.mxu0 %v1241
    %1373 = vmatpush.msra.mxu0 %v1237
    %1374 = vmatmul.f32.gmra.mxu0 %v1228
    %v1375 = vpop.f32.mrf.mxu0
    %v1376 = vadd.f32 0.0, %v1375
    %1377 = vdwg.mxu0
    %v1378 = vadd.f32 %v1230, %v1316
    %v1379 = vadd.f32 %v1231, %v1336
    %v1380 = vadd.f32 %v1232, %v1356
    %v1381 = vadd.f32 %v1233, %v1376
    %v1382 = vxor.u32 %v1378, 2147483648
    %v1383 = vmul.f32 %v1382, 1.442695
    %v1384 = vpow.pop %v1383
    %v1385 = vadd.f32 %v1384, 1.0
    %v1386 = vrcp.pop %v1385
    %v1387 = vmul.f32 %v1385, %v1386
    %v1388 = vsub.f32 1.0, %v1387
    %v1389 = vmul.f32 %v1386, %v1388
    %v1390 = vadd.f32 %v1386, %v1389
    %vm1391 = vweird.f32 %v1385
    %vm1392 = vweird.f32 %v1386
    %vm1393 = vmor %vm1391, %vm1392
    %v1394 = vsel %vm1393, %v1386, %v1390
    %v1395 = vand.u32 2147483647, %v1385
    %vm1396 = vcmp.eq.f32.partialorder %v1395, 8.507059e+37
    %v1397 = vand.u32 %v1385, 2147483648
    %v1398 = vor.u32 1.1754944e-38, %v1397
    %v1399 = vsel %vm1396, %v1398, %v1394
    %v1400 = vmul.f32 1.0, %v1399
    %v1401 = vxor.u32 %v1379, 2147483648
    %v1402 = vmul.f32 %v1401, 1.442695
    %v1403 = vpow.pop %v1402
    %v1404 = vadd.f32 %v1403, 1.0
    %v1405 = vrcp.pop %v1404
    %v1406 = vmul.f32 %v1404, %v1405
    %v1407 = vsub.f32 1.0, %v1406
    %v1408 = vmul.f32 %v1405, %v1407
    %v1409 = vadd.f32 %v1405, %v1408
    %vm1410 = vweird.f32 %v1404
    %vm1411 = vweird.f32 %v1405
    %vm1412 = vmor %vm1410, %vm1411
    %v1413 = vsel %vm1412, %v1405, %v1409
    %v1414 = vand.u32 2147483647, %v1404
    %vm1415 = vcmp.eq.f32.partialorder %v1414, 8.507059e+37
    %v1416 = vand.u32 %v1404, 2147483648
    %v1417 = vor.u32 1.1754944e-38, %v1416
    %v1418 = vsel %vm1415, %v1417, %v1413
    %v1419 = vmul.f32 1.0, %v1418
    %v1420 = vtanh.pop %v1380
    %v1421 = vxor.u32 %v1381, 2147483648
    %v1422 = vmul.f32 %v1421, 1.442695
    %v1423 = vpow.pop %v1422
    %v1424 = vadd.f32 %v1423, 1.0
    %v1425 = vrcp.pop %v1424
    %v1426 = vmul.f32 %v1424, %v1425
    %v1427 = vsub.f32 1.0, %v1426
    %v1428 = vmul.f32 %v1425, %v1427
    %v1429 = vadd.f32 %v1425, %v1428
    %vm1430 = vweird.f32 %v1424
    %vm1431 = vweird.f32 %v1425
    %vm1432 = vmor %vm1430, %vm1431
    %v1433 = vsel %vm1432, %v1425, %v1429
    %v1434 = vand.u32 2147483647, %v1424
    %vm1435 = vcmp.eq.f32.partialorder %v1434, 8.507059e+37
    %v1436 = vand.u32 %v1424, 2147483648
    %v1437 = vor.u32 1.1754944e-38, %v1436
    %v1438 = vsel %vm1435, %v1437, %v1433
    %v1439 = vmul.f32 1.0, %v1438
    %v1440 = vmul.f32 %v1419, %v1226
    %v1441 = vmul.f32 %v1400, %v1420
    %v1442 = vadd.f32 %v1440, %v1441
    %v1443 = vtanh.pop %v1442
    %v1444 = vmul.f32 %v1439, %v1443
    %1445 = vst [vmem:[#allocation3 + $0x20] sm:$0xff] %v1444
    %v1446 = vld [vmem:[#allocation2 + $0xa0] sm:$0xff]
    %v1447 = vld [vmem:[#allocation2 + $0xa8] sm:$0xff]
    %v1448 = vld [vmem:[#allocation2 + $0xb0] sm:$0xff]
    %v1449 = vld [vmem:[#allocation2 + $0xb8] sm:$0xff]
    %v1450 = vld [vmem:[#allocation7] sm:$0xff]
    %v1451 = vld [vmem:[#allocation7 + $0x8] sm:$0xff]
    %v1452 = vld [vmem:[#allocation7 + $0x10] sm:$0xff]
    %v1453 = vld [vmem:[#allocation7 + $0x18] sm:$0xff]
    %v1454 = vld [vmem:[#allocation7 + $0x20] sm:$0xff]
    %v1455 = vld [vmem:[#allocation7 + $0x28] sm:$0xff]
    %v1456 = vld [vmem:[#allocation7 + $0x30] sm:$0xff]
    %v1457 = vld [vmem:[#allocation7 + $0x38] sm:$0xff]
    %v1458 = vld [vmem:[#allocation7 + $0x40] sm:$0xff]
    %v1459 = vld [vmem:[#allocation7 + $0x48] sm:$0xff]
    %v1460 = vld [vmem:[#allocation7 + $0x50] sm:$0xff]
    %v1461 = vld [vmem:[#allocation7 + $0x58] sm:$0xff]
    %v1462 = vld [vmem:[#allocation7 + $0x60] sm:$0xff]
    %v1463 = vld [vmem:[#allocation7 + $0x68] sm:$0xff]
    %v1464 = vld [vmem:[#allocation7 + $0x70] sm:$0xff]
    %v1465 = vld [vmem:[#allocation7 + $0x78] sm:$0xff]
    %v1466 = vld [vmem:[#allocation7 + $0x80] sm:$0xff]
    %v1467 = vld [vmem:[#allocation7 + $0x88] sm:$0xff]
    %v1468 = vld [vmem:[#allocation7 + $0x90] sm:$0xff]
    %v1469 = vld [vmem:[#allocation7 + $0x98] sm:$0xff]
    %v1470 = vld [vmem:[#allocation7 + $0xa0] sm:$0xff]
    %v1471 = vld [vmem:[#allocation7 + $0xa8] sm:$0xff]
    %v1472 = vld [vmem:[#allocation7 + $0xb0] sm:$0xff]
    %v1473 = vld [vmem:[#allocation7 + $0xb8] sm:$0xff]
    %v1474 = vld [vmem:[#allocation7 + $0xc0] sm:$0xff]
    %v1475 = vld [vmem:[#allocation7 + $0xc8] sm:$0xff]
    %v1476 = vld [vmem:[#allocation7 + $0xd0] sm:$0xff]
    %v1477 = vld [vmem:[#allocation7 + $0xd8] sm:$0xff]
    %v1478 = vld [vmem:[#allocation7 + $0xe0] sm:$0xff]
    %v1479 = vld [vmem:[#allocation7 + $0xe8] sm:$0xff]
    %v1480 = vld [vmem:[#allocation7 + $0xf0] sm:$0xff]
    %v1481 = vld [vmem:[#allocation7 + $0xf8] sm:$0xff]
    %v1482 = vld [vmem:[#allocation7 + $0x100] sm:$0xff]
    %v1483 = vld [vmem:[#allocation7 + $0x108] sm:$0xff]
    %v1484 = vld [vmem:[#allocation7 + $0x110] sm:$0xff]
    %v1485 = vld [vmem:[#allocation7 + $0x118] sm:$0xff]
    %v1486 = vld [vmem:[#allocation7 + $0x120] sm:$0xff]
    %v1487 = vld [vmem:[#allocation7 + $0x128] sm:$0xff]
    %v1488 = vld [vmem:[#allocation7 + $0x130] sm:$0xff]
    %v1489 = vld [vmem:[#allocation7 + $0x138] sm:$0xff]
    %v1490 = vld [vmem:[#allocation7 + $0x140] sm:$0xff]
    %v1491 = vld [vmem:[#allocation7 + $0x148] sm:$0xff]
    %v1492 = vld [vmem:[#allocation7 + $0x150] sm:$0xff]
    %v1493 = vld [vmem:[#allocation7 + $0x158] sm:$0xff]
    %v1494 = vld [vmem:[#allocation7 + $0x160] sm:$0xff]
    %v1495 = vld [vmem:[#allocation7 + $0x168] sm:$0xff]
    %v1496 = vld [vmem:[#allocation7 + $0x170] sm:$0xff]
    %v1497 = vld [vmem:[#allocation7 + $0x178] sm:$0xff]
    %v1498 = vld [vmem:[#allocation7 + $0x180] sm:$0xff]
    %v1499 = vld [vmem:[#allocation7 + $0x188] sm:$0xff]
    %v1500 = vld [vmem:[#allocation7 + $0x190] sm:$0xff]
    %v1501 = vld [vmem:[#allocation7 + $0x198] sm:$0xff]
    %v1502 = vld [vmem:[#allocation7 + $0x1a0] sm:$0xff]
    %v1503 = vld [vmem:[#allocation7 + $0x1a8] sm:$0xff]
    %v1504 = vld [vmem:[#allocation7 + $0x1b0] sm:$0xff]
    %v1505 = vld [vmem:[#allocation7 + $0x1b8] sm:$0xff]
    %v1506 = vld [vmem:[#allocation7 + $0x1c0] sm:$0xff]
    %v1507 = vld [vmem:[#allocation7 + $0x1c8] sm:$0xff]
    %v1508 = vld [vmem:[#allocation7 + $0x1d0] sm:$0xff]
    %v1509 = vld [vmem:[#allocation7 + $0x1d8] sm:$0xff]
    %v1510 = vld [vmem:[#allocation7 + $0x1e0] sm:$0xff]
    %v1511 = vld [vmem:[#allocation7 + $0x1e8] sm:$0xff]
    %v1512 = vld [vmem:[#allocation7 + $0x1f0] sm:$0xff]
    %v1513 = vld [vmem:[#allocation7 + $0x1f8] sm:$0xff]
    %1514 = vmatpush.msra.mxu0 %v1510
    %1515 = vmatpush.msra.mxu0 %v1506
    %1516 = vmatpush.msra.mxu0 %v1502
    %1517 = vmatpush.msra.mxu0 %v1498
    %1518 = vmatpush.msra.mxu0 %v1494
    %1519 = vmatpush.msra.mxu0 %v1490
    %1520 = vmatpush.msra.mxu0 %v1486
    %1521 = vmatpush.msra.mxu0 %v1482
    %1522 = vmatpush.msra.mxu0 %v1478
    %1523 = vmatpush.msra.mxu0 %v1474
    %1524 = vmatpush.msra.mxu0 %v1470
    %1525 = vmatpush.msra.mxu0 %v1466
    %1526 = vmatpush.msra.mxu0 %v1462
    %1527 = vmatpush.msra.mxu0 %v1458
    %1528 = vmatpush.msra.mxu0 %v1454
    %1529 = vmatpush.msra.mxu0 %v1450
    %1530 = vmatmul.f32.gmra.mxu0 %v1444
    %v1531 = vpop.f32.mrf.mxu0
    %v1532 = vadd.f32 0.0, %v1531
    %1533 = vdwg.mxu0
    %1534 = vmatpush.msra.mxu0 %v1511
    %1535 = vmatpush.msra.mxu0 %v1507
    %1536 = vmatpush.msra.mxu0 %v1503
    %1537 = vmatpush.msra.mxu0 %v1499
    %1538 = vmatpush.msra.mxu0 %v1495
    %1539 = vmatpush.msra.mxu0 %v1491
    %1540 = vmatpush.msra.mxu0 %v1487
    %1541 = vmatpush.msra.mxu0 %v1483
    %1542 = vmatpush.msra.mxu0 %v1479
    %1543 = vmatpush.msra.mxu0 %v1475
    %1544 = vmatpush.msra.mxu0 %v1471
    %1545 = vmatpush.msra.mxu0 %v1467
    %1546 = vmatpush.msra.mxu0 %v1463
    %1547 = vmatpush.msra.mxu0 %v1459
    %1548 = vmatpush.msra.mxu0 %v1455
    %1549 = vmatpush.msra.mxu0 %v1451
    %1550 = vmatmul.f32.gmra.mxu0 %v1444
    %v1551 = vpop.f32.mrf.mxu0
    %v1552 = vadd.f32 0.0, %v1551
    %1553 = vdwg.mxu0
    %1554 = vmatpush.msra.mxu0 %v1512
    %1555 = vmatpush.msra.mxu0 %v1508
    %1556 = vmatpush.msra.mxu0 %v1504
    %1557 = vmatpush.msra.mxu0 %v1500
    %1558 = vmatpush.msra.mxu0 %v1496
    %1559 = vmatpush.msra.mxu0 %v1492
    %1560 = vmatpush.msra.mxu0 %v1488
    %1561 = vmatpush.msra.mxu0 %v1484
    %1562 = vmatpush.msra.mxu0 %v1480
    %1563 = vmatpush.msra.mxu0 %v1476
    %1564 = vmatpush.msra.mxu0 %v1472
    %1565 = vmatpush.msra.mxu0 %v1468
    %1566 = vmatpush.msra.mxu0 %v1464
    %1567 = vmatpush.msra.mxu0 %v1460
    %1568 = vmatpush.msra.mxu0 %v1456
    %1569 = vmatpush.msra.mxu0 %v1452
    %1570 = vmatmul.f32.gmra.mxu0 %v1444
    %v1571 = vpop.f32.mrf.mxu0
    %v1572 = vadd.f32 0.0, %v1571
    %1573 = vdwg.mxu0
    %1574 = vmatpush.msra.mxu0 %v1513
    %1575 = vmatpush.msra.mxu0 %v1509
    %1576 = vmatpush.msra.mxu0 %v1505
    %1577 = vmatpush.msra.mxu0 %v1501
    %1578 = vmatpush.msra.mxu0 %v1497
    %1579 = vmatpush.msra.mxu0 %v1493
    %1580 = vmatpush.msra.mxu0 %v1489
    %1581 = vmatpush.msra.mxu0 %v1485
    %1582 = vmatpush.msra.mxu0 %v1481
    %1583 = vmatpush.msra.mxu0 %v1477
    %1584 = vmatpush.msra.mxu0 %v1473
    %1585 = vmatpush.msra.mxu0 %v1469
    %1586 = vmatpush.msra.mxu0 %v1465
    %1587 = vmatpush.msra.mxu0 %v1461
    %1588 = vmatpush.msra.mxu0 %v1457
    %1589 = vmatpush.msra.mxu0 %v1453
    %1590 = vmatmul.f32.gmra.mxu0 %v1444
    %v1591 = vpop.f32.mrf.mxu0
    %v1592 = vadd.f32 0.0, %v1591
    %1593 = vdwg.mxu0
    %v1594 = vadd.f32 %v1446, %v1532
    %v1595 = vadd.f32 %v1447, %v1552
    %v1596 = vadd.f32 %v1448, %v1572
    %v1597 = vadd.f32 %v1449, %v1592
    %v1598 = vxor.u32 %v1594, 2147483648
    %v1599 = vmul.f32 %v1598, 1.442695
    %v1600 = vpow.pop %v1599
    %v1601 = vadd.f32 %v1600, 1.0
    %v1602 = vrcp.pop %v1601
    %v1603 = vmul.f32 %v1601, %v1602
    %v1604 = vsub.f32 1.0, %v1603
    %v1605 = vmul.f32 %v1602, %v1604
    %v1606 = vadd.f32 %v1602, %v1605
    %vm1607 = vweird.f32 %v1601
    %vm1608 = vweird.f32 %v1602
    %vm1609 = vmor %vm1607, %vm1608
    %v1610 = vsel %vm1609, %v1602, %v1606
    %v1611 = vand.u32 2147483647, %v1601
    %vm1612 = vcmp.eq.f32.partialorder %v1611, 8.507059e+37
    %v1613 = vand.u32 %v1601, 2147483648
    %v1614 = vor.u32 1.1754944e-38, %v1613
    %v1615 = vsel %vm1612, %v1614, %v1610
    %v1616 = vmul.f32 1.0, %v1615
    %v1617 = vxor.u32 %v1595, 2147483648
    %v1618 = vmul.f32 %v1617, 1.442695
    %v1619 = vpow.pop %v1618
    %v1620 = vadd.f32 %v1619, 1.0
    %v1621 = vrcp.pop %v1620
    %v1622 = vmul.f32 %v1620, %v1621
    %v1623 = vsub.f32 1.0, %v1622
    %v1624 = vmul.f32 %v1621, %v1623
    %v1625 = vadd.f32 %v1621, %v1624
    %vm1626 = vweird.f32 %v1620
    %vm1627 = vweird.f32 %v1621
    %vm1628 = vmor %vm1626, %vm1627
    %v1629 = vsel %vm1628, %v1621, %v1625
    %v1630 = vand.u32 2147483647, %v1620
    %vm1631 = vcmp.eq.f32.partialorder %v1630, 8.507059e+37
    %v1632 = vand.u32 %v1620, 2147483648
    %v1633 = vor.u32 1.1754944e-38, %v1632
    %v1634 = vsel %vm1631, %v1633, %v1629
    %v1635 = vmul.f32 1.0, %v1634
    %v1636 = vtanh.pop %v1596
    %v1637 = vxor.u32 %v1597, 2147483648
    %v1638 = vmul.f32 %v1637, 1.442695
    %v1639 = vpow.pop %v1638
    %v1640 = vadd.f32 %v1639, 1.0
    %v1641 = vrcp.pop %v1640
    %v1642 = vmul.f32 %v1640, %v1641
    %v1643 = vsub.f32 1.0, %v1642
    %v1644 = vmul.f32 %v1641, %v1643
    %v1645 = vadd.f32 %v1641, %v1644
    %vm1646 = vweird.f32 %v1640
    %vm1647 = vweird.f32 %v1641
    %vm1648 = vmor %vm1646, %vm1647
    %v1649 = vsel %vm1648, %v1641, %v1645
    %v1650 = vand.u32 2147483647, %v1640
    %vm1651 = vcmp.eq.f32.partialorder %v1650, 8.507059e+37
    %v1652 = vand.u32 %v1640, 2147483648
    %v1653 = vor.u32 1.1754944e-38, %v1652
    %v1654 = vsel %vm1651, %v1653, %v1649
    %v1655 = vmul.f32 1.0, %v1654
    %v1656 = vmul.f32 %v1635, %v1442
    %v1657 = vmul.f32 %v1616, %v1636
    %v1658 = vadd.f32 %v1656, %v1657
    %v1659 = vtanh.pop %v1658
    %v1660 = vmul.f32 %v1655, %v1659
    %1661 = vst [vmem:[#allocation3 + $0x28] sm:$0xff] %v1660
    %v1662 = vld [vmem:[#allocation2 + $0xc0] sm:$0xff]
    %v1663 = vld [vmem:[#allocation2 + $0xc8] sm:$0xff]
    %v1664 = vld [vmem:[#allocation2 + $0xd0] sm:$0xff]
    %v1665 = vld [vmem:[#allocation2 + $0xd8] sm:$0xff]
    %v1666 = vld [vmem:[#allocation7] sm:$0xff]
    %v1667 = vld [vmem:[#allocation7 + $0x8] sm:$0xff]
    %v1668 = vld [vmem:[#allocation7 + $0x10] sm:$0xff]
    %v1669 = vld [vmem:[#allocation7 + $0x18] sm:$0xff]
    %v1670 = vld [vmem:[#allocation7 + $0x20] sm:$0xff]
    %v1671 = vld [vmem:[#allocation7 + $0x28] sm:$0xff]
    %v1672 = vld [vmem:[#allocation7 + $0x30] sm:$0xff]
    %v1673 = vld [vmem:[#allocation7 + $0x38] sm:$0xff]
    %v1674 = vld [vmem:[#allocation7 + $0x40] sm:$0xff]
    %v1675 = vld [vmem:[#allocation7 + $0x48] sm:$0xff]
    %v1676 = vld [vmem:[#allocation7 + $0x50] sm:$0xff]
    %v1677 = vld [vmem:[#allocation7 + $0x58] sm:$0xff]
    %v1678 = vld [vmem:[#allocation7 + $0x60] sm:$0xff]
    %v1679 = vld [vmem:[#allocation7 + $0x68] sm:$0xff]
    %v1680 = vld [vmem:[#allocation7 + $0x70] sm:$0xff]
    %v1681 = vld [vmem:[#allocation7 + $0x78] sm:$0xff]
    %v1682 = vld [vmem:[#allocation7 + $0x80] sm:$0xff]
    %v1683 = vld [vmem:[#allocation7 + $0x88] sm:$0xff]
    %v1684 = vld [vmem:[#allocation7 + $0x90] sm:$0xff]
    %v1685 = vld [vmem:[#allocation7 + $0x98] sm:$0xff]
    %v1686 = vld [vmem:[#allocation7 + $0xa0] sm:$0xff]
    %v1687 = vld [vmem:[#allocation7 + $0xa8] sm:$0xff]
    %v1688 = vld [vmem:[#allocation7 + $0xb0] sm:$0xff]
    %v1689 = vld [vmem:[#allocation7 + $0xb8] sm:$0xff]
    %v1690 = vld [vmem:[#allocation7 + $0xc0] sm:$0xff]
    %v1691 = vld [vmem:[#allocation7 + $0xc8] sm:$0xff]
    %v1692 = vld [vmem:[#allocation7 + $0xd0] sm:$0xff]
    %v1693 = vld [vmem:[#allocation7 + $0xd8] sm:$0xff]
    %v1694 = vld [vmem:[#allocation7 + $0xe0] sm:$0xff]
    %v1695 = vld [vmem:[#allocation7 + $0xe8] sm:$0xff]
    %v1696 = vld [vmem:[#allocation7 + $0xf0] sm:$0xff]
    %v1697 = vld [vmem:[#allocation7 + $0xf8] sm:$0xff]
    %v1698 = vld [vmem:[#allocation7 + $0x100] sm:$0xff]
    %v1699 = vld [vmem:[#allocation7 + $0x108] sm:$0xff]
    %v1700 = vld [vmem:[#allocation7 + $0x110] sm:$0xff]
    %v1701 = vld [vmem:[#allocation7 + $0x118] sm:$0xff]
    %v1702 = vld [vmem:[#allocation7 + $0x120] sm:$0xff]
    %v1703 = vld [vmem:[#allocation7 + $0x128] sm:$0xff]
    %v1704 = vld [vmem:[#allocation7 + $0x130] sm:$0xff]
    %v1705 = vld [vmem:[#allocation7 + $0x138] sm:$0xff]
    %v1706 = vld [vmem:[#allocation7 + $0x140] sm:$0xff]
    %v1707 = vld [vmem:[#allocation7 + $0x148] sm:$0xff]
    %v1708 = vld [vmem:[#allocation7 + $0x150] sm:$0xff]
    %v1709 = vld [vmem:[#allocation7 + $0x158] sm:$0xff]
    %v1710 = vld [vmem:[#allocation7 + $0x160] sm:$0xff]
    %v1711 = vld [vmem:[#allocation7 + $0x168] sm:$0xff]
    %v1712 = vld [vmem:[#allocation7 + $0x170] sm:$0xff]
    %v1713 = vld [vmem:[#allocation7 + $0x178] sm:$0xff]
    %v1714 = vld [vmem:[#allocation7 + $0x180] sm:$0xff]
    %v1715 = vld [vmem:[#allocation7 + $0x188] sm:$0xff]
    %v1716 = vld [vmem:[#allocation7 + $0x190] sm:$0xff]
    %v1717 = vld [vmem:[#allocation7 + $0x198] sm:$0xff]
    %v1718 = vld [vmem:[#allocation7 + $0x1a0] sm:$0xff]
    %v1719 = vld [vmem:[#allocation7 + $0x1a8] sm:$0xff]
    %v1720 = vld [vmem:[#allocation7 + $0x1b0] sm:$0xff]
    %v1721 = vld [vmem:[#allocation7 + $0x1b8] sm:$0xff]
    %v1722 = vld [vmem:[#allocation7 + $0x1c0] sm:$0xff]
    %v1723 = vld [vmem:[#allocation7 + $0x1c8] sm:$0xff]
    %v1724 = vld [vmem:[#allocation7 + $0x1d0] sm:$0xff]
    %v1725 = vld [vmem:[#allocation7 + $0x1d8] sm:$0xff]
    %v1726 = vld [vmem:[#allocation7 + $0x1e0] sm:$0xff]
    %v1727 = vld [vmem:[#allocation7 + $0x1e8] sm:$0xff]
    %v1728 = vld [vmem:[#allocation7 + $0x1f0] sm:$0xff]
    %v1729 = vld [vmem:[#allocation7 + $0x1f8] sm:$0xff]
    %1730 = vmatpush.msra.mxu0 %v1726
    %1731 = vmatpush.msra.mxu0 %v1722
    %1732 = vmatpush.msra.mxu0 %v1718
    %1733 = vmatpush.msra.mxu0 %v1714
    %1734 = vmatpush.msra.mxu0 %v1710
    %1735 = vmatpush.msra.mxu0 %v1706
    %1736 = vmatpush.msra.mxu0 %v1702
    %1737 = vmatpush.msra.mxu0 %v1698
    %1738 = vmatpush.msra.mxu0 %v1694
    %1739 = vmatpush.msra.mxu0 %v1690
    %1740 = vmatpush.msra.mxu0 %v1686
    %1741 = vmatpush.msra.mxu0 %v1682
    %1742 = vmatpush.msra.mxu0 %v1678
    %1743 = vmatpush.msra.mxu0 %v1674
    %1744 = vmatpush.msra.mxu0 %v1670
    %1745 = vmatpush.msra.mxu0 %v1666
    %1746 = vmatmul.f32.gmra.mxu0 %v1660
    %v1747 = vpop.f32.mrf.mxu0
    %v1748 = vadd.f32 0.0, %v1747
    %1749 = vdwg.mxu0
    %1750 = vmatpush.msra.mxu0 %v1727
    %1751 = vmatpush.msra.mxu0 %v1723
    %1752 = vmatpush.msra.mxu0 %v1719
    %1753 = vmatpush.msra.mxu0 %v1715
    %1754 = vmatpush.msra.mxu0 %v1711
    %1755 = vmatpush.msra.mxu0 %v1707
    %1756 = vmatpush.msra.mxu0 %v1703
    %1757 = vmatpush.msra.mxu0 %v1699
    %1758 = vmatpush.msra.mxu0 %v1695
    %1759 = vmatpush.msra.mxu0 %v1691
    %1760 = vmatpush.msra.mxu0 %v1687
    %1761 = vmatpush.msra.mxu0 %v1683
    %1762 = vmatpush.msra.mxu0 %v1679
    %1763 = vmatpush.msra.mxu0 %v1675
    %1764 = vmatpush.msra.mxu0 %v1671
    %1765 = vmatpush.msra.mxu0 %v1667
    %1766 = vmatmul.f32.gmra.mxu0 %v1660
    %v1767 = vpop.f32.mrf.mxu0
    %v1768 = vadd.f32 0.0, %v1767
    %1769 = vdwg.mxu0
    %1770 = vmatpush.msra.mxu0 %v1728
    %1771 = vmatpush.msra.mxu0 %v1724
    %1772 = vmatpush.msra.mxu0 %v1720
    %1773 = vmatpush.msra.mxu0 %v1716
    %1774 = vmatpush.msra.mxu0 %v1712
    %1775 = vmatpush.msra.mxu0 %v1708
    %1776 = vmatpush.msra.mxu0 %v1704
    %1777 = vmatpush.msra.mxu0 %v1700
    %1778 = vmatpush.msra.mxu0 %v1696
    %1779 = vmatpush.msra.mxu0 %v1692
    %1780 = vmatpush.msra.mxu0 %v1688
    %1781 = vmatpush.msra.mxu0 %v1684
    %1782 = vmatpush.msra.mxu0 %v1680
    %1783 = vmatpush.msra.mxu0 %v1676
    %1784 = vmatpush.msra.mxu0 %v1672
    %1785 = vmatpush.msra.mxu0 %v1668
    %1786 = vmatmul.f32.gmra.mxu0 %v1660
    %v1787 = vpop.f32.mrf.mxu0
    %v1788 = vadd.f32 0.0, %v1787
    %1789 = vdwg.mxu0
    %1790 = vmatpush.msra.mxu0 %v1729
    %1791 = vmatpush.msra.mxu0 %v1725
    %1792 = vmatpush.msra.mxu0 %v1721
    %1793 = vmatpush.msra.mxu0 %v1717
    %1794 = vmatpush.msra.mxu0 %v1713
    %1795 = vmatpush.msra.mxu0 %v1709
    %1796 = vmatpush.msra.mxu0 %v1705
    %1797 = vmatpush.msra.mxu0 %v1701
    %1798 = vmatpush.msra.mxu0 %v1697
    %1799 = vmatpush.msra.mxu0 %v1693
    %1800 = vmatpush.msra.mxu0 %v1689
    %1801 = vmatpush.msra.mxu0 %v1685
    %1802 = vmatpush.msra.mxu0 %v1681
    %1803 = vmatpush.msra.mxu0 %v1677
    %1804 = vmatpush.msra.mxu0 %v1673
    %1805 = vmatpush.msra.mxu0 %v1669
    %1806 = vmatmul.f32.gmra.mxu0 %v1660
    %v1807 = vpop.f32.mrf.mxu0
    %v1808 = vadd.f32 0.0, %v1807
    %1809 = vdwg.mxu0
    %v1810 = vadd.f32 %v1662, %v1748
    %v1811 = vadd.f32 %v1663, %v1768
    %v1812 = vadd.f32 %v1664, %v1788
    %v1813 = vadd.f32 %v1665, %v1808
    %v1814 = vxor.u32 %v1810, 2147483648
    %v1815 = vmul.f32 %v1814, 1.442695
    %v1816 = vpow.pop %v1815
    %v1817 = vadd.f32 %v1816, 1.0
    %v1818 = vrcp.pop %v1817
    %v1819 = vmul.f32 %v1817, %v1818
    %v1820 = vsub.f32 1.0, %v1819
    %v1821 = vmul.f32 %v1818, %v1820
    %v1822 = vadd.f32 %v1818, %v1821
    %vm1823 = vweird.f32 %v1817
    %vm1824 = vweird.f32 %v1818
    %vm1825 = vmor %vm1823, %vm1824
    %v1826 = vsel %vm1825, %v1818, %v1822
    %v1827 = vand.u32 2147483647, %v1817
    %vm1828 = vcmp.eq.f32.partialorder %v1827, 8.507059e+37
    %v1829 = vand.u32 %v1817, 2147483648
    %v1830 = vor.u32 1.1754944e-38, %v1829
    %v1831 = vsel %vm1828, %v1830, %v1826
    %v1832 = vmul.f32 1.0, %v1831
    %v1833 = vxor.u32 %v1811, 2147483648
    %v1834 = vmul.f32 %v1833, 1.442695
    %v1835 = vpow.pop %v1834
    %v1836 = vadd.f32 %v1835, 1.0
    %v1837 = vrcp.pop %v1836
    %v1838 = vmul.f32 %v1836, %v1837
    %v1839 = vsub.f32 1.0, %v1838
    %v1840 = vmul.f32 %v1837, %v1839
    %v1841 = vadd.f32 %v1837, %v1840
    %vm1842 = vweird.f32 %v1836
    %vm1843 = vweird.f32 %v1837
    %vm1844 = vmor %vm1842, %vm1843
    %v1845 = vsel %vm1844, %v1837, %v1841
    %v1846 = vand.u32 2147483647, %v1836
    %vm1847 = vcmp.eq.f32.partialorder %v1846, 8.507059e+37
    %v1848 = vand.u32 %v1836, 2147483648
    %v1849 = vor.u32 1.1754944e-38, %v1848
    %v1850 = vsel %vm1847, %v1849, %v1845
    %v1851 = vmul.f32 1.0, %v1850
    %v1852 = vtanh.pop %v1812
    %v1853 = vxor.u32 %v1813, 2147483648
    %v1854 = vmul.f32 %v1853, 1.442695
    %v1855 = vpow.pop %v1854
    %v1856 = vadd.f32 %v1855, 1.0
    %v1857 = vrcp.pop %v1856
    %v1858 = vmul.f32 %v1856, %v1857
    %v1859 = vsub.f32 1.0, %v1858
    %v1860 = vmul.f32 %v1857, %v1859
    %v1861 = vadd.f32 %v1857, %v1860
    %vm1862 = vweird.f32 %v1856
    %vm1863 = vweird.f32 %v1857
    %vm1864 = vmor %vm1862, %vm1863
    %v1865 = vsel %vm1864, %v1857, %v1861
    %v1866 = vand.u32 2147483647, %v1856
    %vm1867 = vcmp.eq.f32.partialorder %v1866, 8.507059e+37
    %v1868 = vand.u32 %v1856, 2147483648
    %v1869 = vor.u32 1.1754944e-38, %v1868
    %v1870 = vsel %vm1867, %v1869, %v1865
    %v1871 = vmul.f32 1.0, %v1870
    %v1872 = vmul.f32 %v1851, %v1658
    %v1873 = vmul.f32 %v1832, %v1852
    %v1874 = vadd.f32 %v1872, %v1873
    %v1875 = vtanh.pop %v1874
    %v1876 = vmul.f32 %v1871, %v1875
    %1877 = vst [vmem:[#allocation3 + $0x30] sm:$0xff] %v1876
    %v1878 = vld [vmem:[#allocation2 + $0xe0] sm:$0xff]
    %v1879 = vld [vmem:[#allocation2 + $0xe8] sm:$0xff]
    %v1880 = vld [vmem:[#allocation2 + $0xf0] sm:$0xff]
    %v1881 = vld [vmem:[#allocation2 + $0xf8] sm:$0xff]
    %v1882 = vld [vmem:[#allocation7] sm:$0xff]
    %v1883 = vld [vmem:[#allocation7 + $0x8] sm:$0xff]
    %v1884 = vld [vmem:[#allocation7 + $0x10] sm:$0xff]
    %v1885 = vld [vmem:[#allocation7 + $0x18] sm:$0xff]
    %v1886 = vld [vmem:[#allocation7 + $0x20] sm:$0xff]
    %v1887 = vld [vmem:[#allocation7 + $0x28] sm:$0xff]
    %v1888 = vld [vmem:[#allocation7 + $0x30] sm:$0xff]
    %v1889 = vld [vmem:[#allocation7 + $0x38] sm:$0xff]
    %v1890 = vld [vmem:[#allocation7 + $0x40] sm:$0xff]
    %v1891 = vld [vmem:[#allocation7 + $0x48] sm:$0xff]
    %v1892 = vld [vmem:[#allocation7 + $0x50] sm:$0xff]
    %v1893 = vld [vmem:[#allocation7 + $0x58] sm:$0xff]
    %v1894 = vld [vmem:[#allocation7 + $0x60] sm:$0xff]
    %v1895 = vld [vmem:[#allocation7 + $0x68] sm:$0xff]
    %v1896 = vld [vmem:[#allocation7 + $0x70] sm:$0xff]
    %v1897 = vld [vmem:[#allocation7 + $0x78] sm:$0xff]
    %v1898 = vld [vmem:[#allocation7 + $0x80] sm:$0xff]
    %v1899 = vld [vmem:[#allocation7 + $0x88] sm:$0xff]
    %v1900 = vld [vmem:[#allocation7 + $0x90] sm:$0xff]
    %v1901 = vld [vmem:[#allocation7 + $0x98] sm:$0xff]
    %v1902 = vld [vmem:[#allocation7 + $0xa0] sm:$0xff]
    %v1903 = vld [vmem:[#allocation7 + $0xa8] sm:$0xff]
    %v1904 = vld [vmem:[#allocation7 + $0xb0] sm:$0xff]
    %v1905 = vld [vmem:[#allocation7 + $0xb8] sm:$0xff]
    %v1906 = vld [vmem:[#allocation7 + $0xc0] sm:$0xff]
    %v1907 = vld [vmem:[#allocation7 + $0xc8] sm:$0xff]
    %v1908 = vld [vmem:[#allocation7 + $0xd0] sm:$0xff]
    %v1909 = vld [vmem:[#allocation7 + $0xd8] sm:$0xff]
    %v1910 = vld [vmem:[#allocation7 + $0xe0] sm:$0xff]
    %v1911 = vld [vmem:[#allocation7 + $0xe8] sm:$0xff]
    %v1912 = vld [vmem:[#allocation7 + $0xf0] sm:$0xff]
    %v1913 = vld [vmem:[#allocation7 + $0xf8] sm:$0xff]
    %v1914 = vld [vmem:[#allocation7 + $0x100] sm:$0xff]
    %v1915 = vld [vmem:[#allocation7 + $0x108] sm:$0xff]
    %v1916 = vld [vmem:[#allocation7 + $0x110] sm:$0xff]
    %v1917 = vld [vmem:[#allocation7 + $0x118] sm:$0xff]
    %v1918 = vld [vmem:[#allocation7 + $0x120] sm:$0xff]
    %v1919 = vld [vmem:[#allocation7 + $0x128] sm:$0xff]
    %v1920 = vld [vmem:[#allocation7 + $0x130] sm:$0xff]
    %v1921 = vld [vmem:[#allocation7 + $0x138] sm:$0xff]
    %v1922 = vld [vmem:[#allocation7 + $0x140] sm:$0xff]
    %v1923 = vld [vmem:[#allocation7 + $0x148] sm:$0xff]
    %v1924 = vld [vmem:[#allocation7 + $0x150] sm:$0xff]
    %v1925 = vld [vmem:[#allocation7 + $0x158] sm:$0xff]
    %v1926 = vld [vmem:[#allocation7 + $0x160] sm:$0xff]
    %v1927 = vld [vmem:[#allocation7 + $0x168] sm:$0xff]
    %v1928 = vld [vmem:[#allocation7 + $0x170] sm:$0xff]
    %v1929 = vld [vmem:[#allocation7 + $0x178] sm:$0xff]
    %v1930 = vld [vmem:[#allocation7 + $0x180] sm:$0xff]
    %v1931 = vld [vmem:[#allocation7 + $0x188] sm:$0xff]
    %v1932 = vld [vmem:[#allocation7 + $0x190] sm:$0xff]
    %v1933 = vld [vmem:[#allocation7 + $0x198] sm:$0xff]
    %v1934 = vld [vmem:[#allocation7 + $0x1a0] sm:$0xff]
    %v1935 = vld [vmem:[#allocation7 + $0x1a8] sm:$0xff]
    %v1936 = vld [vmem:[#allocation7 + $0x1b0] sm:$0xff]
    %v1937 = vld [vmem:[#allocation7 + $0x1b8] sm:$0xff]
    %v1938 = vld [vmem:[#allocation7 + $0x1c0] sm:$0xff]
    %v1939 = vld [vmem:[#allocation7 + $0x1c8] sm:$0xff]
    %v1940 = vld [vmem:[#allocation7 + $0x1d0] sm:$0xff]
    %v1941 = vld [vmem:[#allocation7 + $0x1d8] sm:$0xff]
    %v1942 = vld [vmem:[#allocation7 + $0x1e0] sm:$0xff]
    %v1943 = vld [vmem:[#allocation7 + $0x1e8] sm:$0xff]
    %v1944 = vld [vmem:[#allocation7 + $0x1f0] sm:$0xff]
    %v1945 = vld [vmem:[#allocation7 + $0x1f8] sm:$0xff]
    %1946 = vmatpush.msra.mxu0 %v1942
    %1947 = vmatpush.msra.mxu0 %v1938
    %1948 = vmatpush.msra.mxu0 %v1934
    %1949 = vmatpush.msra.mxu0 %v1930
    %1950 = vmatpush.msra.mxu0 %v1926
    %1951 = vmatpush.msra.mxu0 %v1922
    %1952 = vmatpush.msra.mxu0 %v1918
    %1953 = vmatpush.msra.mxu0 %v1914
    %1954 = vmatpush.msra.mxu0 %v1910
    %1955 = vmatpush.msra.mxu0 %v1906
    %1956 = vmatpush.msra.mxu0 %v1902
    %1957 = vmatpush.msra.mxu0 %v1898
    %1958 = vmatpush.msra.mxu0 %v1894
    %1959 = vmatpush.msra.mxu0 %v1890
    %1960 = vmatpush.msra.mxu0 %v1886
    %1961 = vmatpush.msra.mxu0 %v1882
    %1962 = vmatmul.f32.gmra.mxu0 %v1876
    %v1963 = vpop.f32.mrf.mxu0
    %v1964 = vadd.f32 0.0, %v1963
    %1965 = vdwg.mxu0
    %1966 = vmatpush.msra.mxu0 %v1943
    %1967 = vmatpush.msra.mxu0 %v1939
    %1968 = vmatpush.msra.mxu0 %v1935
    %1969 = vmatpush.msra.mxu0 %v1931
    %1970 = vmatpush.msra.mxu0 %v1927
    %1971 = vmatpush.msra.mxu0 %v1923
    %1972 = vmatpush.msra.mxu0 %v1919
    %1973 = vmatpush.msra.mxu0 %v1915
    %1974 = vmatpush.msra.mxu0 %v1911
    %1975 = vmatpush.msra.mxu0 %v1907
    %1976 = vmatpush.msra.mxu0 %v1903
    %1977 = vmatpush.msra.mxu0 %v1899
    %1978 = vmatpush.msra.mxu0 %v1895
    %1979 = vmatpush.msra.mxu0 %v1891
    %1980 = vmatpush.msra.mxu0 %v1887
    %1981 = vmatpush.msra.mxu0 %v1883
    %1982 = vmatmul.f32.gmra.mxu0 %v1876
    %v1983 = vpop.f32.mrf.mxu0
    %v1984 = vadd.f32 0.0, %v1983
    %1985 = vdwg.mxu0
    %1986 = vmatpush.msra.mxu0 %v1944
    %1987 = vmatpush.msra.mxu0 %v1940
    %1988 = vmatpush.msra.mxu0 %v1936
    %1989 = vmatpush.msra.mxu0 %v1932
    %1990 = vmatpush.msra.mxu0 %v1928
    %1991 = vmatpush.msra.mxu0 %v1924
    %1992 = vmatpush.msra.mxu0 %v1920
    %1993 = vmatpush.msra.mxu0 %v1916
    %1994 = vmatpush.msra.mxu0 %v1912
    %1995 = vmatpush.msra.mxu0 %v1908
    %1996 = vmatpush.msra.mxu0 %v1904
    %1997 = vmatpush.msra.mxu0 %v1900
    %1998 = vmatpush.msra.mxu0 %v1896
    %1999 = vmatpush.msra.mxu0 %v1892
    %2000 = vmatpush.msra.mxu0 %v1888
    %2001 = vmatpush.msra.mxu0 %v1884
    %2002 = vmatmul.f32.gmra.mxu0 %v1876
    %v2003 = vpop.f32.mrf.mxu0
    %v2004 = vadd.f32 0.0, %v2003
    %2005 = vdwg.mxu0
    %2006 = vmatpush.msra.mxu0 %v1945
    %2007 = vmatpush.msra.mxu0 %v1941
    %2008 = vmatpush.msra.mxu0 %v1937
    %2009 = vmatpush.msra.mxu0 %v1933
    %2010 = vmatpush.msra.mxu0 %v1929
    %2011 = vmatpush.msra.mxu0 %v1925
    %2012 = vmatpush.msra.mxu0 %v1921
    %2013 = vmatpush.msra.mxu0 %v1917
    %2014 = vmatpush.msra.mxu0 %v1913
    %2015 = vmatpush.msra.mxu0 %v1909
    %2016 = vmatpush.msra.mxu0 %v1905
    %2017 = vmatpush.msra.mxu0 %v1901
    %2018 = vmatpush.msra.mxu0 %v1897
    %2019 = vmatpush.msra.mxu0 %v1893
    %2020 = vmatpush.msra.mxu0 %v1889
    %2021 = vmatpush.msra.mxu0 %v1885
    %2022 = vmatmul.f32.gmra.mxu0 %v1876
    %v2023 = vpop.f32.mrf.mxu0
    %v2024 = vadd.f32 0.0, %v2023
    %2025 = vdwg.mxu0
    %v2026 = vadd.f32 %v1878, %v1964
    %v2027 = vadd.f32 %v1879, %v1984
    %v2028 = vadd.f32 %v1880, %v2004
    %v2029 = vadd.f32 %v1881, %v2024
    %v2030 = vxor.u32 %v2026, 2147483648
    %v2031 = vmul.f32 %v2030, 1.442695
    %v2032 = vpow.pop %v2031
    %v2033 = vadd.f32 %v2032, 1.0
    %v2034 = vrcp.pop %v2033
    %v2035 = vmul.f32 %v2033, %v2034
    %v2036 = vsub.f32 1.0, %v2035
    %v2037 = vmul.f32 %v2034, %v2036
    %v2038 = vadd.f32 %v2034, %v2037
    %vm2039 = vweird.f32 %v2033
    %vm2040 = vweird.f32 %v2034
    %vm2041 = vmor %vm2039, %vm2040
    %v2042 = vsel %vm2041, %v2034, %v2038
    %v2043 = vand.u32 2147483647, %v2033
    %vm2044 = vcmp.eq.f32.partialorder %v2043, 8.507059e+37
    %v2045 = vand.u32 %v2033, 2147483648
    %v2046 = vor.u32 1.1754944e-38, %v2045
    %v2047 = vsel %vm2044, %v2046, %v2042
    %v2048 = vmul.f32 1.0, %v2047
    %v2049 = vxor.u32 %v2027, 2147483648
    %v2050 = vmul.f32 %v2049, 1.442695
    %v2051 = vpow.pop %v2050
    %v2052 = vadd.f32 %v2051, 1.0
    %v2053 = vrcp.pop %v2052
    %v2054 = vmul.f32 %v2052, %v2053
    %v2055 = vsub.f32 1.0, %v2054
    %v2056 = vmul.f32 %v2053, %v2055
    %v2057 = vadd.f32 %v2053, %v2056
    %vm2058 = vweird.f32 %v2052
    %vm2059 = vweird.f32 %v2053
    %vm2060 = vmor %vm2058, %vm2059
    %v2061 = vsel %vm2060, %v2053, %v2057
    %v2062 = vand.u32 2147483647, %v2052
    %vm2063 = vcmp.eq.f32.partialorder %v2062, 8.507059e+37
    %v2064 = vand.u32 %v2052, 2147483648
    %v2065 = vor.u32 1.1754944e-38, %v2064
    %v2066 = vsel %vm2063, %v2065, %v2061
    %v2067 = vmul.f32 1.0, %v2066
    %v2068 = vtanh.pop %v2028
    %v2069 = vxor.u32 %v2029, 2147483648
    %v2070 = vmul.f32 %v2069, 1.442695
    %v2071 = vpow.pop %v2070
    %v2072 = vadd.f32 %v2071, 1.0
    %v2073 = vrcp.pop %v2072
    %v2074 = vmul.f32 %v2072, %v2073
    %v2075 = vsub.f32 1.0, %v2074
    %v2076 = vmul.f32 %v2073, %v2075
    %v2077 = vadd.f32 %v2073, %v2076
    %vm2078 = vweird.f32 %v2072
    %vm2079 = vweird.f32 %v2073
    %vm2080 = vmor %vm2078, %vm2079
    %v2081 = vsel %vm2080, %v2073, %v2077
    %v2082 = vand.u32 2147483647, %v2072
    %vm2083 = vcmp.eq.f32.partialorder %v2082, 8.507059e+37
    %v2084 = vand.u32 %v2072, 2147483648
    %v2085 = vor.u32 1.1754944e-38, %v2084
    %v2086 = vsel %vm2083, %v2085, %v2081
    %v2087 = vmul.f32 1.0, %v2086
    %v2088 = vmul.f32 %v2067, %v1874
    %v2089 = vmul.f32 %v2048, %v2068
    %v2090 = vadd.f32 %v2088, %v2089
    %v2091 = vtanh.pop %v2090
    %v2092 = vmul.f32 %v2087, %v2091
    %2093 = vst [vmem:[#allocation3 + $0x38] sm:$0xff] %v2092
    %v2094 = vld [vmem:[#allocation3] sm:$0xff]
    %v2095 = vld [vmem:[#allocation3 + $0x8] sm:$0xff]
    %v2096 = vld [vmem:[#allocation3 + $0x10] sm:$0xff]
    %v2097 = vld [vmem:[#allocation3 + $0x18] sm:$0xff]
    %v2098 = vld [vmem:[#allocation3 + $0x20] sm:$0xff]
    %v2099 = vld [vmem:[#allocation3 + $0x28] sm:$0xff]
    %v2100 = vld [vmem:[#allocation3 + $0x30] sm:$0xff]
    %v2101 = vld [vmem:[#allocation3 + $0x38] sm:$0xff]
    %v2102 = vld [vmem:[#allocation9] sm:$0xff]
    %v2103 = vld [vmem:[#allocation9 + $0x8] sm:$0xff]
    %v2104 = vld [vmem:[#allocation9 + $0x10] sm:$0xff]
    %v2105 = vld [vmem:[#allocation9 + $0x18] sm:$0xff]
    %v2106 = vld [vmem:[#allocation9 + $0x20] sm:$0xff]
    %v2107 = vld [vmem:[#allocation9 + $0x28] sm:$0xff]
    %v2108 = vld [vmem:[#allocation9 + $0x30] sm:$0xff]
    %v2109 = vld [vmem:[#allocation9 + $0x38] sm:$0xff]
    %v2110 = vld [vmem:[#allocation9 + $0x40] sm:$0xff]
    %v2111 = vld [vmem:[#allocation9 + $0x48] sm:$0xff]
    %v2112 = vld [vmem:[#allocation9 + $0x50] sm:$0xff]
    %v2113 = vld [vmem:[#allocation9 + $0x58] sm:$0xff]
    %v2114 = vld [vmem:[#allocation9 + $0x60] sm:$0xff]
    %v2115 = vld [vmem:[#allocation9 + $0x68] sm:$0xff]
    %v2116 = vld [vmem:[#allocation9 + $0x70] sm:$0xff]
    %v2117 = vld [vmem:[#allocation9 + $0x78] sm:$0xff]
    %v2118 = vld [vmem:[#allocation9 + $0x80] sm:$0xff]
    %v2119 = vld [vmem:[#allocation9 + $0x88] sm:$0xff]
    %v2120 = vld [vmem:[#allocation9 + $0x90] sm:$0xff]
    %v2121 = vld [vmem:[#allocation9 + $0x98] sm:$0xff]
    %v2122 = vld [vmem:[#allocation9 + $0xa0] sm:$0xff]
    %v2123 = vld [vmem:[#allocation9 + $0xa8] sm:$0xff]
    %v2124 = vld [vmem:[#allocation9 + $0xb0] sm:$0xff]
    %v2125 = vld [vmem:[#allocation9 + $0xb8] sm:$0xff]
    %v2126 = vld [vmem:[#allocation9 + $0xc0] sm:$0xff]
    %v2127 = vld [vmem:[#allocation9 + $0xc8] sm:$0xff]
    %v2128 = vld [vmem:[#allocation9 + $0xd0] sm:$0xff]
    %v2129 = vld [vmem:[#allocation9 + $0xd8] sm:$0xff]
    %v2130 = vld [vmem:[#allocation9 + $0xe0] sm:$0xff]
    %v2131 = vld [vmem:[#allocation9 + $0xe8] sm:$0xff]
    %v2132 = vld [vmem:[#allocation9 + $0xf0] sm:$0xff]
    %v2133 = vld [vmem:[#allocation9 + $0xf8] sm:$0xff]
    %v2134 = vld [vmem:[#allocation9 + $0x100] sm:$0xff]
    %v2135 = vld [vmem:[#allocation9 + $0x108] sm:$0xff]
    %v2136 = vld [vmem:[#allocation9 + $0x110] sm:$0xff]
    %v2137 = vld [vmem:[#allocation9 + $0x118] sm:$0xff]
    %v2138 = vld [vmem:[#allocation9 + $0x120] sm:$0xff]
    %v2139 = vld [vmem:[#allocation9 + $0x128] sm:$0xff]
    %v2140 = vld [vmem:[#allocation9 + $0x130] sm:$0xff]
    %v2141 = vld [vmem:[#allocation9 + $0x138] sm:$0xff]
    %v2142 = vld [vmem:[#allocation9 + $0x140] sm:$0xff]
    %v2143 = vld [vmem:[#allocation9 + $0x148] sm:$0xff]
    %v2144 = vld [vmem:[#allocation9 + $0x150] sm:$0xff]
    %v2145 = vld [vmem:[#allocation9 + $0x158] sm:$0xff]
    %v2146 = vld [vmem:[#allocation9 + $0x160] sm:$0xff]
    %v2147 = vld [vmem:[#allocation9 + $0x168] sm:$0xff]
    %v2148 = vld [vmem:[#allocation9 + $0x170] sm:$0xff]
    %v2149 = vld [vmem:[#allocation9 + $0x178] sm:$0xff]
    %v2150 = vld [vmem:[#allocation9 + $0x180] sm:$0xff]
    %v2151 = vld [vmem:[#allocation9 + $0x188] sm:$0xff]
    %v2152 = vld [vmem:[#allocation9 + $0x190] sm:$0xff]
    %v2153 = vld [vmem:[#allocation9 + $0x198] sm:$0xff]
    %v2154 = vld [vmem:[#allocation9 + $0x1a0] sm:$0xff]
    %v2155 = vld [vmem:[#allocation9 + $0x1a8] sm:$0xff]
    %v2156 = vld [vmem:[#allocation9 + $0x1b0] sm:$0xff]
    %v2157 = vld [vmem:[#allocation9 + $0x1b8] sm:$0xff]
    %v2158 = vld [vmem:[#allocation9 + $0x1c0] sm:$0xff]
    %v2159 = vld [vmem:[#allocation9 + $0x1c8] sm:$0xff]
    %v2160 = vld [vmem:[#allocation9 + $0x1d0] sm:$0xff]
    %v2161 = vld [vmem:[#allocation9 + $0x1d8] sm:$0xff]
    %v2162 = vld [vmem:[#allocation9 + $0x1e0] sm:$0xff]
    %v2163 = vld [vmem:[#allocation9 + $0x1e8] sm:$0xff]
    %v2164 = vld [vmem:[#allocation9 + $0x1f0] sm:$0xff]
    %v2165 = vld [vmem:[#allocation9 + $0x1f8] sm:$0xff]
    %v2166 = vld [vmem:[%s6] sm:$0xf]
    %v2168 = vperm.slane %v2166, 0
    %v2169 = vperm.slane %v2166, 1
    %v2170 = vperm.slane %v2166, 2
    %v2171 = vperm.slane %v2166, 3
    %2176 = vmatpush.msra.mxu0 %v2162
    %2177 = vmatpush.msra.mxu0 %v2158
    %2178 = vmatpush.msra.mxu0 %v2154
    %2179 = vmatpush.msra.mxu0 %v2150
    %2180 = vmatpush.msra.mxu0 %v2146
    %2181 = vmatpush.msra.mxu0 %v2142
    %2182 = vmatpush.msra.mxu0 %v2138
    %2183 = vmatpush.msra.mxu0 %v2134
    %2184 = vmatpush.msra.mxu0 %v2130
    %2185 = vmatpush.msra.mxu0 %v2126
    %2186 = vmatpush.msra.mxu0 %v2122
    %2187 = vmatpush.msra.mxu0 %v2118
    %2188 = vmatpush.msra.mxu0 %v2114
    %2189 = vmatpush.msra.mxu0 %v2110
    %2190 = vmatpush.msra.mxu0 %v2106
    %2191 = vmatpush.msra.mxu0 %v2102
    %2192 = vmatmul.f32.gmra.mxu0 %v2094
    %v2193 = vpop.f32.mrf.mxu0
    %v2194 = vadd.f32 %v2168, %v2193
    %2195 = vmatmul.f32.gmra.mxu0 %v2095
    %v2196 = vpop.f32.mrf.mxu0
    %v2197 = vadd.f32 %v2168, %v2196
    %2198 = vmatmul.f32.gmra.mxu0 %v2096
    %v2199 = vpop.f32.mrf.mxu0
    %v2200 = vadd.f32 %v2168, %v2199
    %2201 = vmatmul.f32.gmra.mxu0 %v2097
    %v2202 = vpop.f32.mrf.mxu0
    %v2203 = vadd.f32 %v2168, %v2202
    %2204 = vmatmul.f32.gmra.mxu0 %v2098
    %v2205 = vpop.f32.mrf.mxu0
    %v2206 = vadd.f32 %v2168, %v2205
    %2207 = vmatmul.f32.gmra.mxu0 %v2099
    %v2208 = vpop.f32.mrf.mxu0
    %v2209 = vadd.f32 %v2168, %v2208
    %2210 = vmatmul.f32.gmra.mxu0 %v2100
    %v2211 = vpop.f32.mrf.mxu0
    %v2212 = vadd.f32 %v2168, %v2211
    %2213 = vmatmul.f32.gmra.mxu0 %v2101
    %v2214 = vpop.f32.mrf.mxu0
    %v2215 = vadd.f32 %v2168, %v2214
    %2216 = vdwg.mxu0
    %2217 = vmatpush.msra.mxu0 %v2163
    %2218 = vmatpush.msra.mxu0 %v2159
    %2219 = vmatpush.msra.mxu0 %v2155
    %2220 = vmatpush.msra.mxu0 %v2151
    %2221 = vmatpush.msra.mxu0 %v2147
    %2222 = vmatpush.msra.mxu0 %v2143
    %2223 = vmatpush.msra.mxu0 %v2139
    %2224 = vmatpush.msra.mxu0 %v2135
    %2225 = vmatpush.msra.mxu0 %v2131
    %2226 = vmatpush.msra.mxu0 %v2127
    %2227 = vmatpush.msra.mxu0 %v2123
    %2228 = vmatpush.msra.mxu0 %v2119
    %2229 = vmatpush.msra.mxu0 %v2115
    %2230 = vmatpush.msra.mxu0 %v2111
    %2231 = vmatpush.msra.mxu0 %v2107
    %2232 = vmatpush.msra.mxu0 %v2103
    %2233 = vmatmul.f32.gmra.mxu0 %v2094
    %v2234 = vpop.f32.mrf.mxu0
    %v2235 = vadd.f32 %v2169, %v2234
    %2236 = vmatmul.f32.gmra.mxu0 %v2095
    %v2237 = vpop.f32.mrf.mxu0
    %v2238 = vadd.f32 %v2169, %v2237
    %2239 = vmatmul.f32.gmra.mxu0 %v2096
    %v2240 = vpop.f32.mrf.mxu0
    %v2241 = vadd.f32 %v2169, %v2240
    %2242 = vmatmul.f32.gmra.mxu0 %v2097
    %v2243 = vpop.f32.mrf.mxu0
    %v2244 = vadd.f32 %v2169, %v2243
    %2245 = vmatmul.f32.gmra.mxu0 %v2098
    %v2246 = vpop.f32.mrf.mxu0
    %v2247 = vadd.f32 %v2169, %v2246
    %2248 = vmatmul.f32.gmra.mxu0 %v2099
    %v2249 = vpop.f32.mrf.mxu0
    %v2250 = vadd.f32 %v2169, %v2249
    %2251 = vmatmul.f32.gmra.mxu0 %v2100
    %v2252 = vpop.f32.mrf.mxu0
    %v2253 = vadd.f32 %v2169, %v2252
    %2254 = vmatmul.f32.gmra.mxu0 %v2101
    %v2255 = vpop.f32.mrf.mxu0
    %v2256 = vadd.f32 %v2169, %v2255
    %2257 = vdwg.mxu0
    %2258 = vmatpush.msra.mxu0 %v2164
    %2259 = vmatpush.msra.mxu0 %v2160
    %2260 = vmatpush.msra.mxu0 %v2156
    %2261 = vmatpush.msra.mxu0 %v2152
    %2262 = vmatpush.msra.mxu0 %v2148
    %2263 = vmatpush.msra.mxu0 %v2144
    %2264 = vmatpush.msra.mxu0 %v2140
    %2265 = vmatpush.msra.mxu0 %v2136
    %2266 = vmatpush.msra.mxu0 %v2132
    %2267 = vmatpush.msra.mxu0 %v2128
    %2268 = vmatpush.msra.mxu0 %v2124
    %2269 = vmatpush.msra.mxu0 %v2120
    %2270 = vmatpush.msra.mxu0 %v2116
    %2271 = vmatpush.msra.mxu0 %v2112
    %2272 = vmatpush.msra.mxu0 %v2108
    %2273 = vmatpush.msra.mxu0 %v2104
    %2274 = vmatmul.f32.gmra.mxu0 %v2094
    %v2275 = vpop.f32.mrf.mxu0
    %v2276 = vadd.f32 %v2170, %v2275
    %2277 = vmatmul.f32.gmra.mxu0 %v2095
    %v2278 = vpop.f32.mrf.mxu0
    %v2279 = vadd.f32 %v2170, %v2278
    %2280 = vmatmul.f32.gmra.mxu0 %v2096
    %v2281 = vpop.f32.mrf.mxu0
    %v2282 = vadd.f32 %v2170, %v2281
    %2283 = vmatmul.f32.gmra.mxu0 %v2097
    %v2284 = vpop.f32.mrf.mxu0
    %v2285 = vadd.f32 %v2170, %v2284
    %2286 = vmatmul.f32.gmra.mxu0 %v2098
    %v2287 = vpop.f32.mrf.mxu0
    %v2288 = vadd.f32 %v2170, %v2287
    %2289 = vmatmul.f32.gmra.mxu0 %v2099
    %v2290 = vpop.f32.mrf.mxu0
    %v2291 = vadd.f32 %v2170, %v2290
    %2292 = vmatmul.f32.gmra.mxu0 %v2100
    %v2293 = vpop.f32.mrf.mxu0
    %v2294 = vadd.f32 %v2170, %v2293
    %2295 = vmatmul.f32.gmra.mxu0 %v2101
    %v2296 = vpop.f32.mrf.mxu0
    %v2297 = vadd.f32 %v2170, %v2296
    %2298 = vdwg.mxu0
    %2299 = vmatpush.msra.mxu0 %v2165
    %2300 = vmatpush.msra.mxu0 %v2161
    %2301 = vmatpush.msra.mxu0 %v2157
    %2302 = vmatpush.msra.mxu0 %v2153
    %2303 = vmatpush.msra.mxu0 %v2149
    %2304 = vmatpush.msra.mxu0 %v2145
    %2305 = vmatpush.msra.mxu0 %v2141
    %2306 = vmatpush.msra.mxu0 %v2137
    %2307 = vmatpush.msra.mxu0 %v2133
    %2308 = vmatpush.msra.mxu0 %v2129
    %2309 = vmatpush.msra.mxu0 %v2125
    %2310 = vmatpush.msra.mxu0 %v2121
    %2311 = vmatpush.msra.mxu0 %v2117
    %2312 = vmatpush.msra.mxu0 %v2113
    %2313 = vmatpush.msra.mxu0 %v2109
    %2314 = vmatpush.msra.mxu0 %v2105
    %2315 = vmatmul.f32.gmra.mxu0 %v2094
    %v2316 = vpop.f32.mrf.mxu0
    %v2317 = vadd.f32 %v2171, %v2316
    %2318 = vmatmul.f32.gmra.mxu0 %v2095
    %v2319 = vpop.f32.mrf.mxu0
    %v2320 = vadd.f32 %v2171, %v2319
    %2321 = vmatmul.f32.gmra.mxu0 %v2096
    %v2322 = vpop.f32.mrf.mxu0
    %v2323 = vadd.f32 %v2171, %v2322
    %2324 = vmatmul.f32.gmra.mxu0 %v2097
    %v2325 = vpop.f32.mrf.mxu0
    %v2326 = vadd.f32 %v2171, %v2325
    %2327 = vmatmul.f32.gmra.mxu0 %v2098
    %v2328 = vpop.f32.mrf.mxu0
    %v2329 = vadd.f32 %v2171, %v2328
    %2330 = vmatmul.f32.gmra.mxu0 %v2099
    %v2331 = vpop.f32.mrf.mxu0
    %v2332 = vadd.f32 %v2171, %v2331
    %2333 = vmatmul.f32.gmra.mxu0 %v2100
    %v2334 = vpop.f32.mrf.mxu0
    %v2335 = vadd.f32 %v2171, %v2334
    %2336 = vmatmul.f32.gmra.mxu0 %v2101
    %v2337 = vpop.f32.mrf.mxu0
    %v2338 = vadd.f32 %v2171, %v2337
    %2339 = vdwg.mxu0
    %2340 = vst [vmem:[#allocation2] sm:$0xff] %v2194
    %2341 = vst [vmem:[#allocation2 + $0x8] sm:$0xff] %v2235
    %2342 = vst [vmem:[#allocation2 + $0x10] sm:$0xff] %v2276
    %2343 = vst [vmem:[#allocation2 + $0x18] sm:$0xff] %v2317
    %2344 = vst [vmem:[#allocation2 + $0x20] sm:$0xff] %v2197
    %2345 = vst [vmem:[#allocation2 + $0x28] sm:$0xff] %v2238
    %2346 = vst [vmem:[#allocation2 + $0x30] sm:$0xff] %v2279
    %2347 = vst [vmem:[#allocation2 + $0x38] sm:$0xff] %v2320
    %2348 = vst [vmem:[#allocation2 + $0x40] sm:$0xff] %v2200
    %2349 = vst [vmem:[#allocation2 + $0x48] sm:$0xff] %v2241
    %2350 = vst [vmem:[#allocation2 + $0x50] sm:$0xff] %v2282
    %2351 = vst [vmem:[#allocation2 + $0x58] sm:$0xff] %v2323
    %2352 = vst [vmem:[#allocation2 + $0x60] sm:$0xff] %v2203
    %2353 = vst [vmem:[#allocation2 + $0x68] sm:$0xff] %v2244
    %2354 = vst [vmem:[#allocation2 + $0x70] sm:$0xff] %v2285
    %2355 = vst [vmem:[#allocation2 + $0x78] sm:$0xff] %v2326
    %2356 = vst [vmem:[#allocation2 + $0x80] sm:$0xff] %v2206
    %2357 = vst [vmem:[#allocation2 + $0x88] sm:$0xff] %v2247
    %2358 = vst [vmem:[#allocation2 + $0x90] sm:$0xff] %v2288
    %2359 = vst [vmem:[#allocation2 + $0x98] sm:$0xff] %v2329
    %2360 = vst [vmem:[#allocation2 + $0xa0] sm:$0xff] %v2209
    %2361 = vst [vmem:[#allocation2 + $0xa8] sm:$0xff] %v2250
    %2362 = vst [vmem:[#allocation2 + $0xb0] sm:$0xff] %v2291
    %2363 = vst [vmem:[#allocation2 + $0xb8] sm:$0xff] %v2332
    %2364 = vst [vmem:[#allocation2 + $0xc0] sm:$0xff] %v2212
    %2365 = vst [vmem:[#allocation2 + $0xc8] sm:$0xff] %v2253
    %2366 = vst [vmem:[#allocation2 + $0xd0] sm:$0xff] %v2294
    %2367 = vst [vmem:[#allocation2 + $0xd8] sm:$0xff] %v2335
    %2368 = vst [vmem:[#allocation2 + $0xe0] sm:$0xff] %v2215
    %2369 = vst [vmem:[#allocation2 + $0xe8] sm:$0xff] %v2256
    %2370 = vst [vmem:[#allocation2 + $0xf0] sm:$0xff] %v2297
    %2371 = vst [vmem:[#allocation2 + $0xf8] sm:$0xff] %v2338
    %v2372 = vld [vmem:[#allocation2] sm:$0xff]
    %v2373 = vld [vmem:[#allocation2 + $0x8] sm:$0xff]
    %v2374 = vld [vmem:[#allocation2 + $0x10] sm:$0xff]
    %v2375 = vld [vmem:[#allocation2 + $0x18] sm:$0xff]
    %v2376 = vld [vmem:[#allocation10] sm:$0xff]
    %v2377 = vld [vmem:[#allocation10 + $0x8] sm:$0xff]
    %v2378 = vld [vmem:[#allocation10 + $0x10] sm:$0xff]
    %v2379 = vld [vmem:[#allocation10 + $0x18] sm:$0xff]
    %v2380 = vld [vmem:[#allocation10 + $0x20] sm:$0xff]
    %v2381 = vld [vmem:[#allocation10 + $0x28] sm:$0xff]
    %v2382 = vld [vmem:[#allocation10 + $0x30] sm:$0xff]
    %v2383 = vld [vmem:[#allocation10 + $0x38] sm:$0xff]
    %v2384 = vld [vmem:[#allocation10 + $0x40] sm:$0xff]
    %v2385 = vld [vmem:[#allocation10 + $0x48] sm:$0xff]
    %v2386 = vld [vmem:[#allocation10 + $0x50] sm:$0xff]
    %v2387 = vld [vmem:[#allocation10 + $0x58] sm:$0xff]
    %v2388 = vld [vmem:[#allocation10 + $0x60] sm:$0xff]
    %v2389 = vld [vmem:[#allocation10 + $0x68] sm:$0xff]
    %v2390 = vld [vmem:[#allocation10 + $0x70] sm:$0xff]
    %v2391 = vld [vmem:[#allocation10 + $0x78] sm:$0xff]
    %v2392 = vld [vmem:[#allocation10 + $0x80] sm:$0xff]
    %v2393 = vld [vmem:[#allocation10 + $0x88] sm:$0xff]
    %v2394 = vld [vmem:[#allocation10 + $0x90] sm:$0xff]
    %v2395 = vld [vmem:[#allocation10 + $0x98] sm:$0xff]
    %v2396 = vld [vmem:[#allocation10 + $0xa0] sm:$0xff]
    %v2397 = vld [vmem:[#allocation10 + $0xa8] sm:$0xff]
    %v2398 = vld [vmem:[#allocation10 + $0xb0] sm:$0xff]
    %v2399 = vld [vmem:[#allocation10 + $0xb8] sm:$0xff]
    %v2400 = vld [vmem:[#allocation10 + $0xc0] sm:$0xff]
    %v2401 = vld [vmem:[#allocation10 + $0xc8] sm:$0xff]
    %v2402 = vld [vmem:[#allocation10 + $0xd0] sm:$0xff]
    %v2403 = vld [vmem:[#allocation10 + $0xd8] sm:$0xff]
    %v2404 = vld [vmem:[#allocation10 + $0xe0] sm:$0xff]
    %v2405 = vld [vmem:[#allocation10 + $0xe8] sm:$0xff]
    %v2406 = vld [vmem:[#allocation10 + $0xf0] sm:$0xff]
    %v2407 = vld [vmem:[#allocation10 + $0xf8] sm:$0xff]
    %v2408 = vld [vmem:[#allocation10 + $0x100] sm:$0xff]
    %v2409 = vld [vmem:[#allocation10 + $0x108] sm:$0xff]
    %v2410 = vld [vmem:[#allocation10 + $0x110] sm:$0xff]
    %v2411 = vld [vmem:[#allocation10 + $0x118] sm:$0xff]
    %v2412 = vld [vmem:[#allocation10 + $0x120] sm:$0xff]
    %v2413 = vld [vmem:[#allocation10 + $0x128] sm:$0xff]
    %v2414 = vld [vmem:[#allocation10 + $0x130] sm:$0xff]
    %v2415 = vld [vmem:[#allocation10 + $0x138] sm:$0xff]
    %v2416 = vld [vmem:[#allocation10 + $0x140] sm:$0xff]
    %v2417 = vld [vmem:[#allocation10 + $0x148] sm:$0xff]
    %v2418 = vld [vmem:[#allocation10 + $0x150] sm:$0xff]
    %v2419 = vld [vmem:[#allocation10 + $0x158] sm:$0xff]
    %v2420 = vld [vmem:[#allocation10 + $0x160] sm:$0xff]
    %v2421 = vld [vmem:[#allocation10 + $0x168] sm:$0xff]
    %v2422 = vld [vmem:[#allocation10 + $0x170] sm:$0xff]
    %v2423 = vld [vmem:[#allocation10 + $0x178] sm:$0xff]
    %v2424 = vld [vmem:[#allocation10 + $0x180] sm:$0xff]
    %v2425 = vld [vmem:[#allocation10 + $0x188] sm:$0xff]
    %v2426 = vld [vmem:[#allocation10 + $0x190] sm:$0xff]
    %v2427 = vld [vmem:[#allocation10 + $0x198] sm:$0xff]
    %v2428 = vld [vmem:[#allocation10 + $0x1a0] sm:$0xff]
    %v2429 = vld [vmem:[#allocation10 + $0x1a8] sm:$0xff]
    %v2430 = vld [vmem:[#allocation10 + $0x1b0] sm:$0xff]
    %v2431 = vld [vmem:[#allocation10 + $0x1b8] sm:$0xff]
    %v2432 = vld [vmem:[#allocation10 + $0x1c0] sm:$0xff]
    %v2433 = vld [vmem:[#allocation10 + $0x1c8] sm:$0xff]
    %v2434 = vld [vmem:[#allocation10 + $0x1d0] sm:$0xff]
    %v2435 = vld [vmem:[#allocation10 + $0x1d8] sm:$0xff]
    %v2436 = vld [vmem:[#allocation10 + $0x1e0] sm:$0xff]
    %v2437 = vld [vmem:[#allocation10 + $0x1e8] sm:$0xff]
    %v2438 = vld [vmem:[#allocation10 + $0x1f0] sm:$0xff]
    %v2439 = vld [vmem:[#allocation10 + $0x1f8] sm:$0xff]
    %2440 = vmatpush.msra.mxu0 %v2436
    %2441 = vmatpush.msra.mxu0 %v2432
    %2442 = vmatpush.msra.mxu0 %v2428
    %2443 = vmatpush.msra.mxu0 %v2424
    %2444 = vmatpush.msra.mxu0 %v2420
    %2445 = vmatpush.msra.mxu0 %v2416
    %2446 = vmatpush.msra.mxu0 %v2412
    %2447 = vmatpush.msra.mxu0 %v2408
    %2448 = vmatpush.msra.mxu0 %v2404
    %2449 = vmatpush.msra.mxu0 %v2400
    %2450 = vmatpush.msra.mxu0 %v2396
    %2451 = vmatpush.msra.mxu0 %v2392
    %2452 = vmatpush.msra.mxu0 %v2388
    %2453 = vmatpush.msra.mxu0 %v2384
    %2454 = vmatpush.msra.mxu0 %v2380
    %2455 = vmatpush.msra.mxu0 %v2376
    %2456 = vmatmul.f32.gmra.mxu0 0.0
    %v2457 = vpop.f32.mrf.mxu0
    %v2458 = vadd.f32 0.0, %v2457
    %2459 = vdwg.mxu0
    %2460 = vmatpush.msra.mxu0 %v2437
    %2461 = vmatpush.msra.mxu0 %v2433
    %2462 = vmatpush.msra.mxu0 %v2429
    %2463 = vmatpush.msra.mxu0 %v2425
    %2464 = vmatpush.msra.mxu0 %v2421
    %2465 = vmatpush.msra.mxu0 %v2417
    %2466 = vmatpush.msra.mxu0 %v2413
    %2467 = vmatpush.msra.mxu0 %v2409
    %2468 = vmatpush.msra.mxu0 %v2405
    %2469 = vmatpush.msra.mxu0 %v2401
    %2470 = vmatpush.msra.mxu0 %v2397
    %2471 = vmatpush.msra.mxu0 %v2393
    %2472 = vmatpush.msra.mxu0 %v2389
    %2473 = vmatpush.msra.mxu0 %v2385
    %2474 = vmatpush.msra.mxu0 %v2381
    %2475 = vmatpush.msra.mxu0 %v2377
    %2476 = vmatmul.f32.gmra.mxu0 0.0
    %v2477 = vpop.f32.mrf.mxu0
    %v2478 = vadd.f32 0.0, %v2477
    %2479 = vdwg.mxu0
    %2480 = vmatpush.msra.mxu0 %v2438
    %2481 = vmatpush.msra.mxu0 %v2434
    %2482 = vmatpush.msra.mxu0 %v2430
    %2483 = vmatpush.msra.mxu0 %v2426
    %2484 = vmatpush.msra.mxu0 %v2422
    %2485 = vmatpush.msra.mxu0 %v2418
    %2486 = vmatpush.msra.mxu0 %v2414
    %2487 = vmatpush.msra.mxu0 %v2410
    %2488 = vmatpush.msra.mxu0 %v2406
    %2489 = vmatpush.msra.mxu0 %v2402
    %2490 = vmatpush.msra.mxu0 %v2398
    %2491 = vmatpush.msra.mxu0 %v2394
    %2492 = vmatpush.msra.mxu0 %v2390
    %2493 = vmatpush.msra.mxu0 %v2386
    %2494 = vmatpush.msra.mxu0 %v2382
    %2495 = vmatpush.msra.mxu0 %v2378
    %2496 = vmatmul.f32.gmra.mxu0 0.0
    %v2497 = vpop.f32.mrf.mxu0
    %v2498 = vadd.f32 0.0, %v2497
    %2499 = vdwg.mxu0
    %2500 = vmatpush.msra.mxu0 %v2439
    %2501 = vmatpush.msra.mxu0 %v2435
    %2502 = vmatpush.msra.mxu0 %v2431
    %2503 = vmatpush.msra.mxu0 %v2427
    %2504 = vmatpush.msra.mxu0 %v2423
    %2505 = vmatpush.msra.mxu0 %v2419
    %2506 = vmatpush.msra.mxu0 %v2415
    %2507 = vmatpush.msra.mxu0 %v2411
    %2508 = vmatpush.msra.mxu0 %v2407
    %2509 = vmatpush.msra.mxu0 %v2403
    %2510 = vmatpush.msra.mxu0 %v2399
    %2511 = vmatpush.msra.mxu0 %v2395
    %2512 = vmatpush.msra.mxu0 %v2391
    %2513 = vmatpush.msra.mxu0 %v2387
    %2514 = vmatpush.msra.mxu0 %v2383
    %2515 = vmatpush.msra.mxu0 %v2379
    %2516 = vmatmul.f32.gmra.mxu0 0.0
    %v2517 = vpop.f32.mrf.mxu0
    %v2518 = vadd.f32 0.0, %v2517
    %2519 = vdwg.mxu0
    %v2520 = vadd.f32 %v2372, %v2458
    %v2521 = vadd.f32 %v2373, %v2478
    %v2522 = vadd.f32 %v2374, %v2498
    %v2523 = vadd.f32 %v2375, %v2518
    %v2524 = vxor.u32 %v2520, 2147483648
    %v2525 = vmul.f32 %v2524, 1.442695
    %v2526 = vpow.pop %v2525
    %v2527 = vadd.f32 %v2526, 1.0
    %v2528 = vrcp.pop %v2527
    %v2529 = vmul.f32 %v2527, %v2528
    %v2530 = vsub.f32 1.0, %v2529
    %v2531 = vmul.f32 %v2528, %v2530
    %v2532 = vadd.f32 %v2528, %v2531
    %vm2533 = vweird.f32 %v2527
    %vm2534 = vweird.f32 %v2528
    %vm2535 = vmor %vm2533, %vm2534
    %v2536 = vsel %vm2535, %v2528, %v2532
    %v2537 = vand.u32 2147483647, %v2527
    %vm2538 = vcmp.eq.f32.partialorder %v2537, 8.507059e+37
    %v2539 = vand.u32 %v2527, 2147483648
    %v2540 = vor.u32 1.1754944e-38, %v2539
    %v2541 = vsel %vm2538, %v2540, %v2536
    %v2542 = vmul.f32 1.0, %v2541
    %v2543 = vxor.u32 %v2521, 2147483648
    %v2544 = vmul.f32 %v2543, 1.442695
    %v2545 = vpow.pop %v2544
    %v2546 = vadd.f32 %v2545, 1.0
    %v2547 = vrcp.pop %v2546
    %v2548 = vmul.f32 %v2546, %v2547
    %v2549 = vsub.f32 1.0, %v2548
    %v2550 = vmul.f32 %v2547, %v2549
    %v2551 = vadd.f32 %v2547, %v2550
    %vm2552 = vweird.f32 %v2546
    %vm2553 = vweird.f32 %v2547
    %vm2554 = vmor %vm2552, %vm2553
    %v2555 = vsel %vm2554, %v2547, %v2551
    %v2556 = vand.u32 2147483647, %v2546
    %vm2557 = vcmp.eq.f32.partialorder %v2556, 8.507059e+37
    %v2558 = vand.u32 %v2546, 2147483648
    %v2559 = vor.u32 1.1754944e-38, %v2558
    %v2560 = vsel %vm2557, %v2559, %v2555
    %v2561 = vmul.f32 1.0, %v2560
    %v2562 = vtanh.pop %v2522
    %v2563 = vxor.u32 %v2523, 2147483648
    %v2564 = vmul.f32 %v2563, 1.442695
    %v2565 = vpow.pop %v2564
    %v2566 = vadd.f32 %v2565, 1.0
    %v2567 = vrcp.pop %v2566
    %v2568 = vmul.f32 %v2566, %v2567
    %v2569 = vsub.f32 1.0, %v2568
    %v2570 = vmul.f32 %v2567, %v2569
    %v2571 = vadd.f32 %v2567, %v2570
    %vm2572 = vweird.f32 %v2566
    %vm2573 = vweird.f32 %v2567
    %vm2574 = vmor %vm2572, %vm2573
    %v2575 = vsel %vm2574, %v2567, %v2571
    %v2576 = vand.u32 2147483647, %v2566
    %vm2577 = vcmp.eq.f32.partialorder %v2576, 8.507059e+37
    %v2578 = vand.u32 %v2566, 2147483648
    %v2579 = vor.u32 1.1754944e-38, %v2578
    %v2580 = vsel %vm2577, %v2579, %v2575
    %v2581 = vmul.f32 1.0, %v2580
    %v2582 = vmul.f32 %v2561, 0.0
    %v2583 = vmul.f32 %v2542, %v2562
    %v2584 = vadd.f32 %v2582, %v2583
    %v2585 = vtanh.pop %v2584
    %v2586 = vmul.f32 %v2581, %v2585
    %2587 = vst [vmem:[#allocation3] sm:$0xff] %v2586
    %v2588 = vld [vmem:[#allocation2 + $0x20] sm:$0xff]
    %v2589 = vld [vmem:[#allocation2 + $0x28] sm:$0xff]
    %v2590 = vld [vmem:[#allocation2 + $0x30] sm:$0xff]
    %v2591 = vld [vmem:[#allocation2 + $0x38] sm:$0xff]
    %v2592 = vld [vmem:[#allocation10] sm:$0xff]
    %v2593 = vld [vmem:[#allocation10 + $0x8] sm:$0xff]
    %v2594 = vld [vmem:[#allocation10 + $0x10] sm:$0xff]
    %v2595 = vld [vmem:[#allocation10 + $0x18] sm:$0xff]
    %v2596 = vld [vmem:[#allocation10 + $0x20] sm:$0xff]
    %v2597 = vld [vmem:[#allocation10 + $0x28] sm:$0xff]
    %v2598 = vld [vmem:[#allocation10 + $0x30] sm:$0xff]
    %v2599 = vld [vmem:[#allocation10 + $0x38] sm:$0xff]
    %v2600 = vld [vmem:[#allocation10 + $0x40] sm:$0xff]
    %v2601 = vld [vmem:[#allocation10 + $0x48] sm:$0xff]
    %v2602 = vld [vmem:[#allocation10 + $0x50] sm:$0xff]
    %v2603 = vld [vmem:[#allocation10 + $0x58] sm:$0xff]
    %v2604 = vld [vmem:[#allocation10 + $0x60] sm:$0xff]
    %v2605 = vld [vmem:[#allocation10 + $0x68] sm:$0xff]
    %v2606 = vld [vmem:[#allocation10 + $0x70] sm:$0xff]
    %v2607 = vld [vmem:[#allocation10 + $0x78] sm:$0xff]
    %v2608 = vld [vmem:[#allocation10 + $0x80] sm:$0xff]
    %v2609 = vld [vmem:[#allocation10 + $0x88] sm:$0xff]
    %v2610 = vld [vmem:[#allocation10 + $0x90] sm:$0xff]
    %v2611 = vld [vmem:[#allocation10 + $0x98] sm:$0xff]
    %v2612 = vld [vmem:[#allocation10 + $0xa0] sm:$0xff]
    %v2613 = vld [vmem:[#allocation10 + $0xa8] sm:$0xff]
    %v2614 = vld [vmem:[#allocation10 + $0xb0] sm:$0xff]
    %v2615 = vld [vmem:[#allocation10 + $0xb8] sm:$0xff]
    %v2616 = vld [vmem:[#allocation10 + $0xc0] sm:$0xff]
    %v2617 = vld [vmem:[#allocation10 + $0xc8] sm:$0xff]
    %v2618 = vld [vmem:[#allocation10 + $0xd0] sm:$0xff]
    %v2619 = vld [vmem:[#allocation10 + $0xd8] sm:$0xff]
    %v2620 = vld [vmem:[#allocation10 + $0xe0] sm:$0xff]
    %v2621 = vld [vmem:[#allocation10 + $0xe8] sm:$0xff]
    %v2622 = vld [vmem:[#allocation10 + $0xf0] sm:$0xff]
    %v2623 = vld [vmem:[#allocation10 + $0xf8] sm:$0xff]
    %v2624 = vld [vmem:[#allocation10 + $0x100] sm:$0xff]
    %v2625 = vld [vmem:[#allocation10 + $0x108] sm:$0xff]
    %v2626 = vld [vmem:[#allocation10 + $0x110] sm:$0xff]
    %v2627 = vld [vmem:[#allocation10 + $0x118] sm:$0xff]
    %v2628 = vld [vmem:[#allocation10 + $0x120] sm:$0xff]
    %v2629 = vld [vmem:[#allocation10 + $0x128] sm:$0xff]
    %v2630 = vld [vmem:[#allocation10 + $0x130] sm:$0xff]
    %v2631 = vld [vmem:[#allocation10 + $0x138] sm:$0xff]
    %v2632 = vld [vmem:[#allocation10 + $0x140] sm:$0xff]
    %v2633 = vld [vmem:[#allocation10 + $0x148] sm:$0xff]
    %v2634 = vld [vmem:[#allocation10 + $0x150] sm:$0xff]
    %v2635 = vld [vmem:[#allocation10 + $0x158] sm:$0xff]
    %v2636 = vld [vmem:[#allocation10 + $0x160] sm:$0xff]
    %v2637 = vld [vmem:[#allocation10 + $0x168] sm:$0xff]
    %v2638 = vld [vmem:[#allocation10 + $0x170] sm:$0xff]
    %v2639 = vld [vmem:[#allocation10 + $0x178] sm:$0xff]
    %v2640 = vld [vmem:[#allocation10 + $0x180] sm:$0xff]
    %v2641 = vld [vmem:[#allocation10 + $0x188] sm:$0xff]
    %v2642 = vld [vmem:[#allocation10 + $0x190] sm:$0xff]
    %v2643 = vld [vmem:[#allocation10 + $0x198] sm:$0xff]
    %v2644 = vld [vmem:[#allocation10 + $0x1a0] sm:$0xff]
    %v2645 = vld [vmem:[#allocation10 + $0x1a8] sm:$0xff]
    %v2646 = vld [vmem:[#allocation10 + $0x1b0] sm:$0xff]
    %v2647 = vld [vmem:[#allocation10 + $0x1b8] sm:$0xff]
    %v2648 = vld [vmem:[#allocation10 + $0x1c0] sm:$0xff]
    %v2649 = vld [vmem:[#allocation10 + $0x1c8] sm:$0xff]
    %v2650 = vld [vmem:[#allocation10 + $0x1d0] sm:$0xff]
    %v2651 = vld [vmem:[#allocation10 + $0x1d8] sm:$0xff]
    %v2652 = vld [vmem:[#allocation10 + $0x1e0] sm:$0xff]
    %v2653 = vld [vmem:[#allocation10 + $0x1e8] sm:$0xff]
    %v2654 = vld [vmem:[#allocation10 + $0x1f0] sm:$0xff]
    %v2655 = vld [vmem:[#allocation10 + $0x1f8] sm:$0xff]
    %2656 = vmatpush.msra.mxu0 %v2652
    %2657 = vmatpush.msra.mxu0 %v2648
    %2658 = vmatpush.msra.mxu0 %v2644
    %2659 = vmatpush.msra.mxu0 %v2640
    %2660 = vmatpush.msra.mxu0 %v2636
    %2661 = vmatpush.msra.mxu0 %v2632
    %2662 = vmatpush.msra.mxu0 %v2628
    %2663 = vmatpush.msra.mxu0 %v2624
    %2664 = vmatpush.msra.mxu0 %v2620
    %2665 = vmatpush.msra.mxu0 %v2616
    %2666 = vmatpush.msra.mxu0 %v2612
    %2667 = vmatpush.msra.mxu0 %v2608
    %2668 = vmatpush.msra.mxu0 %v2604
    %2669 = vmatpush.msra.mxu0 %v2600
    %2670 = vmatpush.msra.mxu0 %v2596
    %2671 = vmatpush.msra.mxu0 %v2592
    %2672 = vmatmul.f32.gmra.mxu0 %v2586
    %v2673 = vpop.f32.mrf.mxu0
    %v2674 = vadd.f32 0.0, %v2673
    %2675 = vdwg.mxu0
    %2676 = vmatpush.msra.mxu0 %v2653
    %2677 = vmatpush.msra.mxu0 %v2649
    %2678 = vmatpush.msra.mxu0 %v2645
    %2679 = vmatpush.msra.mxu0 %v2641
    %2680 = vmatpush.msra.mxu0 %v2637
    %2681 = vmatpush.msra.mxu0 %v2633
    %2682 = vmatpush.msra.mxu0 %v2629
    %2683 = vmatpush.msra.mxu0 %v2625
    %2684 = vmatpush.msra.mxu0 %v2621
    %2685 = vmatpush.msra.mxu0 %v2617
    %2686 = vmatpush.msra.mxu0 %v2613
    %2687 = vmatpush.msra.mxu0 %v2609
    %2688 = vmatpush.msra.mxu0 %v2605
    %2689 = vmatpush.msra.mxu0 %v2601
    %2690 = vmatpush.msra.mxu0 %v2597
    %2691 = vmatpush.msra.mxu0 %v2593
    %2692 = vmatmul.f32.gmra.mxu0 %v2586
    %v2693 = vpop.f32.mrf.mxu0
    %v2694 = vadd.f32 0.0, %v2693
    %2695 = vdwg.mxu0
    %2696 = vmatpush.msra.mxu0 %v2654
    %2697 = vmatpush.msra.mxu0 %v2650
    %2698 = vmatpush.msra.mxu0 %v2646
    %2699 = vmatpush.msra.mxu0 %v2642
    %2700 = vmatpush.msra.mxu0 %v2638
    %2701 = vmatpush.msra.mxu0 %v2634
    %2702 = vmatpush.msra.mxu0 %v2630
    %2703 = vmatpush.msra.mxu0 %v2626
    %2704 = vmatpush.msra.mxu0 %v2622
    %2705 = vmatpush.msra.mxu0 %v2618
    %2706 = vmatpush.msra.mxu0 %v2614
    %2707 = vmatpush.msra.mxu0 %v2610
    %2708 = vmatpush.msra.mxu0 %v2606
    %2709 = vmatpush.msra.mxu0 %v2602
    %2710 = vmatpush.msra.mxu0 %v2598
    %2711 = vmatpush.msra.mxu0 %v2594
    %2712 = vmatmul.f32.gmra.mxu0 %v2586
    %v2713 = vpop.f32.mrf.mxu0
    %v2714 = vadd.f32 0.0, %v2713
    %2715 = vdwg.mxu0
    %2716 = vmatpush.msra.mxu0 %v2655
    %2717 = vmatpush.msra.mxu0 %v2651
    %2718 = vmatpush.msra.mxu0 %v2647
    %2719 = vmatpush.msra.mxu0 %v2643
    %2720 = vmatpush.msra.mxu0 %v2639
    %2721 = vmatpush.msra.mxu0 %v2635
    %2722 = vmatpush.msra.mxu0 %v2631
    %2723 = vmatpush.msra.mxu0 %v2627
    %2724 = vmatpush.msra.mxu0 %v2623
    %2725 = vmatpush.msra.mxu0 %v2619
    %2726 = vmatpush.msra.mxu0 %v2615
    %2727 = vmatpush.msra.mxu0 %v2611
    %2728 = vmatpush.msra.mxu0 %v2607
    %2729 = vmatpush.msra.mxu0 %v2603
    %2730 = vmatpush.msra.mxu0 %v2599
    %2731 = vmatpush.msra.mxu0 %v2595
    %2732 = vmatmul.f32.gmra.mxu0 %v2586
    %v2733 = vpop.f32.mrf.mxu0
    %v2734 = vadd.f32 0.0, %v2733
    %2735 = vdwg.mxu0
    %v2736 = vadd.f32 %v2588, %v2674
    %v2737 = vadd.f32 %v2589, %v2694
    %v2738 = vadd.f32 %v2590, %v2714
    %v2739 = vadd.f32 %v2591, %v2734
    %v2740 = vxor.u32 %v2736, 2147483648
    %v2741 = vmul.f32 %v2740, 1.442695
    %v2742 = vpow.pop %v2741
    %v2743 = vadd.f32 %v2742, 1.0
    %v2744 = vrcp.pop %v2743
    %v2745 = vmul.f32 %v2743, %v2744
    %v2746 = vsub.f32 1.0, %v2745
    %v2747 = vmul.f32 %v2744, %v2746
    %v2748 = vadd.f32 %v2744, %v2747
    %vm2749 = vweird.f32 %v2743
    %vm2750 = vweird.f32 %v2744
    %vm2751 = vmor %vm2749, %vm2750
    %v2752 = vsel %vm2751, %v2744, %v2748
    %v2753 = vand.u32 2147483647, %v2743
    %vm2754 = vcmp.eq.f32.partialorder %v2753, 8.507059e+37
    %v2755 = vand.u32 %v2743, 2147483648
    %v2756 = vor.u32 1.1754944e-38, %v2755
    %v2757 = vsel %vm2754, %v2756, %v2752
    %v2758 = vmul.f32 1.0, %v2757
    %v2759 = vxor.u32 %v2737, 2147483648
    %v2760 = vmul.f32 %v2759, 1.442695
    %v2761 = vpow.pop %v2760
    %v2762 = vadd.f32 %v2761, 1.0
    %v2763 = vrcp.pop %v2762
    %v2764 = vmul.f32 %v2762, %v2763
    %v2765 = vsub.f32 1.0, %v2764
    %v2766 = vmul.f32 %v2763, %v2765
    %v2767 = vadd.f32 %v2763, %v2766
    %vm2768 = vweird.f32 %v2762
    %vm2769 = vweird.f32 %v2763
    %vm2770 = vmor %vm2768, %vm2769
    %v2771 = vsel %vm2770, %v2763, %v2767
    %v2772 = vand.u32 2147483647, %v2762
    %vm2773 = vcmp.eq.f32.partialorder %v2772, 8.507059e+37
    %v2774 = vand.u32 %v2762, 2147483648
    %v2775 = vor.u32 1.1754944e-38, %v2774
    %v2776 = vsel %vm2773, %v2775, %v2771
    %v2777 = vmul.f32 1.0, %v2776
    %v2778 = vtanh.pop %v2738
    %v2779 = vxor.u32 %v2739, 2147483648
    %v2780 = vmul.f32 %v2779, 1.442695
    %v2781 = vpow.pop %v2780
    %v2782 = vadd.f32 %v2781, 1.0
    %v2783 = vrcp.pop %v2782
    %v2784 = vmul.f32 %v2782, %v2783
    %v2785 = vsub.f32 1.0, %v2784
    %v2786 = vmul.f32 %v2783, %v2785
    %v2787 = vadd.f32 %v2783, %v2786
    %vm2788 = vweird.f32 %v2782
    %vm2789 = vweird.f32 %v2783
    %vm2790 = vmor %vm2788, %vm2789
    %v2791 = vsel %vm2790, %v2783, %v2787
    %v2792 = vand.u32 2147483647, %v2782
    %vm2793 = vcmp.eq.f32.partialorder %v2792, 8.507059e+37
    %v2794 = vand.u32 %v2782, 2147483648
    %v2795 = vor.u32 1.1754944e-38, %v2794
    %v2796 = vsel %vm2793, %v2795, %v2791
    %v2797 = vmul.f32 1.0, %v2796
    %v2798 = vmul.f32 %v2777, %v2584
    %v2799 = vmul.f32 %v2758, %v2778
    %v2800 = vadd.f32 %v2798, %v2799
    %v2801 = vtanh.pop %v2800
    %v2802 = vmul.f32 %v2797, %v2801
    %2803 = vst [vmem:[#allocation3 + $0x8] sm:$0xff] %v2802
    %v2804 = vld [vmem:[#allocation2 + $0x40] sm:$0xff]
    %v2805 = vld [vmem:[#allocation2 + $0x48] sm:$0xff]
    %v2806 = vld [vmem:[#allocation2 + $0x50] sm:$0xff]
    %v2807 = vld [vmem:[#allocation2 + $0x58] sm:$0xff]
    %v2808 = vld [vmem:[#allocation10] sm:$0xff]
    %v2809 = vld [vmem:[#allocation10 + $0x8] sm:$0xff]
    %v2810 = vld [vmem:[#allocation10 + $0x10] sm:$0xff]
    %v2811 = vld [vmem:[#allocation10 + $0x18] sm:$0xff]
    %v2812 = vld [vmem:[#allocation10 + $0x20] sm:$0xff]
    %v2813 = vld [vmem:[#allocation10 + $0x28] sm:$0xff]
    %v2814 = vld [vmem:[#allocation10 + $0x30] sm:$0xff]
    %v2815 = vld [vmem:[#allocation10 + $0x38] sm:$0xff]
    %v2816 = vld [vmem:[#allocation10 + $0x40] sm:$0xff]
    %v2817 = vld [vmem:[#allocation10 + $0x48] sm:$0xff]
    %v2818 = vld [vmem:[#allocation10 + $0x50] sm:$0xff]
    %v2819 = vld [vmem:[#allocation10 + $0x58] sm:$0xff]
    %v2820 = vld [vmem:[#allocation10 + $0x60] sm:$0xff]
    %v2821 = vld [vmem:[#allocation10 + $0x68] sm:$0xff]
    %v2822 = vld [vmem:[#allocation10 + $0x70] sm:$0xff]
    %v2823 = vld [vmem:[#allocation10 + $0x78] sm:$0xff]
    %v2824 = vld [vmem:[#allocation10 + $0x80] sm:$0xff]
    %v2825 = vld [vmem:[#allocation10 + $0x88] sm:$0xff]
    %v2826 = vld [vmem:[#allocation10 + $0x90] sm:$0xff]
    %v2827 = vld [vmem:[#allocation10 + $0x98] sm:$0xff]
    %v2828 = vld [vmem:[#allocation10 + $0xa0] sm:$0xff]
    %v2829 = vld [vmem:[#allocation10 + $0xa8] sm:$0xff]
    %v2830 = vld [vmem:[#allocation10 + $0xb0] sm:$0xff]
    %v2831 = vld [vmem:[#allocation10 + $0xb8] sm:$0xff]
    %v2832 = vld [vmem:[#allocation10 + $0xc0] sm:$0xff]
    %v2833 = vld [vmem:[#allocation10 + $0xc8] sm:$0xff]
    %v2834 = vld [vmem:[#allocation10 + $0xd0] sm:$0xff]
    %v2835 = vld [vmem:[#allocation10 + $0xd8] sm:$0xff]
    %v2836 = vld [vmem:[#allocation10 + $0xe0] sm:$0xff]
    %v2837 = vld [vmem:[#allocation10 + $0xe8] sm:$0xff]
    %v2838 = vld [vmem:[#allocation10 + $0xf0] sm:$0xff]
    %v2839 = vld [vmem:[#allocation10 + $0xf8] sm:$0xff]
    %v2840 = vld [vmem:[#allocation10 + $0x100] sm:$0xff]
    %v2841 = vld [vmem:[#allocation10 + $0x108] sm:$0xff]
    %v2842 = vld [vmem:[#allocation10 + $0x110] sm:$0xff]
    %v2843 = vld [vmem:[#allocation10 + $0x118] sm:$0xff]
    %v2844 = vld [vmem:[#allocation10 + $0x120] sm:$0xff]
    %v2845 = vld [vmem:[#allocation10 + $0x128] sm:$0xff]
    %v2846 = vld [vmem:[#allocation10 + $0x130] sm:$0xff]
    %v2847 = vld [vmem:[#allocation10 + $0x138] sm:$0xff]
    %v2848 = vld [vmem:[#allocation10 + $0x140] sm:$0xff]
    %v2849 = vld [vmem:[#allocation10 + $0x148] sm:$0xff]
    %v2850 = vld [vmem:[#allocation10 + $0x150] sm:$0xff]
    %v2851 = vld [vmem:[#allocation10 + $0x158] sm:$0xff]
    %v2852 = vld [vmem:[#allocation10 + $0x160] sm:$0xff]
    %v2853 = vld [vmem:[#allocation10 + $0x168] sm:$0xff]
    %v2854 = vld [vmem:[#allocation10 + $0x170] sm:$0xff]
    %v2855 = vld [vmem:[#allocation10 + $0x178] sm:$0xff]
    %v2856 = vld [vmem:[#allocation10 + $0x180] sm:$0xff]
    %v2857 = vld [vmem:[#allocation10 + $0x188] sm:$0xff]
    %v2858 = vld [vmem:[#allocation10 + $0x190] sm:$0xff]
    %v2859 = vld [vmem:[#allocation10 + $0x198] sm:$0xff]
    %v2860 = vld [vmem:[#allocation10 + $0x1a0] sm:$0xff]
    %v2861 = vld [vmem:[#allocation10 + $0x1a8] sm:$0xff]
    %v2862 = vld [vmem:[#allocation10 + $0x1b0] sm:$0xff]
    %v2863 = vld [vmem:[#allocation10 + $0x1b8] sm:$0xff]
    %v2864 = vld [vmem:[#allocation10 + $0x1c0] sm:$0xff]
    %v2865 = vld [vmem:[#allocation10 + $0x1c8] sm:$0xff]
    %v2866 = vld [vmem:[#allocation10 + $0x1d0] sm:$0xff]
    %v2867 = vld [vmem:[#allocation10 + $0x1d8] sm:$0xff]
    %v2868 = vld [vmem:[#allocation10 + $0x1e0] sm:$0xff]
    %v2869 = vld [vmem:[#allocation10 + $0x1e8] sm:$0xff]
    %v2870 = vld [vmem:[#allocation10 + $0x1f0] sm:$0xff]
    %v2871 = vld [vmem:[#allocation10 + $0x1f8] sm:$0xff]
    %2872 = vmatpush.msra.mxu0 %v2868
    %2873 = vmatpush.msra.mxu0 %v2864
    %2874 = vmatpush.msra.mxu0 %v2860
    %2875 = vmatpush.msra.mxu0 %v2856
    %2876 = vmatpush.msra.mxu0 %v2852
    %2877 = vmatpush.msra.mxu0 %v2848
    %2878 = vmatpush.msra.mxu0 %v2844
    %2879 = vmatpush.msra.mxu0 %v2840
    %2880 = vmatpush.msra.mxu0 %v2836
    %2881 = vmatpush.msra.mxu0 %v2832
    %2882 = vmatpush.msra.mxu0 %v2828
    %2883 = vmatpush.msra.mxu0 %v2824
    %2884 = vmatpush.msra.mxu0 %v2820
    %2885 = vmatpush.msra.mxu0 %v2816
    %2886 = vmatpush.msra.mxu0 %v2812
    %2887 = vmatpush.msra.mxu0 %v2808
    %2888 = vmatmul.f32.gmra.mxu0 %v2802
    %v2889 = vpop.f32.mrf.mxu0
    %v2890 = vadd.f32 0.0, %v2889
    %2891 = vdwg.mxu0
    %2892 = vmatpush.msra.mxu0 %v2869
    %2893 = vmatpush.msra.mxu0 %v2865
    %2894 = vmatpush.msra.mxu0 %v2861
    %2895 = vmatpush.msra.mxu0 %v2857
    %2896 = vmatpush.msra.mxu0 %v2853
    %2897 = vmatpush.msra.mxu0 %v2849
    %2898 = vmatpush.msra.mxu0 %v2845
    %2899 = vmatpush.msra.mxu0 %v2841
    %2900 = vmatpush.msra.mxu0 %v2837
    %2901 = vmatpush.msra.mxu0 %v2833
    %2902 = vmatpush.msra.mxu0 %v2829
    %2903 = vmatpush.msra.mxu0 %v2825
    %2904 = vmatpush.msra.mxu0 %v2821
    %2905 = vmatpush.msra.mxu0 %v2817
    %2906 = vmatpush.msra.mxu0 %v2813
    %2907 = vmatpush.msra.mxu0 %v2809
    %2908 = vmatmul.f32.gmra.mxu0 %v2802
    %v2909 = vpop.f32.mrf.mxu0
    %v2910 = vadd.f32 0.0, %v2909
    %2911 = vdwg.mxu0
    %2912 = vmatpush.msra.mxu0 %v2870
    %2913 = vmatpush.msra.mxu0 %v2866
    %2914 = vmatpush.msra.mxu0 %v2862
    %2915 = vmatpush.msra.mxu0 %v2858
    %2916 = vmatpush.msra.mxu0 %v2854
    %2917 = vmatpush.msra.mxu0 %v2850
    %2918 = vmatpush.msra.mxu0 %v2846
    %2919 = vmatpush.msra.mxu0 %v2842
    %2920 = vmatpush.msra.mxu0 %v2838
    %2921 = vmatpush.msra.mxu0 %v2834
    %2922 = vmatpush.msra.mxu0 %v2830
    %2923 = vmatpush.msra.mxu0 %v2826
    %2924 = vmatpush.msra.mxu0 %v2822
    %2925 = vmatpush.msra.mxu0 %v2818
    %2926 = vmatpush.msra.mxu0 %v2814
    %2927 = vmatpush.msra.mxu0 %v2810
    %2928 = vmatmul.f32.gmra.mxu0 %v2802
    %v2929 = vpop.f32.mrf.mxu0
    %v2930 = vadd.f32 0.0, %v2929
    %2931 = vdwg.mxu0
    %2932 = vmatpush.msra.mxu0 %v2871
    %2933 = vmatpush.msra.mxu0 %v2867
    %2934 = vmatpush.msra.mxu0 %v2863
    %2935 = vmatpush.msra.mxu0 %v2859
    %2936 = vmatpush.msra.mxu0 %v2855
    %2937 = vmatpush.msra.mxu0 %v2851
    %2938 = vmatpush.msra.mxu0 %v2847
    %2939 = vmatpush.msra.mxu0 %v2843
    %2940 = vmatpush.msra.mxu0 %v2839
    %2941 = vmatpush.msra.mxu0 %v2835
    %2942 = vmatpush.msra.mxu0 %v2831
    %2943 = vmatpush.msra.mxu0 %v2827
    %2944 = vmatpush.msra.mxu0 %v2823
    %2945 = vmatpush.msra.mxu0 %v2819
    %2946 = vmatpush.msra.mxu0 %v2815
    %2947 = vmatpush.msra.mxu0 %v2811
    %2948 = vmatmul.f32.gmra.mxu0 %v2802
    %v2949 = vpop.f32.mrf.mxu0
    %v2950 = vadd.f32 0.0, %v2949
    %2951 = vdwg.mxu0
    %v2952 = vadd.f32 %v2804, %v2890
    %v2953 = vadd.f32 %v2805, %v2910
    %v2954 = vadd.f32 %v2806, %v2930
    %v2955 = vadd.f32 %v2807, %v2950
    %v2956 = vxor.u32 %v2952, 2147483648
    %v2957 = vmul.f32 %v2956, 1.442695
    %v2958 = vpow.pop %v2957
    %v2959 = vadd.f32 %v2958, 1.0
    %v2960 = vrcp.pop %v2959
    %v2961 = vmul.f32 %v2959, %v2960
    %v2962 = vsub.f32 1.0, %v2961
    %v2963 = vmul.f32 %v2960, %v2962
    %v2964 = vadd.f32 %v2960, %v2963
    %vm2965 = vweird.f32 %v2959
    %vm2966 = vweird.f32 %v2960
    %vm2967 = vmor %vm2965, %vm2966
    %v2968 = vsel %vm2967, %v2960, %v2964
    %v2969 = vand.u32 2147483647, %v2959
    %vm2970 = vcmp.eq.f32.partialorder %v2969, 8.507059e+37
    %v2971 = vand.u32 %v2959, 2147483648
    %v2972 = vor.u32 1.1754944e-38, %v2971
    %v2973 = vsel %vm2970, %v2972, %v2968
    %v2974 = vmul.f32 1.0, %v2973
    %v2975 = vxor.u32 %v2953, 2147483648
    %v2976 = vmul.f32 %v2975, 1.442695
    %v2977 = vpow.pop %v2976
    %v2978 = vadd.f32 %v2977, 1.0
    %v2979 = vrcp.pop %v2978
    %v2980 = vmul.f32 %v2978, %v2979
    %v2981 = vsub.f32 1.0, %v2980
    %v2982 = vmul.f32 %v2979, %v2981
    %v2983 = vadd.f32 %v2979, %v2982
    %vm2984 = vweird.f32 %v2978
    %vm2985 = vweird.f32 %v2979
    %vm2986 = vmor %vm2984, %vm2985
    %v2987 = vsel %vm2986, %v2979, %v2983
    %v2988 = vand.u32 2147483647, %v2978
    %vm2989 = vcmp.eq.f32.partialorder %v2988, 8.507059e+37
    %v2990 = vand.u32 %v2978, 2147483648
    %v2991 = vor.u32 1.1754944e-38, %v2990
    %v2992 = vsel %vm2989, %v2991, %v2987
    %v2993 = vmul.f32 1.0, %v2992
    %v2994 = vtanh.pop %v2954
    %v2995 = vxor.u32 %v2955, 2147483648
    %v2996 = vmul.f32 %v2995, 1.442695
    %v2997 = vpow.pop %v2996
    %v2998 = vadd.f32 %v2997, 1.0
    %v2999 = vrcp.pop %v2998
    %v3000 = vmul.f32 %v2998, %v2999
    %v3001 = vsub.f32 1.0, %v3000
    %v3002 = vmul.f32 %v2999, %v3001
    %v3003 = vadd.f32 %v2999, %v3002
    %vm3004 = vweird.f32 %v2998
    %vm3005 = vweird.f32 %v2999
    %vm3006 = vmor %vm3004, %vm3005
    %v3007 = vsel %vm3006, %v2999, %v3003
    %v3008 = vand.u32 2147483647, %v2998
    %vm3009 = vcmp.eq.f32.partialorder %v3008, 8.507059e+37
    %v3010 = vand.u32 %v2998, 2147483648
    %v3011 = vor.u32 1.1754944e-38, %v3010
    %v3012 = vsel %vm3009, %v3011, %v3007
    %v3013 = vmul.f32 1.0, %v3012
    %v3014 = vmul.f32 %v2993, %v2800
    %v3015 = vmul.f32 %v2974, %v2994
    %v3016 = vadd.f32 %v3014, %v3015
    %v3017 = vtanh.pop %v3016
    %v3018 = vmul.f32 %v3013, %v3017
    %3019 = vst [vmem:[#allocation3 + $0x10] sm:$0xff] %v3018
    %v3020 = vld [vmem:[#allocation2 + $0x60] sm:$0xff]
    %v3021 = vld [vmem:[#allocation2 + $0x68] sm:$0xff]
    %v3022 = vld [vmem:[#allocation2 + $0x70] sm:$0xff]
    %v3023 = vld [vmem:[#allocation2 + $0x78] sm:$0xff]
    %v3024 = vld [vmem:[#allocation10] sm:$0xff]
    %v3025 = vld [vmem:[#allocation10 + $0x8] sm:$0xff]
    %v3026 = vld [vmem:[#allocation10 + $0x10] sm:$0xff]
    %v3027 = vld [vmem:[#allocation10 + $0x18] sm:$0xff]
    %v3028 = vld [vmem:[#allocation10 + $0x20] sm:$0xff]
    %v3029 = vld [vmem:[#allocation10 + $0x28] sm:$0xff]
    %v3030 = vld [vmem:[#allocation10 + $0x30] sm:$0xff]
    %v3031 = vld [vmem:[#allocation10 + $0x38] sm:$0xff]
    %v3032 = vld [vmem:[#allocation10 + $0x40] sm:$0xff]
    %v3033 = vld [vmem:[#allocation10 + $0x48] sm:$0xff]
    %v3034 = vld [vmem:[#allocation10 + $0x50] sm:$0xff]
    %v3035 = vld [vmem:[#allocation10 + $0x58] sm:$0xff]
    %v3036 = vld [vmem:[#allocation10 + $0x60] sm:$0xff]
    %v3037 = vld [vmem:[#allocation10 + $0x68] sm:$0xff]
    %v3038 = vld [vmem:[#allocation10 + $0x70] sm:$0xff]
    %v3039 = vld [vmem:[#allocation10 + $0x78] sm:$0xff]
    %v3040 = vld [vmem:[#allocation10 + $0x80] sm:$0xff]
    %v3041 = vld [vmem:[#allocation10 + $0x88] sm:$0xff]
    %v3042 = vld [vmem:[#allocation10 + $0x90] sm:$0xff]
    %v3043 = vld [vmem:[#allocation10 + $0x98] sm:$0xff]
    %v3044 = vld [vmem:[#allocation10 + $0xa0] sm:$0xff]
    %v3045 = vld [vmem:[#allocation10 + $0xa8] sm:$0xff]
    %v3046 = vld [vmem:[#allocation10 + $0xb0] sm:$0xff]
    %v3047 = vld [vmem:[#allocation10 + $0xb8] sm:$0xff]
    %v3048 = vld [vmem:[#allocation10 + $0xc0] sm:$0xff]
    %v3049 = vld [vmem:[#allocation10 + $0xc8] sm:$0xff]
    %v3050 = vld [vmem:[#allocation10 + $0xd0] sm:$0xff]
    %v3051 = vld [vmem:[#allocation10 + $0xd8] sm:$0xff]
    %v3052 = vld [vmem:[#allocation10 + $0xe0] sm:$0xff]
    %v3053 = vld [vmem:[#allocation10 + $0xe8] sm:$0xff]
    %v3054 = vld [vmem:[#allocation10 + $0xf0] sm:$0xff]
    %v3055 = vld [vmem:[#allocation10 + $0xf8] sm:$0xff]
    %v3056 = vld [vmem:[#allocation10 + $0x100] sm:$0xff]
    %v3057 = vld [vmem:[#allocation10 + $0x108] sm:$0xff]
    %v3058 = vld [vmem:[#allocation10 + $0x110] sm:$0xff]
    %v3059 = vld [vmem:[#allocation10 + $0x118] sm:$0xff]
    %v3060 = vld [vmem:[#allocation10 + $0x120] sm:$0xff]
    %v3061 = vld [vmem:[#allocation10 + $0x128] sm:$0xff]
    %v3062 = vld [vmem:[#allocation10 + $0x130] sm:$0xff]
    %v3063 = vld [vmem:[#allocation10 + $0x138] sm:$0xff]
    %v3064 = vld [vmem:[#allocation10 + $0x140] sm:$0xff]
    %v3065 = vld [vmem:[#allocation10 + $0x148] sm:$0xff]
    %v3066 = vld [vmem:[#allocation10 + $0x150] sm:$0xff]
    %v3067 = vld [vmem:[#allocation10 + $0x158] sm:$0xff]
    %v3068 = vld [vmem:[#allocation10 + $0x160] sm:$0xff]
    %v3069 = vld [vmem:[#allocation10 + $0x168] sm:$0xff]
    %v3070 = vld [vmem:[#allocation10 + $0x170] sm:$0xff]
    %v3071 = vld [vmem:[#allocation10 + $0x178] sm:$0xff]
    %v3072 = vld [vmem:[#allocation10 + $0x180] sm:$0xff]
    %v3073 = vld [vmem:[#allocation10 + $0x188] sm:$0xff]
    %v3074 = vld [vmem:[#allocation10 + $0x190] sm:$0xff]
    %v3075 = vld [vmem:[#allocation10 + $0x198] sm:$0xff]
    %v3076 = vld [vmem:[#allocation10 + $0x1a0] sm:$0xff]
    %v3077 = vld [vmem:[#allocation10 + $0x1a8] sm:$0xff]
    %v3078 = vld [vmem:[#allocation10 + $0x1b0] sm:$0xff]
    %v3079 = vld [vmem:[#allocation10 + $0x1b8] sm:$0xff]
    %v3080 = vld [vmem:[#allocation10 + $0x1c0] sm:$0xff]
    %v3081 = vld [vmem:[#allocation10 + $0x1c8] sm:$0xff]
    %v3082 = vld [vmem:[#allocation10 + $0x1d0] sm:$0xff]
    %v3083 = vld [vmem:[#allocation10 + $0x1d8] sm:$0xff]
    %v3084 = vld [vmem:[#allocation10 + $0x1e0] sm:$0xff]
    %v3085 = vld [vmem:[#allocation10 + $0x1e8] sm:$0xff]
    %v3086 = vld [vmem:[#allocation10 + $0x1f0] sm:$0xff]
    %v3087 = vld [vmem:[#allocation10 + $0x1f8] sm:$0xff]
    %3088 = vmatpush.msra.mxu0 %v3084
    %3089 = vmatpush.msra.mxu0 %v3080
    %3090 = vmatpush.msra.mxu0 %v3076
    %3091 = vmatpush.msra.mxu0 %v3072
    %3092 = vmatpush.msra.mxu0 %v3068
    %3093 = vmatpush.msra.mxu0 %v3064
    %3094 = vmatpush.msra.mxu0 %v3060
    %3095 = vmatpush.msra.mxu0 %v3056
    %3096 = vmatpush.msra.mxu0 %v3052
    %3097 = vmatpush.msra.mxu0 %v3048
    %3098 = vmatpush.msra.mxu0 %v3044
    %3099 = vmatpush.msra.mxu0 %v3040
    %3100 = vmatpush.msra.mxu0 %v3036
    %3101 = vmatpush.msra.mxu0 %v3032
    %3102 = vmatpush.msra.mxu0 %v3028
    %3103 = vmatpush.msra.mxu0 %v3024
    %3104 = vmatmul.f32.gmra.mxu0 %v3018
    %v3105 = vpop.f32.mrf.mxu0
    %v3106 = vadd.f32 0.0, %v3105
    %3107 = vdwg.mxu0
    %3108 = vmatpush.msra.mxu0 %v3085
    %3109 = vmatpush.msra.mxu0 %v3081
    %3110 = vmatpush.msra.mxu0 %v3077
    %3111 = vmatpush.msra.mxu0 %v3073
    %3112 = vmatpush.msra.mxu0 %v3069
    %3113 = vmatpush.msra.mxu0 %v3065
    %3114 = vmatpush.msra.mxu0 %v3061
    %3115 = vmatpush.msra.mxu0 %v3057
    %3116 = vmatpush.msra.mxu0 %v3053
    %3117 = vmatpush.msra.mxu0 %v3049
    %3118 = vmatpush.msra.mxu0 %v3045
    %3119 = vmatpush.msra.mxu0 %v3041
    %3120 = vmatpush.msra.mxu0 %v3037
    %3121 = vmatpush.msra.mxu0 %v3033
    %3122 = vmatpush.msra.mxu0 %v3029
    %3123 = vmatpush.msra.mxu0 %v3025
    %3124 = vmatmul.f32.gmra.mxu0 %v3018
    %v3125 = vpop.f32.mrf.mxu0
    %v3126 = vadd.f32 0.0, %v3125
    %3127 = vdwg.mxu0
    %3128 = vmatpush.msra.mxu0 %v3086
    %3129 = vmatpush.msra.mxu0 %v3082
    %3130 = vmatpush.msra.mxu0 %v3078
    %3131 = vmatpush.msra.mxu0 %v3074
    %3132 = vmatpush.msra.mxu0 %v3070
    %3133 = vmatpush.msra.mxu0 %v3066
    %3134 = vmatpush.msra.mxu0 %v3062
    %3135 = vmatpush.msra.mxu0 %v3058
    %3136 = vmatpush.msra.mxu0 %v3054
    %3137 = vmatpush.msra.mxu0 %v3050
    %3138 = vmatpush.msra.mxu0 %v3046
    %3139 = vmatpush.msra.mxu0 %v3042
    %3140 = vmatpush.msra.mxu0 %v3038
    %3141 = vmatpush.msra.mxu0 %v3034
    %3142 = vmatpush.msra.mxu0 %v3030
    %3143 = vmatpush.msra.mxu0 %v3026
    %3144 = vmatmul.f32.gmra.mxu0 %v3018
    %v3145 = vpop.f32.mrf.mxu0
    %v3146 = vadd.f32 0.0, %v3145
    %3147 = vdwg.mxu0
    %3148 = vmatpush.msra.mxu0 %v3087
    %3149 = vmatpush.msra.mxu0 %v3083
    %3150 = vmatpush.msra.mxu0 %v3079
    %3151 = vmatpush.msra.mxu0 %v3075
    %3152 = vmatpush.msra.mxu0 %v3071
    %3153 = vmatpush.msra.mxu0 %v3067
    %3154 = vmatpush.msra.mxu0 %v3063
    %3155 = vmatpush.msra.mxu0 %v3059
    %3156 = vmatpush.msra.mxu0 %v3055
    %3157 = vmatpush.msra.mxu0 %v3051
    %3158 = vmatpush.msra.mxu0 %v3047
    %3159 = vmatpush.msra.mxu0 %v3043
    %3160 = vmatpush.msra.mxu0 %v3039
    %3161 = vmatpush.msra.mxu0 %v3035
    %3162 = vmatpush.msra.mxu0 %v3031
    %3163 = vmatpush.msra.mxu0 %v3027
    %3164 = vmatmul.f32.gmra.mxu0 %v3018
    %v3165 = vpop.f32.mrf.mxu0
    %v3166 = vadd.f32 0.0, %v3165
    %3167 = vdwg.mxu0
    %v3168 = vadd.f32 %v3020, %v3106
    %v3169 = vadd.f32 %v3021, %v3126
    %v3170 = vadd.f32 %v3022, %v3146
    %v3171 = vadd.f32 %v3023, %v3166
    %v3172 = vxor.u32 %v3168, 2147483648
    %v3173 = vmul.f32 %v3172, 1.442695
    %v3174 = vpow.pop %v3173
    %v3175 = vadd.f32 %v3174, 1.0
    %v3176 = vrcp.pop %v3175
    %v3177 = vmul.f32 %v3175, %v3176
    %v3178 = vsub.f32 1.0, %v3177
    %v3179 = vmul.f32 %v3176, %v3178
    %v3180 = vadd.f32 %v3176, %v3179
    %vm3181 = vweird.f32 %v3175
    %vm3182 = vweird.f32 %v3176
    %vm3183 = vmor %vm3181, %vm3182
    %v3184 = vsel %vm3183, %v3176, %v3180
    %v3185 = vand.u32 2147483647, %v3175
    %vm3186 = vcmp.eq.f32.partialorder %v3185, 8.507059e+37
    %v3187 = vand.u32 %v3175, 2147483648
    %v3188 = vor.u32 1.1754944e-38, %v3187
    %v3189 = vsel %vm3186, %v3188, %v3184
    %v3190 = vmul.f32 1.0, %v3189
    %v3191 = vxor.u32 %v3169, 2147483648
    %v3192 = vmul.f32 %v3191, 1.442695
    %v3193 = vpow.pop %v3192
    %v3194 = vadd.f32 %v3193, 1.0
    %v3195 = vrcp.pop %v3194
    %v3196 = vmul.f32 %v3194, %v3195
    %v3197 = vsub.f32 1.0, %v3196
    %v3198 = vmul.f32 %v3195, %v3197
    %v3199 = vadd.f32 %v3195, %v3198
    %vm3200 = vweird.f32 %v3194
    %vm3201 = vweird.f32 %v3195
    %vm3202 = vmor %vm3200, %vm3201
    %v3203 = vsel %vm3202, %v3195, %v3199
    %v3204 = vand.u32 2147483647, %v3194
    %vm3205 = vcmp.eq.f32.partialorder %v3204, 8.507059e+37
    %v3206 = vand.u32 %v3194, 2147483648
    %v3207 = vor.u32 1.1754944e-38, %v3206
    %v3208 = vsel %vm3205, %v3207, %v3203
    %v3209 = vmul.f32 1.0, %v3208
    %v3210 = vtanh.pop %v3170
    %v3211 = vxor.u32 %v3171, 2147483648
    %v3212 = vmul.f32 %v3211, 1.442695
    %v3213 = vpow.pop %v3212
    %v3214 = vadd.f32 %v3213, 1.0
    %v3215 = vrcp.pop %v3214
    %v3216 = vmul.f32 %v3214, %v3215
    %v3217 = vsub.f32 1.0, %v3216
    %v3218 = vmul.f32 %v3215, %v3217
    %v3219 = vadd.f32 %v3215, %v3218
    %vm3220 = vweird.f32 %v3214
    %vm3221 = vweird.f32 %v3215
    %vm3222 = vmor %vm3220, %vm3221
    %v3223 = vsel %vm3222, %v3215, %v3219
    %v3224 = vand.u32 2147483647, %v3214
    %vm3225 = vcmp.eq.f32.partialorder %v3224, 8.507059e+37
    %v3226 = vand.u32 %v3214, 2147483648
    %v3227 = vor.u32 1.1754944e-38, %v3226
    %v3228 = vsel %vm3225, %v3227, %v3223
    %v3229 = vmul.f32 1.0, %v3228
    %v3230 = vmul.f32 %v3209, %v3016
    %v3231 = vmul.f32 %v3190, %v3210
    %v3232 = vadd.f32 %v3230, %v3231
    %v3233 = vtanh.pop %v3232
    %v3234 = vmul.f32 %v3229, %v3233
    %3235 = vst [vmem:[#allocation3 + $0x18] sm:$0xff] %v3234
    %v3236 = vld [vmem:[#allocation2 + $0x80] sm:$0xff]
    %v3237 = vld [vmem:[#allocation2 + $0x88] sm:$0xff]
    %v3238 = vld [vmem:[#allocation2 + $0x90] sm:$0xff]
    %v3239 = vld [vmem:[#allocation2 + $0x98] sm:$0xff]
    %v3240 = vld [vmem:[#allocation10] sm:$0xff]
    %v3241 = vld [vmem:[#allocation10 + $0x8] sm:$0xff]
    %v3242 = vld [vmem:[#allocation10 + $0x10] sm:$0xff]
    %v3243 = vld [vmem:[#allocation10 + $0x18] sm:$0xff]
    %v3244 = vld [vmem:[#allocation10 + $0x20] sm:$0xff]
    %v3245 = vld [vmem:[#allocation10 + $0x28] sm:$0xff]
    %v3246 = vld [vmem:[#allocation10 + $0x30] sm:$0xff]
    %v3247 = vld [vmem:[#allocation10 + $0x38] sm:$0xff]
    %v3248 = vld [vmem:[#allocation10 + $0x40] sm:$0xff]
    %v3249 = vld [vmem:[#allocation10 + $0x48] sm:$0xff]
    %v3250 = vld [vmem:[#allocation10 + $0x50] sm:$0xff]
    %v3251 = vld [vmem:[#allocation10 + $0x58] sm:$0xff]
    %v3252 = vld [vmem:[#allocation10 + $0x60] sm:$0xff]
    %v3253 = vld [vmem:[#allocation10 + $0x68] sm:$0xff]
    %v3254 = vld [vmem:[#allocation10 + $0x70] sm:$0xff]
    %v3255 = vld [vmem:[#allocation10 + $0x78] sm:$0xff]
    %v3256 = vld [vmem:[#allocation10 + $0x80] sm:$0xff]
    %v3257 = vld [vmem:[#allocation10 + $0x88] sm:$0xff]
    %v3258 = vld [vmem:[#allocation10 + $0x90] sm:$0xff]
    %v3259 = vld [vmem:[#allocation10 + $0x98] sm:$0xff]
    %v3260 = vld [vmem:[#allocation10 + $0xa0] sm:$0xff]
    %v3261 = vld [vmem:[#allocation10 + $0xa8] sm:$0xff]
    %v3262 = vld [vmem:[#allocation10 + $0xb0] sm:$0xff]
    %v3263 = vld [vmem:[#allocation10 + $0xb8] sm:$0xff]
    %v3264 = vld [vmem:[#allocation10 + $0xc0] sm:$0xff]
    %v3265 = vld [vmem:[#allocation10 + $0xc8] sm:$0xff]
    %v3266 = vld [vmem:[#allocation10 + $0xd0] sm:$0xff]
    %v3267 = vld [vmem:[#allocation10 + $0xd8] sm:$0xff]
    %v3268 = vld [vmem:[#allocation10 + $0xe0] sm:$0xff]
    %v3269 = vld [vmem:[#allocation10 + $0xe8] sm:$0xff]
    %v3270 = vld [vmem:[#allocation10 + $0xf0] sm:$0xff]
    %v3271 = vld [vmem:[#allocation10 + $0xf8] sm:$0xff]
    %v3272 = vld [vmem:[#allocation10 + $0x100] sm:$0xff]
    %v3273 = vld [vmem:[#allocation10 + $0x108] sm:$0xff]
    %v3274 = vld [vmem:[#allocation10 + $0x110] sm:$0xff]
    %v3275 = vld [vmem:[#allocation10 + $0x118] sm:$0xff]
    %v3276 = vld [vmem:[#allocation10 + $0x120] sm:$0xff]
    %v3277 = vld [vmem:[#allocation10 + $0x128] sm:$0xff]
    %v3278 = vld [vmem:[#allocation10 + $0x130] sm:$0xff]
    %v3279 = vld [vmem:[#allocation10 + $0x138] sm:$0xff]
    %v3280 = vld [vmem:[#allocation10 + $0x140] sm:$0xff]
    %v3281 = vld [vmem:[#allocation10 + $0x148] sm:$0xff]
    %v3282 = vld [vmem:[#allocation10 + $0x150] sm:$0xff]
    %v3283 = vld [vmem:[#allocation10 + $0x158] sm:$0xff]
    %v3284 = vld [vmem:[#allocation10 + $0x160] sm:$0xff]
    %v3285 = vld [vmem:[#allocation10 + $0x168] sm:$0xff]
    %v3286 = vld [vmem:[#allocation10 + $0x170] sm:$0xff]
    %v3287 = vld [vmem:[#allocation10 + $0x178] sm:$0xff]
    %v3288 = vld [vmem:[#allocation10 + $0x180] sm:$0xff]
    %v3289 = vld [vmem:[#allocation10 + $0x188] sm:$0xff]
    %v3290 = vld [vmem:[#allocation10 + $0x190] sm:$0xff]
    %v3291 = vld [vmem:[#allocation10 + $0x198] sm:$0xff]
    %v3292 = vld [vmem:[#allocation10 + $0x1a0] sm:$0xff]
    %v3293 = vld [vmem:[#allocation10 + $0x1a8] sm:$0xff]
    %v3294 = vld [vmem:[#allocation10 + $0x1b0] sm:$0xff]
    %v3295 = vld [vmem:[#allocation10 + $0x1b8] sm:$0xff]
    %v3296 = vld [vmem:[#allocation10 + $0x1c0] sm:$0xff]
    %v3297 = vld [vmem:[#allocation10 + $0x1c8] sm:$0xff]
    %v3298 = vld [vmem:[#allocation10 + $0x1d0] sm:$0xff]
    %v3299 = vld [vmem:[#allocation10 + $0x1d8] sm:$0xff]
    %v3300 = vld [vmem:[#allocation10 + $0x1e0] sm:$0xff]
    %v3301 = vld [vmem:[#allocation10 + $0x1e8] sm:$0xff]
    %v3302 = vld [vmem:[#allocation10 + $0x1f0] sm:$0xff]
    %v3303 = vld [vmem:[#allocation10 + $0x1f8] sm:$0xff]
    %3304 = vmatpush.msra.mxu0 %v3300
    %3305 = vmatpush.msra.mxu0 %v3296
    %3306 = vmatpush.msra.mxu0 %v3292
    %3307 = vmatpush.msra.mxu0 %v3288
    %3308 = vmatpush.msra.mxu0 %v3284
    %3309 = vmatpush.msra.mxu0 %v3280
    %3310 = vmatpush.msra.mxu0 %v3276
    %3311 = vmatpush.msra.mxu0 %v3272
    %3312 = vmatpush.msra.mxu0 %v3268
    %3313 = vmatpush.msra.mxu0 %v3264
    %3314 = vmatpush.msra.mxu0 %v3260
    %3315 = vmatpush.msra.mxu0 %v3256
    %3316 = vmatpush.msra.mxu0 %v3252
    %3317 = vmatpush.msra.mxu0 %v3248
    %3318 = vmatpush.msra.mxu0 %v3244
    %3319 = vmatpush.msra.mxu0 %v3240
    %3320 = vmatmul.f32.gmra.mxu0 %v3234
    %v3321 = vpop.f32.mrf.mxu0
    %v3322 = vadd.f32 0.0, %v3321
    %3323 = vdwg.mxu0
    %3324 = vmatpush.msra.mxu0 %v3301
    %3325 = vmatpush.msra.mxu0 %v3297
    %3326 = vmatpush.msra.mxu0 %v3293
    %3327 = vmatpush.msra.mxu0 %v3289
    %3328 = vmatpush.msra.mxu0 %v3285
    %3329 = vmatpush.msra.mxu0 %v3281
    %3330 = vmatpush.msra.mxu0 %v3277
    %3331 = vmatpush.msra.mxu0 %v3273
    %3332 = vmatpush.msra.mxu0 %v3269
    %3333 = vmatpush.msra.mxu0 %v3265
    %3334 = vmatpush.msra.mxu0 %v3261
    %3335 = vmatpush.msra.mxu0 %v3257
    %3336 = vmatpush.msra.mxu0 %v3253
    %3337 = vmatpush.msra.mxu0 %v3249
    %3338 = vmatpush.msra.mxu0 %v3245
    %3339 = vmatpush.msra.mxu0 %v3241
    %3340 = vmatmul.f32.gmra.mxu0 %v3234
    %v3341 = vpop.f32.mrf.mxu0
    %v3342 = vadd.f32 0.0, %v3341
    %3343 = vdwg.mxu0
    %3344 = vmatpush.msra.mxu0 %v3302
    %3345 = vmatpush.msra.mxu0 %v3298
    %3346 = vmatpush.msra.mxu0 %v3294
    %3347 = vmatpush.msra.mxu0 %v3290
    %3348 = vmatpush.msra.mxu0 %v3286
    %3349 = vmatpush.msra.mxu0 %v3282
    %3350 = vmatpush.msra.mxu0 %v3278
    %3351 = vmatpush.msra.mxu0 %v3274
    %3352 = vmatpush.msra.mxu0 %v3270
    %3353 = vmatpush.msra.mxu0 %v3266
    %3354 = vmatpush.msra.mxu0 %v3262
    %3355 = vmatpush.msra.mxu0 %v3258
    %3356 = vmatpush.msra.mxu0 %v3254
    %3357 = vmatpush.msra.mxu0 %v3250
    %3358 = vmatpush.msra.mxu0 %v3246
    %3359 = vmatpush.msra.mxu0 %v3242
    %3360 = vmatmul.f32.gmra.mxu0 %v3234
    %v3361 = vpop.f32.mrf.mxu0
    %v3362 = vadd.f32 0.0, %v3361
    %3363 = vdwg.mxu0
    %3364 = vmatpush.msra.mxu0 %v3303
    %3365 = vmatpush.msra.mxu0 %v3299
    %3366 = vmatpush.msra.mxu0 %v3295
    %3367 = vmatpush.msra.mxu0 %v3291
    %3368 = vmatpush.msra.mxu0 %v3287
    %3369 = vmatpush.msra.mxu0 %v3283
    %3370 = vmatpush.msra.mxu0 %v3279
    %3371 = vmatpush.msra.mxu0 %v3275
    %3372 = vmatpush.msra.mxu0 %v3271
    %3373 = vmatpush.msra.mxu0 %v3267
    %3374 = vmatpush.msra.mxu0 %v3263
    %3375 = vmatpush.msra.mxu0 %v3259
    %3376 = vmatpush.msra.mxu0 %v3255
    %3377 = vmatpush.msra.mxu0 %v3251
    %3378 = vmatpush.msra.mxu0 %v3247
    %3379 = vmatpush.msra.mxu0 %v3243
    %3380 = vmatmul.f32.gmra.mxu0 %v3234
    %v3381 = vpop.f32.mrf.mxu0
    %v3382 = vadd.f32 0.0, %v3381
    %3383 = vdwg.mxu0
    %v3384 = vadd.f32 %v3236, %v3322
    %v3385 = vadd.f32 %v3237, %v3342
    %v3386 = vadd.f32 %v3238, %v3362
    %v3387 = vadd.f32 %v3239, %v3382
    %v3388 = vxor.u32 %v3384, 2147483648
    %v3389 = vmul.f32 %v3388, 1.442695
    %v3390 = vpow.pop %v3389
    %v3391 = vadd.f32 %v3390, 1.0
    %v3392 = vrcp.pop %v3391
    %v3393 = vmul.f32 %v3391, %v3392
    %v3394 = vsub.f32 1.0, %v3393
    %v3395 = vmul.f32 %v3392, %v3394
    %v3396 = vadd.f32 %v3392, %v3395
    %vm3397 = vweird.f32 %v3391
    %vm3398 = vweird.f32 %v3392
    %vm3399 = vmor %vm3397, %vm3398
    %v3400 = vsel %vm3399, %v3392, %v3396
    %v3401 = vand.u32 2147483647, %v3391
    %vm3402 = vcmp.eq.f32.partialorder %v3401, 8.507059e+37
    %v3403 = vand.u32 %v3391, 2147483648
    %v3404 = vor.u32 1.1754944e-38, %v3403
    %v3405 = vsel %vm3402, %v3404, %v3400
    %v3406 = vmul.f32 1.0, %v3405
    %v3407 = vxor.u32 %v3385, 2147483648
    %v3408 = vmul.f32 %v3407, 1.442695
    %v3409 = vpow.pop %v3408
    %v3410 = vadd.f32 %v3409, 1.0
    %v3411 = vrcp.pop %v3410
    %v3412 = vmul.f32 %v3410, %v3411
    %v3413 = vsub.f32 1.0, %v3412
    %v3414 = vmul.f32 %v3411, %v3413
    %v3415 = vadd.f32 %v3411, %v3414
    %vm3416 = vweird.f32 %v3410
    %vm3417 = vweird.f32 %v3411
    %vm3418 = vmor %vm3416, %vm3417
    %v3419 = vsel %vm3418, %v3411, %v3415
    %v3420 = vand.u32 2147483647, %v3410
    %vm3421 = vcmp.eq.f32.partialorder %v3420, 8.507059e+37
    %v3422 = vand.u32 %v3410, 2147483648
    %v3423 = vor.u32 1.1754944e-38, %v3422
    %v3424 = vsel %vm3421, %v3423, %v3419
    %v3425 = vmul.f32 1.0, %v3424
    %v3426 = vtanh.pop %v3386
    %v3427 = vxor.u32 %v3387, 2147483648
    %v3428 = vmul.f32 %v3427, 1.442695
    %v3429 = vpow.pop %v3428
    %v3430 = vadd.f32 %v3429, 1.0
    %v3431 = vrcp.pop %v3430
    %v3432 = vmul.f32 %v3430, %v3431
    %v3433 = vsub.f32 1.0, %v3432
    %v3434 = vmul.f32 %v3431, %v3433
    %v3435 = vadd.f32 %v3431, %v3434
    %vm3436 = vweird.f32 %v3430
    %vm3437 = vweird.f32 %v3431
    %vm3438 = vmor %vm3436, %vm3437
    %v3439 = vsel %vm3438, %v3431, %v3435
    %v3440 = vand.u32 2147483647, %v3430
    %vm3441 = vcmp.eq.f32.partialorder %v3440, 8.507059e+37
    %v3442 = vand.u32 %v3430, 2147483648
    %v3443 = vor.u32 1.1754944e-38, %v3442
    %v3444 = vsel %vm3441, %v3443, %v3439
    %v3445 = vmul.f32 1.0, %v3444
    %v3446 = vmul.f32 %v3425, %v3232
    %v3447 = vmul.f32 %v3406, %v3426
    %v3448 = vadd.f32 %v3446, %v3447
    %v3449 = vtanh.pop %v3448
    %v3450 = vmul.f32 %v3445, %v3449
    %3451 = vst [vmem:[#allocation3 + $0x20] sm:$0xff] %v3450
    %v3452 = vld [vmem:[#allocation2 + $0xa0] sm:$0xff]
    %v3453 = vld [vmem:[#allocation2 + $0xa8] sm:$0xff]
    %v3454 = vld [vmem:[#allocation2 + $0xb0] sm:$0xff]
    %v3455 = vld [vmem:[#allocation2 + $0xb8] sm:$0xff]
    %v3456 = vld [vmem:[#allocation10] sm:$0xff]
    %v3457 = vld [vmem:[#allocation10 + $0x8] sm:$0xff]
    %v3458 = vld [vmem:[#allocation10 + $0x10] sm:$0xff]
    %v3459 = vld [vmem:[#allocation10 + $0x18] sm:$0xff]
    %v3460 = vld [vmem:[#allocation10 + $0x20] sm:$0xff]
    %v3461 = vld [vmem:[#allocation10 + $0x28] sm:$0xff]
    %v3462 = vld [vmem:[#allocation10 + $0x30] sm:$0xff]
    %v3463 = vld [vmem:[#allocation10 + $0x38] sm:$0xff]
    %v3464 = vld [vmem:[#allocation10 + $0x40] sm:$0xff]
    %v3465 = vld [vmem:[#allocation10 + $0x48] sm:$0xff]
    %v3466 = vld [vmem:[#allocation10 + $0x50] sm:$0xff]
    %v3467 = vld [vmem:[#allocation10 + $0x58] sm:$0xff]
    %v3468 = vld [vmem:[#allocation10 + $0x60] sm:$0xff]
    %v3469 = vld [vmem:[#allocation10 + $0x68] sm:$0xff]
    %v3470 = vld [vmem:[#allocation10 + $0x70] sm:$0xff]
    %v3471 = vld [vmem:[#allocation10 + $0x78] sm:$0xff]
    %v3472 = vld [vmem:[#allocation10 + $0x80] sm:$0xff]
    %v3473 = vld [vmem:[#allocation10 + $0x88] sm:$0xff]
    %v3474 = vld [vmem:[#allocation10 + $0x90] sm:$0xff]
    %v3475 = vld [vmem:[#allocation10 + $0x98] sm:$0xff]
    %v3476 = vld [vmem:[#allocation10 + $0xa0] sm:$0xff]
    %v3477 = vld [vmem:[#allocation10 + $0xa8] sm:$0xff]
    %v3478 = vld [vmem:[#allocation10 + $0xb0] sm:$0xff]
    %v3479 = vld [vmem:[#allocation10 + $0xb8] sm:$0xff]
    %v3480 = vld [vmem:[#allocation10 + $0xc0] sm:$0xff]
    %v3481 = vld [vmem:[#allocation10 + $0xc8] sm:$0xff]
    %v3482 = vld [vmem:[#allocation10 + $0xd0] sm:$0xff]
    %v3483 = vld [vmem:[#allocation10 + $0xd8] sm:$0xff]
    %v3484 = vld [vmem:[#allocation10 + $0xe0] sm:$0xff]
    %v3485 = vld [vmem:[#allocation10 + $0xe8] sm:$0xff]
    %v3486 = vld [vmem:[#allocation10 + $0xf0] sm:$0xff]
    %v3487 = vld [vmem:[#allocation10 + $0xf8] sm:$0xff]
    %v3488 = vld [vmem:[#allocation10 + $0x100] sm:$0xff]
    %v3489 = vld [vmem:[#allocation10 + $0x108] sm:$0xff]
    %v3490 = vld [vmem:[#allocation10 + $0x110] sm:$0xff]
    %v3491 = vld [vmem:[#allocation10 + $0x118] sm:$0xff]
    %v3492 = vld [vmem:[#allocation10 + $0x120] sm:$0xff]
    %v3493 = vld [vmem:[#allocation10 + $0x128] sm:$0xff]
    %v3494 = vld [vmem:[#allocation10 + $0x130] sm:$0xff]
    %v3495 = vld [vmem:[#allocation10 + $0x138] sm:$0xff]
    %v3496 = vld [vmem:[#allocation10 + $0x140] sm:$0xff]
    %v3497 = vld [vmem:[#allocation10 + $0x148] sm:$0xff]
    %v3498 = vld [vmem:[#allocation10 + $0x150] sm:$0xff]
    %v3499 = vld [vmem:[#allocation10 + $0x158] sm:$0xff]
    %v3500 = vld [vmem:[#allocation10 + $0x160] sm:$0xff]
    %v3501 = vld [vmem:[#allocation10 + $0x168] sm:$0xff]
    %v3502 = vld [vmem:[#allocation10 + $0x170] sm:$0xff]
    %v3503 = vld [vmem:[#allocation10 + $0x178] sm:$0xff]
    %v3504 = vld [vmem:[#allocation10 + $0x180] sm:$0xff]
    %v3505 = vld [vmem:[#allocation10 + $0x188] sm:$0xff]
    %v3506 = vld [vmem:[#allocation10 + $0x190] sm:$0xff]
    %v3507 = vld [vmem:[#allocation10 + $0x198] sm:$0xff]
    %v3508 = vld [vmem:[#allocation10 + $0x1a0] sm:$0xff]
    %v3509 = vld [vmem:[#allocation10 + $0x1a8] sm:$0xff]
    %v3510 = vld [vmem:[#allocation10 + $0x1b0] sm:$0xff]
    %v3511 = vld [vmem:[#allocation10 + $0x1b8] sm:$0xff]
    %v3512 = vld [vmem:[#allocation10 + $0x1c0] sm:$0xff]
    %v3513 = vld [vmem:[#allocation10 + $0x1c8] sm:$0xff]
    %v3514 = vld [vmem:[#allocation10 + $0x1d0] sm:$0xff]
    %v3515 = vld [vmem:[#allocation10 + $0x1d8] sm:$0xff]
    %v3516 = vld [vmem:[#allocation10 + $0x1e0] sm:$0xff]
    %v3517 = vld [vmem:[#allocation10 + $0x1e8] sm:$0xff]
    %v3518 = vld [vmem:[#allocation10 + $0x1f0] sm:$0xff]
    %v3519 = vld [vmem:[#allocation10 + $0x1f8] sm:$0xff]
    %3520 = vmatpush.msra.mxu0 %v3516
    %3521 = vmatpush.msra.mxu0 %v3512
    %3522 = vmatpush.msra.mxu0 %v3508
    %3523 = vmatpush.msra.mxu0 %v3504
    %3524 = vmatpush.msra.mxu0 %v3500
    %3525 = vmatpush.msra.mxu0 %v3496
    %3526 = vmatpush.msra.mxu0 %v3492
    %3527 = vmatpush.msra.mxu0 %v3488
    %3528 = vmatpush.msra.mxu0 %v3484
    %3529 = vmatpush.msra.mxu0 %v3480
    %3530 = vmatpush.msra.mxu0 %v3476
    %3531 = vmatpush.msra.mxu0 %v3472
    %3532 = vmatpush.msra.mxu0 %v3468
    %3533 = vmatpush.msra.mxu0 %v3464
    %3534 = vmatpush.msra.mxu0 %v3460
    %3535 = vmatpush.msra.mxu0 %v3456
    %3536 = vmatmul.f32.gmra.mxu0 %v3450
    %v3537 = vpop.f32.mrf.mxu0
    %v3538 = vadd.f32 0.0, %v3537
    %3539 = vdwg.mxu0
    %3540 = vmatpush.msra.mxu0 %v3517
    %3541 = vmatpush.msra.mxu0 %v3513
    %3542 = vmatpush.msra.mxu0 %v3509
    %3543 = vmatpush.msra.mxu0 %v3505
    %3544 = vmatpush.msra.mxu0 %v3501
    %3545 = vmatpush.msra.mxu0 %v3497
    %3546 = vmatpush.msra.mxu0 %v3493
    %3547 = vmatpush.msra.mxu0 %v3489
    %3548 = vmatpush.msra.mxu0 %v3485
    %3549 = vmatpush.msra.mxu0 %v3481
    %3550 = vmatpush.msra.mxu0 %v3477
    %3551 = vmatpush.msra.mxu0 %v3473
    %3552 = vmatpush.msra.mxu0 %v3469
    %3553 = vmatpush.msra.mxu0 %v3465
    %3554 = vmatpush.msra.mxu0 %v3461
    %3555 = vmatpush.msra.mxu0 %v3457
    %3556 = vmatmul.f32.gmra.mxu0 %v3450
    %v3557 = vpop.f32.mrf.mxu0
    %v3558 = vadd.f32 0.0, %v3557
    %3559 = vdwg.mxu0
    %3560 = vmatpush.msra.mxu0 %v3518
    %3561 = vmatpush.msra.mxu0 %v3514
    %3562 = vmatpush.msra.mxu0 %v3510
    %3563 = vmatpush.msra.mxu0 %v3506
    %3564 = vmatpush.msra.mxu0 %v3502
    %3565 = vmatpush.msra.mxu0 %v3498
    %3566 = vmatpush.msra.mxu0 %v3494
    %3567 = vmatpush.msra.mxu0 %v3490
    %3568 = vmatpush.msra.mxu0 %v3486
    %3569 = vmatpush.msra.mxu0 %v3482
    %3570 = vmatpush.msra.mxu0 %v3478
    %3571 = vmatpush.msra.mxu0 %v3474
    %3572 = vmatpush.msra.mxu0 %v3470
    %3573 = vmatpush.msra.mxu0 %v3466
    %3574 = vmatpush.msra.mxu0 %v3462
    %3575 = vmatpush.msra.mxu0 %v3458
    %3576 = vmatmul.f32.gmra.mxu0 %v3450
    %v3577 = vpop.f32.mrf.mxu0
    %v3578 = vadd.f32 0.0, %v3577
    %3579 = vdwg.mxu0
    %3580 = vmatpush.msra.mxu0 %v3519
    %3581 = vmatpush.msra.mxu0 %v3515
    %3582 = vmatpush.msra.mxu0 %v3511
    %3583 = vmatpush.msra.mxu0 %v3507
    %3584 = vmatpush.msra.mxu0 %v3503
    %3585 = vmatpush.msra.mxu0 %v3499
    %3586 = vmatpush.msra.mxu0 %v3495
    %3587 = vmatpush.msra.mxu0 %v3491
    %3588 = vmatpush.msra.mxu0 %v3487
    %3589 = vmatpush.msra.mxu0 %v3483
    %3590 = vmatpush.msra.mxu0 %v3479
    %3591 = vmatpush.msra.mxu0 %v3475
    %3592 = vmatpush.msra.mxu0 %v3471
    %3593 = vmatpush.msra.mxu0 %v3467
    %3594 = vmatpush.msra.mxu0 %v3463
    %3595 = vmatpush.msra.mxu0 %v3459
    %3596 = vmatmul.f32.gmra.mxu0 %v3450
    %v3597 = vpop.f32.mrf.mxu0
    %v3598 = vadd.f32 0.0, %v3597
    %3599 = vdwg.mxu0
    %v3600 = vadd.f32 %v3452, %v3538
    %v3601 = vadd.f32 %v3453, %v3558
    %v3602 = vadd.f32 %v3454, %v3578
    %v3603 = vadd.f32 %v3455, %v3598
    %v3604 = vxor.u32 %v3600, 2147483648
    %v3605 = vmul.f32 %v3604, 1.442695
    %v3606 = vpow.pop %v3605
    %v3607 = vadd.f32 %v3606, 1.0
    %v3608 = vrcp.pop %v3607
    %v3609 = vmul.f32 %v3607, %v3608
    %v3610 = vsub.f32 1.0, %v3609
    %v3611 = vmul.f32 %v3608, %v3610
    %v3612 = vadd.f32 %v3608, %v3611
    %vm3613 = vweird.f32 %v3607
    %vm3614 = vweird.f32 %v3608
    %vm3615 = vmor %vm3613, %vm3614
    %v3616 = vsel %vm3615, %v3608, %v3612
    %v3617 = vand.u32 2147483647, %v3607
    %vm3618 = vcmp.eq.f32.partialorder %v3617, 8.507059e+37
    %v3619 = vand.u32 %v3607, 2147483648
    %v3620 = vor.u32 1.1754944e-38, %v3619
    %v3621 = vsel %vm3618, %v3620, %v3616
    %v3622 = vmul.f32 1.0, %v3621
    %v3623 = vxor.u32 %v3601, 2147483648
    %v3624 = vmul.f32 %v3623, 1.442695
    %v3625 = vpow.pop %v3624
    %v3626 = vadd.f32 %v3625, 1.0
    %v3627 = vrcp.pop %v3626
    %v3628 = vmul.f32 %v3626, %v3627
    %v3629 = vsub.f32 1.0, %v3628
    %v3630 = vmul.f32 %v3627, %v3629
    %v3631 = vadd.f32 %v3627, %v3630
    %vm3632 = vweird.f32 %v3626
    %vm3633 = vweird.f32 %v3627
    %vm3634 = vmor %vm3632, %vm3633
    %v3635 = vsel %vm3634, %v3627, %v3631
    %v3636 = vand.u32 2147483647, %v3626
    %vm3637 = vcmp.eq.f32.partialorder %v3636, 8.507059e+37
    %v3638 = vand.u32 %v3626, 2147483648
    %v3639 = vor.u32 1.1754944e-38, %v3638
    %v3640 = vsel %vm3637, %v3639, %v3635
    %v3641 = vmul.f32 1.0, %v3640
    %v3642 = vtanh.pop %v3602
    %v3643 = vxor.u32 %v3603, 2147483648
    %v3644 = vmul.f32 %v3643, 1.442695
    %v3645 = vpow.pop %v3644
    %v3646 = vadd.f32 %v3645, 1.0
    %v3647 = vrcp.pop %v3646
    %v3648 = vmul.f32 %v3646, %v3647
    %v3649 = vsub.f32 1.0, %v3648
    %v3650 = vmul.f32 %v3647, %v3649
    %v3651 = vadd.f32 %v3647, %v3650
    %vm3652 = vweird.f32 %v3646
    %vm3653 = vweird.f32 %v3647
    %vm3654 = vmor %vm3652, %vm3653
    %v3655 = vsel %vm3654, %v3647, %v3651
    %v3656 = vand.u32 2147483647, %v3646
    %vm3657 = vcmp.eq.f32.partialorder %v3656, 8.507059e+37
    %v3658 = vand.u32 %v3646, 2147483648
    %v3659 = vor.u32 1.1754944e-38, %v3658
    %v3660 = vsel %vm3657, %v3659, %v3655
    %v3661 = vmul.f32 1.0, %v3660
    %v3662 = vmul.f32 %v3641, %v3448
    %v3663 = vmul.f32 %v3622, %v3642
    %v3664 = vadd.f32 %v3662, %v3663
    %v3665 = vtanh.pop %v3664
    %v3666 = vmul.f32 %v3661, %v3665
    %3667 = vst [vmem:[#allocation3 + $0x28] sm:$0xff] %v3666
    %v3668 = vld [vmem:[#allocation2 + $0xc0] sm:$0xff]
    %v3669 = vld [vmem:[#allocation2 + $0xc8] sm:$0xff]
    %v3670 = vld [vmem:[#allocation2 + $0xd0] sm:$0xff]
    %v3671 = vld [vmem:[#allocation2 + $0xd8] sm:$0xff]
    %v3672 = vld [vmem:[#allocation10] sm:$0xff]
    %v3673 = vld [vmem:[#allocation10 + $0x8] sm:$0xff]
    %v3674 = vld [vmem:[#allocation10 + $0x10] sm:$0xff]
    %v3675 = vld [vmem:[#allocation10 + $0x18] sm:$0xff]
    %v3676 = vld [vmem:[#allocation10 + $0x20] sm:$0xff]
    %v3677 = vld [vmem:[#allocation10 + $0x28] sm:$0xff]
    %v3678 = vld [vmem:[#allocation10 + $0x30] sm:$0xff]
    %v3679 = vld [vmem:[#allocation10 + $0x38] sm:$0xff]
    %v3680 = vld [vmem:[#allocation10 + $0x40] sm:$0xff]
    %v3681 = vld [vmem:[#allocation10 + $0x48] sm:$0xff]
    %v3682 = vld [vmem:[#allocation10 + $0x50] sm:$0xff]
    %v3683 = vld [vmem:[#allocation10 + $0x58] sm:$0xff]
    %v3684 = vld [vmem:[#allocation10 + $0x60] sm:$0xff]
    %v3685 = vld [vmem:[#allocation10 + $0x68] sm:$0xff]
    %v3686 = vld [vmem:[#allocation10 + $0x70] sm:$0xff]
    %v3687 = vld [vmem:[#allocation10 + $0x78] sm:$0xff]
    %v3688 = vld [vmem:[#allocation10 + $0x80] sm:$0xff]
    %v3689 = vld [vmem:[#allocation10 + $0x88] sm:$0xff]
    %v3690 = vld [vmem:[#allocation10 + $0x90] sm:$0xff]
    %v3691 = vld [vmem:[#allocation10 + $0x98] sm:$0xff]
    %v3692 = vld [vmem:[#allocation10 + $0xa0] sm:$0xff]
    %v3693 = vld [vmem:[#allocation10 + $0xa8] sm:$0xff]
    %v3694 = vld [vmem:[#allocation10 + $0xb0] sm:$0xff]
    %v3695 = vld [vmem:[#allocation10 + $0xb8] sm:$0xff]
    %v3696 = vld [vmem:[#allocation10 + $0xc0] sm:$0xff]
    %v3697 = vld [vmem:[#allocation10 + $0xc8] sm:$0xff]
    %v3698 = vld [vmem:[#allocation10 + $0xd0] sm:$0xff]
    %v3699 = vld [vmem:[#allocation10 + $0xd8] sm:$0xff]
    %v3700 = vld [vmem:[#allocation10 + $0xe0] sm:$0xff]
    %v3701 = vld [vmem:[#allocation10 + $0xe8] sm:$0xff]
    %v3702 = vld [vmem:[#allocation10 + $0xf0] sm:$0xff]
    %v3703 = vld [vmem:[#allocation10 + $0xf8] sm:$0xff]
    %v3704 = vld [vmem:[#allocation10 + $0x100] sm:$0xff]
    %v3705 = vld [vmem:[#allocation10 + $0x108] sm:$0xff]
    %v3706 = vld [vmem:[#allocation10 + $0x110] sm:$0xff]
    %v3707 = vld [vmem:[#allocation10 + $0x118] sm:$0xff]
    %v3708 = vld [vmem:[#allocation10 + $0x120] sm:$0xff]
    %v3709 = vld [vmem:[#allocation10 + $0x128] sm:$0xff]
    %v3710 = vld [vmem:[#allocation10 + $0x130] sm:$0xff]
    %v3711 = vld [vmem:[#allocation10 + $0x138] sm:$0xff]
    %v3712 = vld [vmem:[#allocation10 + $0x140] sm:$0xff]
    %v3713 = vld [vmem:[#allocation10 + $0x148] sm:$0xff]
    %v3714 = vld [vmem:[#allocation10 + $0x150] sm:$0xff]
    %v3715 = vld [vmem:[#allocation10 + $0x158] sm:$0xff]
    %v3716 = vld [vmem:[#allocation10 + $0x160] sm:$0xff]
    %v3717 = vld [vmem:[#allocation10 + $0x168] sm:$0xff]
    %v3718 = vld [vmem:[#allocation10 + $0x170] sm:$0xff]
    %v3719 = vld [vmem:[#allocation10 + $0x178] sm:$0xff]
    %v3720 = vld [vmem:[#allocation10 + $0x180] sm:$0xff]
    %v3721 = vld [vmem:[#allocation10 + $0x188] sm:$0xff]
    %v3722 = vld [vmem:[#allocation10 + $0x190] sm:$0xff]
    %v3723 = vld [vmem:[#allocation10 + $0x198] sm:$0xff]
    %v3724 = vld [vmem:[#allocation10 + $0x1a0] sm:$0xff]
    %v3725 = vld [vmem:[#allocation10 + $0x1a8] sm:$0xff]
    %v3726 = vld [vmem:[#allocation10 + $0x1b0] sm:$0xff]
    %v3727 = vld [vmem:[#allocation10 + $0x1b8] sm:$0xff]
    %v3728 = vld [vmem:[#allocation10 + $0x1c0] sm:$0xff]
    %v3729 = vld [vmem:[#allocation10 + $0x1c8] sm:$0xff]
    %v3730 = vld [vmem:[#allocation10 + $0x1d0] sm:$0xff]
    %v3731 = vld [vmem:[#allocation10 + $0x1d8] sm:$0xff]
    %v3732 = vld [vmem:[#allocation10 + $0x1e0] sm:$0xff]
    %v3733 = vld [vmem:[#allocation10 + $0x1e8] sm:$0xff]
    %v3734 = vld [vmem:[#allocation10 + $0x1f0] sm:$0xff]
    %v3735 = vld [vmem:[#allocation10 + $0x1f8] sm:$0xff]
    %3736 = vmatpush.msra.mxu0 %v3732
    %3737 = vmatpush.msra.mxu0 %v3728
    %3738 = vmatpush.msra.mxu0 %v3724
    %3739 = vmatpush.msra.mxu0 %v3720
    %3740 = vmatpush.msra.mxu0 %v3716
    %3741 = vmatpush.msra.mxu0 %v3712
    %3742 = vmatpush.msra.mxu0 %v3708
    %3743 = vmatpush.msra.mxu0 %v3704
    %3744 = vmatpush.msra.mxu0 %v3700
    %3745 = vmatpush.msra.mxu0 %v3696
    %3746 = vmatpush.msra.mxu0 %v3692
    %3747 = vmatpush.msra.mxu0 %v3688
    %3748 = vmatpush.msra.mxu0 %v3684
    %3749 = vmatpush.msra.mxu0 %v3680
    %3750 = vmatpush.msra.mxu0 %v3676
    %3751 = vmatpush.msra.mxu0 %v3672
    %3752 = vmatmul.f32.gmra.mxu0 %v3666
    %v3753 = vpop.f32.mrf.mxu0
    %v3754 = vadd.f32 0.0, %v3753
    %3755 = vdwg.mxu0
    %3756 = vmatpush.msra.mxu0 %v3733
    %3757 = vmatpush.msra.mxu0 %v3729
    %3758 = vmatpush.msra.mxu0 %v3725
    %3759 = vmatpush.msra.mxu0 %v3721
    %3760 = vmatpush.msra.mxu0 %v3717
    %3761 = vmatpush.msra.mxu0 %v3713
    %3762 = vmatpush.msra.mxu0 %v3709
    %3763 = vmatpush.msra.mxu0 %v3705
    %3764 = vmatpush.msra.mxu0 %v3701
    %3765 = vmatpush.msra.mxu0 %v3697
    %3766 = vmatpush.msra.mxu0 %v3693
    %3767 = vmatpush.msra.mxu0 %v3689
    %3768 = vmatpush.msra.mxu0 %v3685
    %3769 = vmatpush.msra.mxu0 %v3681
    %3770 = vmatpush.msra.mxu0 %v3677
    %3771 = vmatpush.msra.mxu0 %v3673
    %3772 = vmatmul.f32.gmra.mxu0 %v3666
    %v3773 = vpop.f32.mrf.mxu0
    %v3774 = vadd.f32 0.0, %v3773
    %3775 = vdwg.mxu0
    %3776 = vmatpush.msra.mxu0 %v3734
    %3777 = vmatpush.msra.mxu0 %v3730
    %3778 = vmatpush.msra.mxu0 %v3726
    %3779 = vmatpush.msra.mxu0 %v3722
    %3780 = vmatpush.msra.mxu0 %v3718
    %3781 = vmatpush.msra.mxu0 %v3714
    %3782 = vmatpush.msra.mxu0 %v3710
    %3783 = vmatpush.msra.mxu0 %v3706
    %3784 = vmatpush.msra.mxu0 %v3702
    %3785 = vmatpush.msra.mxu0 %v3698
    %3786 = vmatpush.msra.mxu0 %v3694
    %3787 = vmatpush.msra.mxu0 %v3690
    %3788 = vmatpush.msra.mxu0 %v3686
    %3789 = vmatpush.msra.mxu0 %v3682
    %3790 = vmatpush.msra.mxu0 %v3678
    %3791 = vmatpush.msra.mxu0 %v3674
    %3792 = vmatmul.f32.gmra.mxu0 %v3666
    %v3793 = vpop.f32.mrf.mxu0
    %v3794 = vadd.f32 0.0, %v3793
    %3795 = vdwg.mxu0
    %3796 = vmatpush.msra.mxu0 %v3735
    %3797 = vmatpush.msra.mxu0 %v3731
    %3798 = vmatpush.msra.mxu0 %v3727
    %3799 = vmatpush.msra.mxu0 %v3723
    %3800 = vmatpush.msra.mxu0 %v3719
    %3801 = vmatpush.msra.mxu0 %v3715
    %3802 = vmatpush.msra.mxu0 %v3711
    %3803 = vmatpush.msra.mxu0 %v3707
    %3804 = vmatpush.msra.mxu0 %v3703
    %3805 = vmatpush.msra.mxu0 %v3699
    %3806 = vmatpush.msra.mxu0 %v3695
    %3807 = vmatpush.msra.mxu0 %v3691
    %3808 = vmatpush.msra.mxu0 %v3687
    %3809 = vmatpush.msra.mxu0 %v3683
    %3810 = vmatpush.msra.mxu0 %v3679
    %3811 = vmatpush.msra.mxu0 %v3675
    %3812 = vmatmul.f32.gmra.mxu0 %v3666
    %v3813 = vpop.f32.mrf.mxu0
    %v3814 = vadd.f32 0.0, %v3813
    %3815 = vdwg.mxu0
    %v3816 = vadd.f32 %v3668, %v3754
    %v3817 = vadd.f32 %v3669, %v3774
    %v3818 = vadd.f32 %v3670, %v3794
    %v3819 = vadd.f32 %v3671, %v3814
    %v3820 = vxor.u32 %v3816, 2147483648
    %v3821 = vmul.f32 %v3820, 1.442695
    %v3822 = vpow.pop %v3821
    %v3823 = vadd.f32 %v3822, 1.0
    %v3824 = vrcp.pop %v3823
    %v3825 = vmul.f32 %v3823, %v3824
    %v3826 = vsub.f32 1.0, %v3825
    %v3827 = vmul.f32 %v3824, %v3826
    %v3828 = vadd.f32 %v3824, %v3827
    %vm3829 = vweird.f32 %v3823
    %vm3830 = vweird.f32 %v3824
    %vm3831 = vmor %vm3829, %vm3830
    %v3832 = vsel %vm3831, %v3824, %v3828
    %v3833 = vand.u32 2147483647, %v3823
    %vm3834 = vcmp.eq.f32.partialorder %v3833, 8.507059e+37
    %v3835 = vand.u32 %v3823, 2147483648
    %v3836 = vor.u32 1.1754944e-38, %v3835
    %v3837 = vsel %vm3834, %v3836, %v3832
    %v3838 = vmul.f32 1.0, %v3837
    %v3839 = vxor.u32 %v3817, 2147483648
    %v3840 = vmul.f32 %v3839, 1.442695
    %v3841 = vpow.pop %v3840
    %v3842 = vadd.f32 %v3841, 1.0
    %v3843 = vrcp.pop %v3842
    %v3844 = vmul.f32 %v3842, %v3843
    %v3845 = vsub.f32 1.0, %v3844
    %v3846 = vmul.f32 %v3843, %v3845
    %v3847 = vadd.f32 %v3843, %v3846
    %vm3848 = vweird.f32 %v3842
    %vm3849 = vweird.f32 %v3843
    %vm3850 = vmor %vm3848, %vm3849
    %v3851 = vsel %vm3850, %v3843, %v3847
    %v3852 = vand.u32 2147483647, %v3842
    %vm3853 = vcmp.eq.f32.partialorder %v3852, 8.507059e+37
    %v3854 = vand.u32 %v3842, 2147483648
    %v3855 = vor.u32 1.1754944e-38, %v3854
    %v3856 = vsel %vm3853, %v3855, %v3851
    %v3857 = vmul.f32 1.0, %v3856
    %v3858 = vtanh.pop %v3818
    %v3859 = vxor.u32 %v3819, 2147483648
    %v3860 = vmul.f32 %v3859, 1.442695
    %v3861 = vpow.pop %v3860
    %v3862 = vadd.f32 %v3861, 1.0
    %v3863 = vrcp.pop %v3862
    %v3864 = vmul.f32 %v3862, %v3863
    %v3865 = vsub.f32 1.0, %v3864
    %v3866 = vmul.f32 %v3863, %v3865
    %v3867 = vadd.f32 %v3863, %v3866
    %vm3868 = vweird.f32 %v3862
    %vm3869 = vweird.f32 %v3863
    %vm3870 = vmor %vm3868, %vm3869
    %v3871 = vsel %vm3870, %v3863, %v3867
    %v3872 = vand.u32 2147483647, %v3862
    %vm3873 = vcmp.eq.f32.partialorder %v3872, 8.507059e+37
    %v3874 = vand.u32 %v3862, 2147483648
    %v3875 = vor.u32 1.1754944e-38, %v3874
    %v3876 = vsel %vm3873, %v3875, %v3871
    %v3877 = vmul.f32 1.0, %v3876
    %v3878 = vmul.f32 %v3857, %v3664
    %v3879 = vmul.f32 %v3838, %v3858
    %v3880 = vadd.f32 %v3878, %v3879
    %v3881 = vtanh.pop %v3880
    %v3882 = vmul.f32 %v3877, %v3881
    %3883 = vst [vmem:[#allocation3 + $0x30] sm:$0xff] %v3882
    %v3884 = vld [vmem:[#allocation2 + $0xe0] sm:$0xff]
    %v3885 = vld [vmem:[#allocation2 + $0xe8] sm:$0xff]
    %v3886 = vld [vmem:[#allocation2 + $0xf0] sm:$0xff]
    %v3887 = vld [vmem:[#allocation2 + $0xf8] sm:$0xff]
    %v3888 = vld [vmem:[#allocation10] sm:$0xff]
    %v3889 = vld [vmem:[#allocation10 + $0x8] sm:$0xff]
    %v3890 = vld [vmem:[#allocation10 + $0x10] sm:$0xff]
    %v3891 = vld [vmem:[#allocation10 + $0x18] sm:$0xff]
    %v3892 = vld [vmem:[#allocation10 + $0x20] sm:$0xff]
    %v3893 = vld [vmem:[#allocation10 + $0x28] sm:$0xff]
    %v3894 = vld [vmem:[#allocation10 + $0x30] sm:$0xff]
    %v3895 = vld [vmem:[#allocation10 + $0x38] sm:$0xff]
    %v3896 = vld [vmem:[#allocation10 + $0x40] sm:$0xff]
    %v3897 = vld [vmem:[#allocation10 + $0x48] sm:$0xff]
    %v3898 = vld [vmem:[#allocation10 + $0x50] sm:$0xff]
    %v3899 = vld [vmem:[#allocation10 + $0x58] sm:$0xff]
    %v3900 = vld [vmem:[#allocation10 + $0x60] sm:$0xff]
    %v3901 = vld [vmem:[#allocation10 + $0x68] sm:$0xff]
    %v3902 = vld [vmem:[#allocation10 + $0x70] sm:$0xff]
    %v3903 = vld [vmem:[#allocation10 + $0x78] sm:$0xff]
    %v3904 = vld [vmem:[#allocation10 + $0x80] sm:$0xff]
    %v3905 = vld [vmem:[#allocation10 + $0x88] sm:$0xff]
    %v3906 = vld [vmem:[#allocation10 + $0x90] sm:$0xff]
    %v3907 = vld [vmem:[#allocation10 + $0x98] sm:$0xff]
    %v3908 = vld [vmem:[#allocation10 + $0xa0] sm:$0xff]
    %v3909 = vld [vmem:[#allocation10 + $0xa8] sm:$0xff]
    %v3910 = vld [vmem:[#allocation10 + $0xb0] sm:$0xff]
    %v3911 = vld [vmem:[#allocation10 + $0xb8] sm:$0xff]
    %v3912 = vld [vmem:[#allocation10 + $0xc0] sm:$0xff]
    %v3913 = vld [vmem:[#allocation10 + $0xc8] sm:$0xff]
    %v3914 = vld [vmem:[#allocation10 + $0xd0] sm:$0xff]
    %v3915 = vld [vmem:[#allocation10 + $0xd8] sm:$0xff]
    %v3916 = vld [vmem:[#allocation10 + $0xe0] sm:$0xff]
    %v3917 = vld [vmem:[#allocation10 + $0xe8] sm:$0xff]
    %v3918 = vld [vmem:[#allocation10 + $0xf0] sm:$0xff]
    %v3919 = vld [vmem:[#allocation10 + $0xf8] sm:$0xff]
    %v3920 = vld [vmem:[#allocation10 + $0x100] sm:$0xff]
    %v3921 = vld [vmem:[#allocation10 + $0x108] sm:$0xff]
    %v3922 = vld [vmem:[#allocation10 + $0x110] sm:$0xff]
    %v3923 = vld [vmem:[#allocation10 + $0x118] sm:$0xff]
    %v3924 = vld [vmem:[#allocation10 + $0x120] sm:$0xff]
    %v3925 = vld [vmem:[#allocation10 + $0x128] sm:$0xff]
    %v3926 = vld [vmem:[#allocation10 + $0x130] sm:$0xff]
    %v3927 = vld [vmem:[#allocation10 + $0x138] sm:$0xff]
    %v3928 = vld [vmem:[#allocation10 + $0x140] sm:$0xff]
    %v3929 = vld [vmem:[#allocation10 + $0x148] sm:$0xff]
    %v3930 = vld [vmem:[#allocation10 + $0x150] sm:$0xff]
    %v3931 = vld [vmem:[#allocation10 + $0x158] sm:$0xff]
    %v3932 = vld [vmem:[#allocation10 + $0x160] sm:$0xff]
    %v3933 = vld [vmem:[#allocation10 + $0x168] sm:$0xff]
    %v3934 = vld [vmem:[#allocation10 + $0x170] sm:$0xff]
    %v3935 = vld [vmem:[#allocation10 + $0x178] sm:$0xff]
    %v3936 = vld [vmem:[#allocation10 + $0x180] sm:$0xff]
    %v3937 = vld [vmem:[#allocation10 + $0x188] sm:$0xff]
    %v3938 = vld [vmem:[#allocation10 + $0x190] sm:$0xff]
    %v3939 = vld [vmem:[#allocation10 + $0x198] sm:$0xff]
    %v3940 = vld [vmem:[#allocation10 + $0x1a0] sm:$0xff]
    %v3941 = vld [vmem:[#allocation10 + $0x1a8] sm:$0xff]
    %v3942 = vld [vmem:[#allocation10 + $0x1b0] sm:$0xff]
    %v3943 = vld [vmem:[#allocation10 + $0x1b8] sm:$0xff]
    %v3944 = vld [vmem:[#allocation10 + $0x1c0] sm:$0xff]
    %v3945 = vld [vmem:[#allocation10 + $0x1c8] sm:$0xff]
    %v3946 = vld [vmem:[#allocation10 + $0x1d0] sm:$0xff]
    %v3947 = vld [vmem:[#allocation10 + $0x1d8] sm:$0xff]
    %v3948 = vld [vmem:[#allocation10 + $0x1e0] sm:$0xff]
    %v3949 = vld [vmem:[#allocation10 + $0x1e8] sm:$0xff]
    %v3950 = vld [vmem:[#allocation10 + $0x1f0] sm:$0xff]
    %v3951 = vld [vmem:[#allocation10 + $0x1f8] sm:$0xff]
    %3952 = vmatpush.msra.mxu0 %v3948
    %3953 = vmatpush.msra.mxu0 %v3944
    %3954 = vmatpush.msra.mxu0 %v3940
    %3955 = vmatpush.msra.mxu0 %v3936
    %3956 = vmatpush.msra.mxu0 %v3932
    %3957 = vmatpush.msra.mxu0 %v3928
    %3958 = vmatpush.msra.mxu0 %v3924
    %3959 = vmatpush.msra.mxu0 %v3920
    %3960 = vmatpush.msra.mxu0 %v3916
    %3961 = vmatpush.msra.mxu0 %v3912
    %3962 = vmatpush.msra.mxu0 %v3908
    %3963 = vmatpush.msra.mxu0 %v3904
    %3964 = vmatpush.msra.mxu0 %v3900
    %3965 = vmatpush.msra.mxu0 %v3896
    %3966 = vmatpush.msra.mxu0 %v3892
    %3967 = vmatpush.msra.mxu0 %v3888
    %3968 = vmatmul.f32.gmra.mxu0 %v3882
    %v3969 = vpop.f32.mrf.mxu0
    %v3970 = vadd.f32 0.0, %v3969
    %3971 = vdwg.mxu0
    %3972 = vmatpush.msra.mxu0 %v3949
    %3973 = vmatpush.msra.mxu0 %v3945
    %3974 = vmatpush.msra.mxu0 %v3941
    %3975 = vmatpush.msra.mxu0 %v3937
    %3976 = vmatpush.msra.mxu0 %v3933
    %3977 = vmatpush.msra.mxu0 %v3929
    %3978 = vmatpush.msra.mxu0 %v3925
    %3979 = vmatpush.msra.mxu0 %v3921
    %3980 = vmatpush.msra.mxu0 %v3917
    %3981 = vmatpush.msra.mxu0 %v3913
    %3982 = vmatpush.msra.mxu0 %v3909
    %3983 = vmatpush.msra.mxu0 %v3905
    %3984 = vmatpush.msra.mxu0 %v3901
    %3985 = vmatpush.msra.mxu0 %v3897
    %3986 = vmatpush.msra.mxu0 %v3893
    %3987 = vmatpush.msra.mxu0 %v3889
    %3988 = vmatmul.f32.gmra.mxu0 %v3882
    %v3989 = vpop.f32.mrf.mxu0
    %v3990 = vadd.f32 0.0, %v3989
    %3991 = vdwg.mxu0
    %3992 = vmatpush.msra.mxu0 %v3950
    %3993 = vmatpush.msra.mxu0 %v3946
    %3994 = vmatpush.msra.mxu0 %v3942
    %3995 = vmatpush.msra.mxu0 %v3938
    %3996 = vmatpush.msra.mxu0 %v3934
    %3997 = vmatpush.msra.mxu0 %v3930
    %3998 = vmatpush.msra.mxu0 %v3926
    %3999 = vmatpush.msra.mxu0 %v3922
    %4000 = vmatpush.msra.mxu0 %v3918
    %4001 = vmatpush.msra.mxu0 %v3914
    %4002 = vmatpush.msra.mxu0 %v3910
    %4003 = vmatpush.msra.mxu0 %v3906
    %4004 = vmatpush.msra.mxu0 %v3902
    %4005 = vmatpush.msra.mxu0 %v3898
    %4006 = vmatpush.msra.mxu0 %v3894
    %4007 = vmatpush.msra.mxu0 %v3890
    %4008 = vmatmul.f32.gmra.mxu0 %v3882
    %v4009 = vpop.f32.mrf.mxu0
    %v4010 = vadd.f32 0.0, %v4009
    %4011 = vdwg.mxu0
    %4012 = vmatpush.msra.mxu0 %v3951
    %4013 = vmatpush.msra.mxu0 %v3947
    %4014 = vmatpush.msra.mxu0 %v3943
    %4015 = vmatpush.msra.mxu0 %v3939
    %4016 = vmatpush.msra.mxu0 %v3935
    %4017 = vmatpush.msra.mxu0 %v3931
    %4018 = vmatpush.msra.mxu0 %v3927
    %4019 = vmatpush.msra.mxu0 %v3923
    %4020 = vmatpush.msra.mxu0 %v3919
    %4021 = vmatpush.msra.mxu0 %v3915
    %4022 = vmatpush.msra.mxu0 %v3911
    %4023 = vmatpush.msra.mxu0 %v3907
    %4024 = vmatpush.msra.mxu0 %v3903
    %4025 = vmatpush.msra.mxu0 %v3899
    %4026 = vmatpush.msra.mxu0 %v3895
    %4027 = vmatpush.msra.mxu0 %v3891
    %4028 = vmatmul.f32.gmra.mxu0 %v3882
    %v4029 = vpop.f32.mrf.mxu0
    %v4030 = vadd.f32 0.0, %v4029
    %4031 = vdwg.mxu0
    %v4032 = vadd.f32 %v3884, %v3970
    %v4033 = vadd.f32 %v3885, %v3990
    %v4034 = vadd.f32 %v3886, %v4010
    %v4035 = vadd.f32 %v3887, %v4030
    %v4036 = vxor.u32 %v4032, 2147483648
    %v4037 = vmul.f32 %v4036, 1.442695
    %v4038 = vpow.pop %v4037
    %v4039 = vadd.f32 %v4038, 1.0
    %v4040 = vrcp.pop %v4039
    %v4041 = vmul.f32 %v4039, %v4040
    %v4042 = vsub.f32 1.0, %v4041
    %v4043 = vmul.f32 %v4040, %v4042
    %v4044 = vadd.f32 %v4040, %v4043
    %vm4045 = vweird.f32 %v4039
    %vm4046 = vweird.f32 %v4040
    %vm4047 = vmor %vm4045, %vm4046
    %v4048 = vsel %vm4047, %v4040, %v4044
    %v4049 = vand.u32 2147483647, %v4039
    %vm4050 = vcmp.eq.f32.partialorder %v4049, 8.507059e+37
    %v4051 = vand.u32 %v4039, 2147483648
    %v4052 = vor.u32 1.1754944e-38, %v4051
    %v4053 = vsel %vm4050, %v4052, %v4048
    %v4054 = vmul.f32 1.0, %v4053
    %v4055 = vxor.u32 %v4033, 2147483648
    %v4056 = vmul.f32 %v4055, 1.442695
    %v4057 = vpow.pop %v4056
    %v4058 = vadd.f32 %v4057, 1.0
    %v4059 = vrcp.pop %v4058
    %v4060 = vmul.f32 %v4058, %v4059
    %v4061 = vsub.f32 1.0, %v4060
    %v4062 = vmul.f32 %v4059, %v4061
    %v4063 = vadd.f32 %v4059, %v4062
    %vm4064 = vweird.f32 %v4058
    %vm4065 = vweird.f32 %v4059
    %vm4066 = vmor %vm4064, %vm4065
    %v4067 = vsel %vm4066, %v4059, %v4063
    %v4068 = vand.u32 2147483647, %v4058
    %vm4069 = vcmp.eq.f32.partialorder %v4068, 8.507059e+37
    %v4070 = vand.u32 %v4058, 2147483648
    %v4071 = vor.u32 1.1754944e-38, %v4070
    %v4072 = vsel %vm4069, %v4071, %v4067
    %v4073 = vmul.f32 1.0, %v4072
    %v4074 = vtanh.pop %v4034
    %v4075 = vxor.u32 %v4035, 2147483648
    %v4076 = vmul.f32 %v4075, 1.442695
    %v4077 = vpow.pop %v4076
    %v4078 = vadd.f32 %v4077, 1.0
    %v4079 = vrcp.pop %v4078
    %v4080 = vmul.f32 %v4078, %v4079
    %v4081 = vsub.f32 1.0, %v4080
    %v4082 = vmul.f32 %v4079, %v4081
    %v4083 = vadd.f32 %v4079, %v4082
    %vm4084 = vweird.f32 %v4078
    %vm4085 = vweird.f32 %v4079
    %vm4086 = vmor %vm4084, %vm4085
    %v4087 = vsel %vm4086, %v4079, %v4083
    %v4088 = vand.u32 2147483647, %v4078
    %vm4089 = vcmp.eq.f32.partialorder %v4088, 8.507059e+37
    %v4090 = vand.u32 %v4078, 2147483648
    %v4091 = vor.u32 1.1754944e-38, %v4090
    %v4092 = vsel %vm4089, %v4091, %v4087
    %v4093 = vmul.f32 1.0, %v4092
    %v4094 = vmul.f32 %v4073, %v3880
    %v4095 = vmul.f32 %v4054, %v4074
    %v4096 = vadd.f32 %v4094, %v4095
    %v4097 = vtanh.pop %v4096
    %v4098 = vmul.f32 %v4093, %v4097
    %4099 = vst [vmem:[#allocation3 + $0x38] sm:$0xff] %v4098
    %v4100 = vld [vmem:[#allocation3] sm:$0xff]
    %v4101 = vld [vmem:[#allocation3 + $0x8] sm:$0xff]
    %v4102 = vld [vmem:[#allocation3 + $0x10] sm:$0xff]
    %v4103 = vld [vmem:[#allocation3 + $0x18] sm:$0xff]
    %v4104 = vld [vmem:[#allocation3 + $0x20] sm:$0xff]
    %v4105 = vld [vmem:[#allocation3 + $0x28] sm:$0xff]
    %v4106 = vld [vmem:[#allocation3 + $0x30] sm:$0xff]
    %v4107 = vld [vmem:[#allocation3 + $0x38] sm:$0xff]
    %v4108 = vld [vmem:[#allocation12] sm:$0xff]
    %v4109 = vld [vmem:[#allocation12 + $0x8] sm:$0xff]
    %v4110 = vld [vmem:[#allocation12 + $0x10] sm:$0xff]
    %v4111 = vld [vmem:[#allocation12 + $0x18] sm:$0xff]
    %v4112 = vld [vmem:[#allocation12 + $0x20] sm:$0xff]
    %v4113 = vld [vmem:[#allocation12 + $0x28] sm:$0xff]
    %v4114 = vld [vmem:[#allocation12 + $0x30] sm:$0xff]
    %v4115 = vld [vmem:[#allocation12 + $0x38] sm:$0xff]
    %v4116 = vld [vmem:[#allocation12 + $0x40] sm:$0xff]
    %v4117 = vld [vmem:[#allocation12 + $0x48] sm:$0xff]
    %v4118 = vld [vmem:[#allocation12 + $0x50] sm:$0xff]
    %v4119 = vld [vmem:[#allocation12 + $0x58] sm:$0xff]
    %v4120 = vld [vmem:[#allocation12 + $0x60] sm:$0xff]
    %v4121 = vld [vmem:[#allocation12 + $0x68] sm:$0xff]
    %v4122 = vld [vmem:[#allocation12 + $0x70] sm:$0xff]
    %v4123 = vld [vmem:[#allocation12 + $0x78] sm:$0xff]
    %v4124 = vld [vmem:[%s8] sm:$0x1]
    %v4126 = vperm.slane %v4124, 0
    %4128 = vmatpush.msra.mxu0 %v4123
    %4129 = vmatpush.msra.mxu0 %v4122
    %4130 = vmatpush.msra.mxu0 %v4121
    %4131 = vmatpush.msra.mxu0 %v4120
    %4132 = vmatpush.msra.mxu0 %v4119
    %4133 = vmatpush.msra.mxu0 %v4118
    %4134 = vmatpush.msra.mxu0 %v4117
    %4135 = vmatpush.msra.mxu0 %v4116
    %4136 = vmatpush.msra.mxu0 %v4115
    %4137 = vmatpush.msra.mxu0 %v4114
    %4138 = vmatpush.msra.mxu0 %v4113
    %4139 = vmatpush.msra.mxu0 %v4112
    %4140 = vmatpush.msra.mxu0 %v4111
    %4141 = vmatpush.msra.mxu0 %v4110
    %4142 = vmatpush.msra.mxu0 %v4109
    %4143 = vmatpush.msra.mxu0 %v4108
    %4144 = vmatmul.f32.gmra.mxu0 %v4100
    %v4145 = vpop.f32.mrf.mxu0
    %v4146 = vadd.f32 %v4126, %v4145
    %4147 = vmatmul.f32.gmra.mxu0 %v4101
    %v4148 = vpop.f32.mrf.mxu0
    %v4149 = vadd.f32 %v4126, %v4148
    %4150 = vmatmul.f32.gmra.mxu0 %v4102
    %v4151 = vpop.f32.mrf.mxu0
    %v4152 = vadd.f32 %v4126, %v4151
    %4153 = vmatmul.f32.gmra.mxu0 %v4103
    %v4154 = vpop.f32.mrf.mxu0
    %v4155 = vadd.f32 %v4126, %v4154
    %4156 = vmatmul.f32.gmra.mxu0 %v4104
    %v4157 = vpop.f32.mrf.mxu0
    %v4158 = vadd.f32 %v4126, %v4157
    %4159 = vmatmul.f32.gmra.mxu0 %v4105
    %v4160 = vpop.f32.mrf.mxu0
    %v4161 = vadd.f32 %v4126, %v4160
    %4162 = vmatmul.f32.gmra.mxu0 %v4106
    %v4163 = vpop.f32.mrf.mxu0
    %v4164 = vadd.f32 %v4126, %v4163
    %4165 = vmatmul.f32.gmra.mxu0 %v4107
    %v4166 = vpop.f32.mrf.mxu0
    %v4167 = vadd.f32 %v4126, %v4166
    %4168 = vdwg.mxu0
    %4169 = vst [vmem:[#allocation13] sm:$0xff] %v4146
    %4170 = vst [vmem:[#allocation13 + $0x8] sm:$0xff] %v4149
    %4171 = vst [vmem:[#allocation13 + $0x10] sm:$0xff] %v4152
    %4172 = vst [vmem:[#allocation13 + $0x18] sm:$0xff] %v4155
    %4173 = vst [vmem:[#allocation13 + $0x20] sm:$0xff] %v4158
    %4174 = vst [vmem:[#allocation13 + $0x28] sm:$0xff] %v4161
    %4175 = vst [vmem:[#allocation13 + $0x30] sm:$0xff] %v4164
    %4176 = vst [vmem:[#allocation13 + $0x38] sm:$0xff] %v4167
    // Predicated region
    $region58: #{tpu_custom_call.1} parent=1 // pred_check
      _
    $region59: #{tpu_custom_call.1} parent=1 // pred_check_branch
      %4178 = sbr.rel (0) target = $region61
    $region60: #{tpu_custom_call.1} parent=1 // pred_region
      %4180 = vsyncadd [#allocation6], 0
      %s4181 = sshll.u32 [#allocation13], 4
      %s4182 = int_to_ptr.vmem [resolvable:$true] %s4181
      %s4183 = sshll.u32 %s9, 4
      %s4184 = int_to_ptr.hbm [resolvable:$true] %s4183
      %4189 = dma.vmem_to_hbm [thread:$0]  %s4182, 1024, %s4184, [#allocation6], 128, 128, 8
    $region61: #{tpu_custom_call.1} parent=1 // pred_fallthru
      _
    // Predicated region
    $region62: #{tpu_custom_call.1} parent=1 // pred_check
      _
    $region63: #{tpu_custom_call.1} parent=1 // pred_check_branch
      %4191 = sbr.rel (0) target = $region65
    $region64: #{tpu_custom_call.1} parent=1 // pred_region
      %4193 = dma.done [#allocation6], 1024
    $region65: #{tpu_custom_call.1} parent=1 // pred_fallthru
      _
    %4194 = vsyncpa [#allocation5], 1
    %4195 = vsyncpa [#allocation8], 1
    %4196 = vsyncpa [#allocation11], 1
    %4197 = vsyncpa [#allocation6], 1

</llo_original>
